<compile_context>
chip_gen: v7x
topology: tpu7x:2x2x1
jax: 0.10.0
libtpu: 0.0.40
codegen_flags: <defaults>
</compile_context>

<pallas_src>
import functools

import numpy as np
import jax
import jax.numpy as jnp
from jax import lax
from jax.experimental import pallas as pl
from jax.experimental.pallas import tpu as pltpu

_VMEM_LIMIT = 32 * 1024 * 1024   # valid on v5e/v6e/v7x; tiles use far less
_CONV_TILE_M = 2048              # target rows per conv tile
_MLP_TILE_B = 1024               # target rows per MLP tile
_LANE = 256                      # padded per-row lane width of conv outputs


def _round_up(x, m):
    return ((x + m - 1) // m) * m


def _pick_tile(m, target):
    """Row tile: multiple of 8 (or == m when m <= 8), <= target, and small
    enough that the grid is >= 2 whenever m allows it (v7x has 2 TCs)."""
    if m <= 8:
        return m
    half = _round_up(pl.cdiv(m, 2), 8)
    return max(8, min(target, half))


# ----------------------------- Pallas kernels ------------------------------

def _conv_pool_kernel(a_ref, g_ref, b_ref, o_ref, *, n_pad):
    """Fused conv(3x3) -> +bias -> relu -> maxpool(2,2) for one row tile.

    a_ref : [TM, K]      bf16  4 shifted input row-slabs, concatenated on K
    g_ref : [K, 4*n_pad] bf16  block-banded weight; column block q holds the
                               conv result of pool quadrant q = 2*r + c
    b_ref : [1, n_pad]   f32   bias tiled over pooled width positions
    o_ref : [TM, n_pad]  bf16  pooled NHWC activations, (wp, cout) in lanes
    """
    a = a_ref[...]
    m = None
    for q in range(4):                      # quadrant max, 256-aligned slices
        y = jnp.dot(a, g_ref[:, q * n_pad:(q + 1) * n_pad],
                    preferred_element_type=jnp.float32)
        m = y if m is None else jnp.maximum(m, y)
    o_ref[...] = jnp.maximum(m + b_ref[...], 0.0).astype(o_ref.dtype)


def _mlp_kernel(x_ref, w1_ref, b1_ref, w2_ref, b2_ref, o_ref):
    """o = relu(x @ w1 + b1) @ w2 + b2 (fused fc1 + relu + fc2), f32 accum."""
    h = jnp.dot(x_ref[...], w1_ref[...], preferred_element_type=jnp.float32)
    h = jnp.maximum(h + b1_ref[...], 0.0).astype(w2_ref.dtype)
    o_ref[...] = (jnp.dot(h, w2_ref[...], preferred_element_type=jnp.float32)
                  + b2_ref[...])


# ------------------------------ Pallas wrappers -----------------------------

def conv_relu_pool(a_cat, g, bias_row, *, tile_m=_CONV_TILE_M):
    m_real = a_cat.shape[0]
    if m_real < 8:                                    # degenerate tiny batches
        a_cat = jnp.pad(a_cat, ((0, 8 - m_real), (0, 0)))
    M, K = a_cat.shape
    N4 = g.shape[1]
    n_pad = N4 // 4
    tm = _pick_tile(M, tile_m)

    out = pl.pallas_call(
        functools.partial(_conv_pool_kernel, n_pad=n_pad),
        out_shape=jax.ShapeDtypeStruct((M, n_pad), jnp.bfloat16),
        grid_spec=pltpu.PrefetchScalarGridSpec(
            num_scalar_prefetch=0,
            grid=(pl.cdiv(M, tm),),
            in_specs=[
                pl.BlockSpec((tm, K), lambda i: (i, 0)),       # streamed rows
                pl.BlockSpec((K, N4), lambda i: (0, 0)),       # resident weight
                pl.BlockSpec((1, n_pad), lambda i: (0, 0)),    # resident bias
            ],
            out_specs=pl.BlockSpec((tm, n_pad), lambda i: (i, 0)),
        ),
        compiler_params=pltpu.CompilerParams(
            dimension_semantics=("parallel",),                 # v7x megacore
            vmem_limit_bytes=_VMEM_LIMIT,
        ),
        cost_estimate=pl.CostEstimate(
            flops=2 * M * K * N4,
            transcendentals=0,
            bytes_accessed=M * K * 2 + K * N4 * 2 + n_pad * 4 + M * n_pad * 2,
        ),
    )(a_cat, g, bias_row)
    return out if out.shape[0] == m_real else out[:m_real]


def mlp(x, w1, b1, w2, b2, *, tile_b=_MLP_TILE_B):
    b_real = x.shape[0]
    if b_real < 8:
        x = jnp.pad(x, ((0, 8 - b_real), (0, 0)))
    B, K = x.shape
    H = w1.shape[1]
    N = w2.shape[1]
    tb = _pick_tile(B, tile_b)

    out = pl.pallas_call(
        _mlp_kernel,
        out_shape=jax.ShapeDtypeStruct((B, N), jnp.float32),
        grid_spec=pltpu.PrefetchScalarGridSpec(
            num_scalar_prefetch=0,
            grid=(pl.cdiv(B, tb),),
            in_specs=[
                pl.BlockSpec((tb, K), lambda i: (i, 0)),       # streamed rows
                pl.BlockSpec((K, H), lambda i: (0, 0)),        # resident fc1
                pl.BlockSpec((1, H), lambda i: (0, 0)),
                pl.BlockSpec((H, N), lambda i: (0, 0)),        # resident fc2
                pl.BlockSpec((1, N), lambda i: (0, 0)),
            ],
            out_specs=pl.BlockSpec((tb, N), lambda i: (i, 0)),
        ),
        compiler_params=pltpu.CompilerParams(
            dimension_semantics=("parallel",),
            vmem_limit_bytes=_VMEM_LIMIT,
        ),
        cost_estimate=pl.CostEstimate(
            flops=2 * B * K * H + 2 * B * H * N,
            transcendentals=0,
            bytes_accessed=(B * K * 2 + K * H * 2 + H * N * 2
                            + (H + N) * 4 + B * N * 4),
        ),
    )(x, w1, b1, w2, b2)
    return out if out.shape[0] == b_real else out[:b_real]


# --------------------------------- glue -------------------------------------

def _pool_row_slabs(x_bhk, hp):
    """[B, H, K] NHWC-(w,c)-flattened activations -> [B*hp, 4*K]; column block
    t holds input rows 2*h + t, i.e. the four image rows feeding pooled row h."""
    B = x_bhk.shape[0]
    K = x_bhk.shape[2]
    slabs = [x_bhk[:, t:t + 2 * hp:2, :].reshape(B * hp, K) for t in range(4)]
    return jnp.concatenate(slabs, axis=1)


def prepare_params(p):
    """One-time weight prep (numpy, outside jit): banded conv+pool weights,
    NHWC/lane-padded fc weights, bf16 casts."""

    def conv_pool_weight(w_oihw, wp, lane_in, lane_out):
        # [Cout, Cin, 3, 3] -> banded G [4*lane_in, 4*lane_out].  Row block t =
        # input row offset (2*h_out + t); column block q = 2*r + c = maxpool
        # quadrant.  Within blocks: rows follow the input's (w, cin) lane
        # layout, columns the output's (wp, cout) lane layout.
        w = np.transpose(np.asarray(w_oihw, np.float32), (2, 3, 1, 0))  # kh,kw,ci,co
        kh_sz, kw_sz, cin, cout = w.shape
        g = np.zeros((4 * lane_in, 4 * lane_out), np.float32)
        for t in range(4):
            for r in range(2):
                kh = t - r
                if not 0 <= kh < kh_sz:
                    continue
                for c in range(2):
                    q = 2 * r + c
                    for kw in range(kw_sz):
                        for wpi in range(wp):
                            row = t * lane_in + (2 * wpi + c + kw) * cin
                            col = q * lane_out + wpi * cout
                            g[row:row + cin, col:col + cout] = w[kh, kw]
        return jnp.asarray(g, jnp.bfloat16)

    def bias_row(b, wp, lane_out):
        b = np.asarray(b, np.float32)
        row = np.zeros((1, lane_out), np.float32)
        row[0, :wp * b.shape[0]] = np.tile(b, wp)
        return jnp.asarray(row)

    # fc1: torch flattens NCHW (c, h, w); our features are h-major rows of
    # (wp*cout + c) lanes padded to _LANE.  Permute + scatter once.
    fc1_w = np.asarray(p["fc1_w"], np.float32).reshape(64, 32, 6, 6)   # [n,c,h,w]
    fc1_w = np.transpose(fc1_w, (2, 3, 1, 0))                          # [h,w,c,n]
    w1 = np.zeros((6, _LANE, 64), np.float32)
    w1[:, :6 * 32, :] = fc1_w.reshape(6, 6 * 32, 64)
    w1 = np.pad(w1.reshape(6 * _LANE, 64), ((0, 0), (0, 64)))          # [1536,128]
    b1 = np.zeros((1, 128), np.float32)
    b1[0, :64] = np.asarray(p["fc1_b"], np.float32)

    # fc2: pad contraction 64->128 (zero rows) and outputs 10->128 lanes.
    w2 = np.zeros((128, 128), np.float32)
    w2[:64, :10] = np.asarray(p["fc2_w"], np.float32).T
    b2 = np.zeros((1, 128), np.float32)
    b2[0, :10] = np.asarray(p["fc2_b"], np.float32)

    return {
        "conv1_g": conv_pool_weight(p["conv1_w"], 15, 32 * 3, _LANE),  # [384,1024]
        "conv1_b": bias_row(p["conv1_b"], 15, _LANE),                  # [1,256]
        "conv2_g": conv_pool_weight(p["conv2_w"], 6, _LANE, _LANE),    # [1024,1024]
        "conv2_b": bias_row(p["conv2_b"], 6, _LANE),                   # [1,256]
        "fc1_w": jnp.asarray(w1, jnp.bfloat16),
        "fc1_b": jnp.asarray(b1),
        "fc2_w": jnp.asarray(w2, jnp.bfloat16),
        "fc2_b": jnp.asarray(b2),
    }


@jax.jit
def forward(x_nchw, prep):
    B = x_nchw.shape[0]
    # Single NCHW->NHWC transpose at the boundary; lane layout is (w, c).
    x = jnp.transpose(x_nchw, (0, 2, 3, 1)).astype(jnp.bfloat16).reshape(B, 32, 96)

    # conv1 -> relu -> maxpool: shifted row slabs + one banded Pallas matmul.
    a1 = _pool_row_slabs(x, 15)                                    # [B*15, 384]
    h1 = conv_relu_pool(a1, prep["conv1_g"], prep["conv1_b"])      # [B*15, 256]

    # conv2 -> relu -> maxpool (h1 is already NHWC with (wp, cout) lanes).
    a2 = _pool_row_slabs(h1.reshape(B, 15, _LANE), 6)              # [B*6, 1024]
    h2 = conv_relu_pool(a2, prep["conv2_g"], prep["conv2_b"])      # [B*6, 256]

    # dropout(p=0.5): eval-mode identity.
    # TODO(synk): training-mode dropout masking (pltpu.prng_*) not implemented.

    # Flatten is a free reshape (fc1 weights were scattered to this layout).
    hf = h2.reshape(B, 6 * _LANE)                                  # [B, 1536]
    out = mlp(hf, prep["fc1_w"], prep["fc1_b"], prep["fc2_w"], prep["fc2_b"])
    return out[:, :10]


# ------------------------ deterministic parameter init ----------------------

def init_params(key):
    def uni(k, shape, fan_in):
        bound = 1.0 / (fan_in ** 0.5)
        return jax.random.uniform(k, shape, jnp.float32, -bound, bound)

    ks = jax.random.split(key, 8)
    return {
        "conv1_w": uni(ks[0], (16, 3, 3, 3), 27),      # OIHW, nn.Conv2d(3,16,3)
        "conv1_b": uni(ks[1], (16,), 27),
        "conv2_w": uni(ks[2], (32, 16, 3, 3), 144),    # nn.Conv2d(16,32,3)
        "conv2_b": uni(ks[3], (32,), 144),
        "fc1_w":   uni(ks[4], (64, 1152), 1152),       # nn.Linear(1152,64) [out,in]
        "fc1_b":   uni(ks[5], (64,), 1152),
        "fc2_w":   uni(ks[6], (10, 64), 64),           # nn.Linear(64,10)
        "fc2_b":   uni(ks[7], (10,), 64),
    }


# ------------------------------ pure-JAX reference ---------------------------

def reference_forward(x, p):
    def conv(x, w, b):
        y = lax.conv_general_dilated(x, w, (1, 1), "VALID",
                                     dimension_numbers=("NCHW", "OIHW", "NCHW"))
        return y + b.reshape(1, -1, 1, 1)

    def pool(x):
        return lax.reduce_window(x, -jnp.inf, lax.max,
                                 (1, 1, 2, 2), (1, 1, 2, 2), "VALID")

    h = pool(jax.nn.relu(conv(x, p["conv1_w"], p["conv1_b"])))
    h = pool(jax.nn.relu(conv(h, p["conv2_w"], p["conv2_b"])))
    h = h.reshape(h.shape[0], -1)
    h = jax.nn.relu(h @ p["fc1_w"].T + p["fc1_b"])
    return h @ p["fc2_w"].T + p["fc2_b"]


if __name__ == "__main__":
    key = jax.random.PRNGKey(0)
    pkey, xkey = jax.random.split(key)
    params = init_params(pkey)
    prep = prepare_params(params)

    # fc1 expects 32*6*6=1152 features -> spatial must be 32x32 (CIFAR-10); batch=2.
    x = jax.random.normal(xkey, (2, 3, 32, 32), jnp.float32)

    out = jax.block_until_ready(forward(x, prep))
    assert out.shape == (2, 10), out.shape

    ref = jax.block_until_ready(reference_forward(x, params))
    # bf16 activations/weights with f32 accumulation -> slightly looser tolerance.
    assert jnp.allclose(out, ref, rtol=2e-2, atol=2e-2), \
        float(jnp.max(jnp.abs(out - ref)))

    print("KERNEL_OK")
</pallas_src>

<mosaic_0001>
module attributes {stable_mosaic.version = 11 : i64} {
  func.func @_conv_pool_kernel(%arg0: i32, %arg1: memref<16x384xbf16, #tpu.memory_space<vmem>>, %arg2: memref<384x1024xbf16, #tpu.memory_space<vmem>>, %arg3: memref<1x256xf32, #tpu.memory_space<vmem>>, %arg4: memref<16x256xbf16, #tpu.memory_space<vmem>>) attributes {dimension_semantics = [#tpu.dimension_semantics<parallel>], iteration_bounds = array<i64: 2>, scalar_prefetch = 0 : i64, scratch_operands = 0 : i64, tpu.core_type = #tpu.core_type<tc>, window_params = [{transform_indices = @transform_0, window_bounds = array<i64: 16, 384>}, {pipeline_mode = #tpu.pipeline_mode<synchronous>, transform_indices = @transform_1, window_bounds = array<i64: 384, 1024>}, {pipeline_mode = #tpu.pipeline_mode<synchronous>, transform_indices = @transform_2, window_bounds = array<i64: 1, 256>}, {transform_indices = @transform_3, window_bounds = array<i64: 16, 256>}]} {
    %c0 = arith.constant 0 : index
    %c0_0 = arith.constant 0 : index
    %0 = vector.load %arg1[%c0, %c0_0] : memref<16x384xbf16, #tpu.memory_space<vmem>>, vector<16x384xbf16>
    %c0_1 = arith.constant 0 : index
    %c0_2 = arith.constant 0 : index
    %1 = vector.load %arg2[%c0_1, %c0_2] : memref<384x1024xbf16, #tpu.memory_space<vmem>>, vector<384x256xbf16>
    %cst = arith.constant dense<0.000000e+00> : vector<16x256xf32>
    %2 = tpu.matmul %0, %1, %cst {dimension_numbers = #tpu.dot_dimension_numbers<[1], [0], [0], [1], [0, 0, 1, 1], [], []>} : vector<16x384xbf16>, vector<384x256xbf16>, vector<16x256xf32> -> vector<16x256xf32>
    %c0_3 = arith.constant 0 : index
    %c256 = arith.constant 256 : index
    %3 = vector.load %arg2[%c0_3, %c256] : memref<384x1024xbf16, #tpu.memory_space<vmem>>, vector<384x256xbf16>
    %cst_4 = arith.constant dense<0.000000e+00> : vector<16x256xf32>
    %4 = tpu.matmul %0, %3, %cst_4 {dimension_numbers = #tpu.dot_dimension_numbers<[1], [0], [0], [1], [0, 0, 1, 1], [], []>} : vector<16x384xbf16>, vector<384x256xbf16>, vector<16x256xf32> -> vector<16x256xf32>
    %5 = arith.maximumf %2, %4 : vector<16x256xf32>
    %c0_5 = arith.constant 0 : index
    %c512 = arith.constant 512 : index
    %6 = vector.load %arg2[%c0_5, %c512] : memref<384x1024xbf16, #tpu.memory_space<vmem>>, vector<384x256xbf16>
    %cst_6 = arith.constant dense<0.000000e+00> : vector<16x256xf32>
    %7 = tpu.matmul %0, %6, %cst_6 {dimension_numbers = #tpu.dot_dimension_numbers<[1], [0], [0], [1], [0, 0, 1, 1], [], []>} : vector<16x384xbf16>, vector<384x256xbf16>, vector<16x256xf32> -> vector<16x256xf32>
    %8 = arith.maximumf %5, %7 : vector<16x256xf32>
    %c0_7 = arith.constant 0 : index
    %c768 = arith.constant 768 : index
    %9 = vector.load %arg2[%c0_7, %c768] : memref<384x1024xbf16, #tpu.memory_space<vmem>>, vector<384x256xbf16>
    %cst_8 = arith.constant dense<0.000000e+00> : vector<16x256xf32>
    %10 = tpu.matmul %0, %9, %cst_8 {dimension_numbers = #tpu.dot_dimension_numbers<[1], [0], [0], [1], [0, 0, 1, 1], [], []>} : vector<16x384xbf16>, vector<384x256xbf16>, vector<16x256xf32> -> vector<16x256xf32>
    %11 = arith.maximumf %8, %10 : vector<16x256xf32>
    %c0_9 = arith.constant 0 : index
    %c0_10 = arith.constant 0 : index
    %12 = vector.load %arg3[%c0_9, %c0_10] : memref<1x256xf32, #tpu.memory_space<vmem>>, vector<1x256xf32>
    %13 = vector.broadcast %12 : vector<1x256xf32> to vector<16x256xf32>
    %14 = arith.addf %11, %13 : vector<16x256xf32>
    %cst_11 = arith.constant 0.000000e+00 : f32
    %15 = vector.broadcast %cst_11 : f32 to vector<16x256xf32>
    %16 = arith.maximumf %14, %15 : vector<16x256xf32>
    %17 = arith.truncf %16 : vector<16x256xf32> to vector<16x256xbf16>
    %c0_12 = arith.constant 0 : index
    %c0_13 = arith.constant 0 : index
    %18 = vector.load %arg4[%c0_12, %c0_13] : memref<16x256xbf16, #tpu.memory_space<vmem>>, vector<16x256xbf16>
    tpu.vector_store %arg4[%c0_12, %c0_13], %17 {strides = array<i32>} : memref<16x256xbf16, #tpu.memory_space<vmem>>, vector<16x256xbf16>,
    return
  }
  func.func @transform_0(%arg0: i32) -> (i32, i32) {
    %c0_i32 = arith.constant 0 : i32
    %c0_i32_0 = arith.constant 0 : i32
    return %arg0, %c0_i32 : i32, i32
  }
  func.func @transform_1(%arg0: i32) -> (i32, i32) {
    %c0_i32 = arith.constant 0 : i32
    %c0_i32_0 = arith.constant 0 : i32
    %c0_i32_1 = arith.constant 0 : i32
    return %c0_i32, %c0_i32_0 : i32, i32
  }
  func.func @transform_2(%arg0: i32) -> (i32, i32) {
    %c0_i32 = arith.constant 0 : i32
    %c0_i32_0 = arith.constant 0 : i32
    %c0_i32_1 = arith.constant 0 : i32
    return %c0_i32, %c0_i32_0 : i32, i32
  }
  func.func @transform_3(%arg0: i32) -> (i32, i32) {
    %c0_i32 = arith.constant 0 : i32
    %c0_i32_0 = arith.constant 0 : i32
    return %arg0, %c0_i32 : i32, i32
  }
}

module attributes {stable_mosaic.version = 11 : i64} {
  func.func @_conv_pool_kernel(%arg0: i32, %arg1: memref<8x1024xbf16, #tpu.memory_space<vmem>>, %arg2: memref<1024x1024xbf16, #tpu.memory_space<vmem>>, %arg3: memref<1x256xf32, #tpu.memory_space<vmem>>, %arg4: memref<8x256xbf16, #tpu.memory_space<vmem>>) attributes {dimension_semantics = [#tpu.dimension_semantics<parallel>], iteration_bounds = array<i64: 2>, scalar_prefetch = 0 : i64, scratch_operands = 0 : i64, tpu.core_type = #tpu.core_type<tc>, window_params = [{transform_indices = @transform_0, window_bounds = array<i64: 8, 1024>}, {pipeline_mode = #tpu.pipeline_mode<synchronous>, transform_indices = @transform_1, window_bounds = array<i64: 1024, 1024>}, {pipeline_mode = #tpu.pipeline_mode<synchronous>, transform_indices = @transform_2, window_bounds = array<i64: 1, 256>}, {transform_indices = @transform_3, window_bounds = array<i64: 8, 256>}]} {
    %c0 = arith.constant 0 : index
    %c0_0 = arith.constant 0 : index
    %0 = vector.load %arg1[%c0, %c0_0] : memref<8x1024xbf16, #tpu.memory_space<vmem>>, vector<8x1024xbf16>
    %c0_1 = arith.constant 0 : index
    %c0_2 = arith.constant 0 : index
    %1 = vector.load %arg2[%c0_1, %c0_2] : memref<1024x1024xbf16, #tpu.memory_space<vmem>>, vector<1024x256xbf16>
    %cst = arith.constant dense<0.000000e+00> : vector<8x256xf32>
    %2 = tpu.matmul %0, %1, %cst {dimension_numbers = #tpu.dot_dimension_numbers<[1], [0], [0], [1], [0, 0, 1, 1], [], []>} : vector<8x1024xbf16>, vector<1024x256xbf16>, vector<8x256xf32> -> vector<8x256xf32>
    %c0_3 = arith.constant 0 : index
    %c256 = arith.constant 256 : index
    %3 = vector.load %arg2[%c0_3, %c256] : memref<1024x1024xbf16, #tpu.memory_space<vmem>>, vector<1024x256xbf16>
    %cst_4 = arith.constant dense<0.000000e+00> : vector<8x256xf32>
    %4 = tpu.matmul %0, %3, %cst_4 {dimension_numbers = #tpu.dot_dimension_numbers<[1], [0], [0], [1], [0, 0, 1, 1], [], []>} : vector<8x1024xbf16>, vector<1024x256xbf16>, vector<8x256xf32> -> vector<8x256xf32>
    %5 = arith.maximumf %2, %4 : vector<8x256xf32>
    %c0_5 = arith.constant 0 : index
    %c512 = arith.constant 512 : index
    %6 = vector.load %arg2[%c0_5, %c512] : memref<1024x1024xbf16, #tpu.memory_space<vmem>>, vector<1024x256xbf16>
    %cst_6 = arith.constant dense<0.000000e+00> : vector<8x256xf32>
    %7 = tpu.matmul %0, %6, %cst_6 {dimension_numbers = #tpu.dot_dimension_numbers<[1], [0], [0], [1], [0, 0, 1, 1], [], []>} : vector<8x1024xbf16>, vector<1024x256xbf16>, vector<8x256xf32> -> vector<8x256xf32>
    %8 = arith.maximumf %5, %7 : vector<8x256xf32>
    %c0_7 = arith.constant 0 : index
    %c768 = arith.constant 768 : index
    %9 = vector.load %arg2[%c0_7, %c768] : memref<1024x1024xbf16, #tpu.memory_space<vmem>>, vector<1024x256xbf16>
    %cst_8 = arith.constant dense<0.000000e+00> : vector<8x256xf32>
    %10 = tpu.matmul %0, %9, %cst_8 {dimension_numbers = #tpu.dot_dimension_numbers<[1], [0], [0], [1], [0, 0, 1, 1], [], []>} : vector<8x1024xbf16>, vector<1024x256xbf16>, vector<8x256xf32> -> vector<8x256xf32>
    %11 = arith.maximumf %8, %10 : vector<8x256xf32>
    %c0_9 = arith.constant 0 : index
    %c0_10 = arith.constant 0 : index
    %12 = vector.load %arg3[%c0_9, %c0_10] : memref<1x256xf32, #tpu.memory_space<vmem>>, vector<1x256xf32>
    %13 = vector.broadcast %12 : vector<1x256xf32> to vector<8x256xf32>
    %14 = arith.addf %11, %13 : vector<8x256xf32>
    %cst_11 = arith.constant 0.000000e+00 : f32
    %15 = vector.broadcast %cst_11 : f32 to vector<8x256xf32>
    %16 = arith.maximumf %14, %15 : vector<8x256xf32>
    %17 = arith.truncf %16 : vector<8x256xf32> to vector<8x256xbf16>
    %c0_12 = arith.constant 0 : index
    %c0_13 = arith.constant 0 : index
    %18 = vector.load %arg4[%c0_12, %c0_13] : memref<8x256xbf16, #tpu.memory_space<vmem>>, vector<8x256xbf16>
    tpu.vector_store %arg4[%c0_12, %c0_13], %17 {strides = array<i32>} : memref<8x256xbf16, #tpu.memory_space<vmem>>, vector<8x256xbf16>,
    return
  }
  func.func @transform_0(%arg0: i32) -> (i32, i32) {
    %c0_i32 = arith.constant 0 : i32
    %c0_i32_0 = arith.constant 0 : i32
    return %arg0, %c0_i32 : i32, i32
  }
  func.func @transform_1(%arg0: i32) -> (i32, i32) {
    %c0_i32 = arith.constant 0 : i32
    %c0_i32_0 = arith.constant 0 : i32
    %c0_i32_1 = arith.constant 0 : i32
    return %c0_i32, %c0_i32_0 : i32, i32
  }
  func.func @transform_2(%arg0: i32) -> (i32, i32) {
    %c0_i32 = arith.constant 0 : i32
    %c0_i32_0 = arith.constant 0 : i32
    %c0_i32_1 = arith.constant 0 : i32
    return %c0_i32, %c0_i32_0 : i32, i32
  }
  func.func @transform_3(%arg0: i32) -> (i32, i32) {
    %c0_i32 = arith.constant 0 : i32
    %c0_i32_0 = arith.constant 0 : i32
    return %arg0, %c0_i32 : i32, i32
  }
}

module attributes {stable_mosaic.version = 11 : i64} {
  func.func @_mlp_kernel(%arg0: i32, %arg1: memref<8x1536xbf16, #tpu.memory_space<vmem>>, %arg2: memref<1536x128xbf16, #tpu.memory_space<vmem>>, %arg3: memref<1x128xf32, #tpu.memory_space<vmem>>, %arg4: memref<128x128xbf16, #tpu.memory_space<vmem>>, %arg5: memref<1x128xf32, #tpu.memory_space<vmem>>, %arg6: memref<8x128xf32, #tpu.memory_space<vmem>>) attributes {dimension_semantics = [#tpu.dimension_semantics<parallel>], iteration_bounds = array<i64: 1>, scalar_prefetch = 0 : i64, scratch_operands = 0 : i64, tpu.core_type = #tpu.core_type<tc>, window_params = [{transform_indices = @transform_0, window_bounds = array<i64: 8, 1536>}, {pipeline_mode = #tpu.pipeline_mode<synchronous>, transform_indices = @transform_1, window_bounds = array<i64: 1536, 128>}, {pipeline_mode = #tpu.pipeline_mode<synchronous>, transform_indices = @transform_2, window_bounds = array<i64: 1, 128>}, {pipeline_mode = #tpu.pipeline_mode<synchronous>, transform_indices = @transform_3, window_bounds = array<i64: 128, 128>}, {pipeline_mode = #tpu.pipeline_mode<synchronous>, transform_indices = @transform_4, window_bounds = array<i64: 1, 128>}, {transform_indices = @transform_5, window_bounds = array<i64: 8, 128>}]} {
    %c0 = arith.constant 0 : index
    %c0_0 = arith.constant 0 : index
    %0 = vector.load %arg1[%c0, %c0_0] : memref<8x1536xbf16, #tpu.memory_space<vmem>>, vector<8x1536xbf16>
    %c0_1 = arith.constant 0 : index
    %c0_2 = arith.constant 0 : index
    %1 = vector.load %arg2[%c0_1, %c0_2] : memref<1536x128xbf16, #tpu.memory_space<vmem>>, vector<1536x128xbf16>
    %cst = arith.constant dense<0.000000e+00> : vector<8x128xf32>
    %2 = tpu.matmul %0, %1, %cst {dimension_numbers = #tpu.dot_dimension_numbers<[1], [0], [0], [1], [0, 0, 1, 1], [], []>} : vector<8x1536xbf16>, vector<1536x128xbf16>, vector<8x128xf32> -> vector<8x128xf32>
    %c0_3 = arith.constant 0 : index
    %c0_4 = arith.constant 0 : index
    %3 = vector.load %arg3[%c0_3, %c0_4] : memref<1x128xf32, #tpu.memory_space<vmem>>, vector<1x128xf32>
    %4 = vector.broadcast %3 : vector<1x128xf32> to vector<8x128xf32>
    %5 = arith.addf %2, %4 : vector<8x128xf32>
    %cst_5 = arith.constant 0.000000e+00 : f32
    %6 = vector.broadcast %cst_5 : f32 to vector<8x128xf32>
    %7 = arith.maximumf %5, %6 : vector<8x128xf32>
    %8 = arith.truncf %7 : vector<8x128xf32> to vector<8x128xbf16>
    %c0_6 = arith.constant 0 : index
    %c0_7 = arith.constant 0 : index
    %9 = vector.load %arg4[%c0_6, %c0_7] : memref<128x128xbf16, #tpu.memory_space<vmem>>, vector<128x128xbf16>
    %cst_8 = arith.constant dense<0.000000e+00> : vector<8x128xf32>
    %10 = tpu.matmul %8, %9, %cst_8 {dimension_numbers = #tpu.dot_dimension_numbers<[1], [0], [0], [1], [0, 0, 1, 1], [], []>} : vector<8x128xbf16>, vector<128x128xbf16>, vector<8x128xf32> -> vector<8x128xf32>
    %c0_9 = arith.constant 0 : index
    %c0_10 = arith.constant 0 : index
    %11 = vector.load %arg5[%c0_9, %c0_10] : memref<1x128xf32, #tpu.memory_space<vmem>>, vector<1x128xf32>
    %12 = vector.broadcast %11 : vector<1x128xf32> to vector<8x128xf32>
    %13 = arith.addf %10, %12 : vector<8x128xf32>
    %c0_11 = arith.constant 0 : index
    %c0_12 = arith.constant 0 : index
    %14 = vector.load %arg6[%c0_11, %c0_12] : memref<8x128xf32, #tpu.memory_space<vmem>>, vector<8x128xf32>
    tpu.vector_store %arg6[%c0_11, %c0_12], %13 {strides = array<i32>} : memref<8x128xf32, #tpu.memory_space<vmem>>, vector<8x128xf32>,
    return
  }
  func.func @transform_0(%arg0: i32) -> (i32, i32) {
    %c0_i32 = arith.constant 0 : i32
    %c0_i32_0 = arith.constant 0 : i32
    return %arg0, %c0_i32 : i32, i32
  }
  func.func @transform_1(%arg0: i32) -> (i32, i32) {
    %c0_i32 = arith.constant 0 : i32
    %c0_i32_0 = arith.constant 0 : i32
    %c0_i32_1 = arith.constant 0 : i32
    return %c0_i32, %c0_i32_0 : i32, i32
  }
  func.func @transform_2(%arg0: i32) -> (i32, i32) {
    %c0_i32 = arith.constant 0 : i32
    %c0_i32_0 = arith.constant 0 : i32
    %c0_i32_1 = arith.constant 0 : i32
    return %c0_i32, %c0_i32_0 : i32, i32
  }
  func.func @transform_3(%arg0: i32) -> (i32, i32) {
    %c0_i32 = arith.constant 0 : i32
    %c0_i32_0 = arith.constant 0 : i32
    %c0_i32_1 = arith.constant 0 : i32
    return %c0_i32, %c0_i32_0 : i32, i32
  }
  func.func @transform_4(%arg0: i32) -> (i32, i32) {
    %c0_i32 = arith.constant 0 : i32
    %c0_i32_0 = arith.constant 0 : i32
    %c0_i32_1 = arith.constant 0 : i32
    return %c0_i32, %c0_i32_0 : i32, i32
  }
  func.func @transform_5(%arg0: i32) -> (i32, i32) {
    %c0_i32 = arith.constant 0 : i32
    %c0_i32_0 = arith.constant 0 : i32
    return %arg0, %c0_i32 : i32, i32
  }
}

</mosaic_0001>

<llo_original>
// kernel: forward.3
$region0: #{forward.3}
  #allocation0 [shape = 'u32[]', space=smem, size = 0x4, offset = 0x4, fixed_abs, tag = 'smem constant byte address 0x4 - core index']
  #allocation1 [shape = 'u32[144,128]{1,0:T(1,128)}', space=vmem, size = 0x12000, scoped, tag = 'internal scratch']
  %s0 = inlined_call_operand.vmem [shape: bf16[30,384], index: 0, kind: input, shape index: {}]
  %s1 = inlined_call_operand.hbm [shape: bf16[384,1024], index: 1, kind: input, shape index: {}]
  %s2 = inlined_call_operand.hbm [shape: f32[1,256], index: 2, kind: input, shape index: {}]
  %s3 = inlined_call_operand.vmem [shape: bf16[30,256], index: 3, kind: output, shape index: {}]
  %s4 = sld [smem:[#allocation0]]
  $region53: #{forward.3} parent=0
    _
  %s6 = ssub.s32 1, %s4
  %s7 = scalar_select 0, %s6, %s4
  $region1: #{forward.3} parent=0
    #allocation2 [shape = 'u8[786432]{0}', space=vmem, size = 0xc0000, scoped, tag = 'input window, operand 1, single buffered']
    #allocation3 [shape = 's32[2]{0}', space=sflag, size = 0x8, scoped, tag = 'scoped memory for forward.3']
    #allocation4 [shape = 'u8[1024]{0}', space=vmem, size = 0x400, scoped, tag = 'input window, operand 2, single buffered']
    #allocation5 [shape = 's32[1]{0}', space=sflag, size = 0x4, scoped, tag = 'scoped memory for forward.3']
    %8 = vsyncpa [#allocation3], 0
    %9 = vsyncpa [#allocation5], 0
    loop: start=0, step=1, limit=4
    $region2: #{forward.3} parent=1 // loop_pre_header
      _
    $region3: #{forward.3} parent=1 // loop_header
      %s11 = sphi 0, %s15
      %p12 = scmp.ge.s32.totalorder %s11, 4
      %s21 = sphi 0, %s23
      %s24 = sphi 0, %s21
      %s25 = sphi 0, %s24
      %s41 = sphi 0, %s25
      %s45 = sphi 0, %s45
      %s47 = sphi 0, %s45
      %s48 = sphi 0, %s47
      %s62 = sphi 0, %s48
      %s66 = sphi 0, %s66
      %s68 = sphi 0, %s66
      %s69 = sphi 0, %s68
      %s83 = sphi 0, %s69
      %s89 = sphi 0, %s91
      %s92 = sphi 0, %s89
      %s93 = sphi 0, %s92
      %s109 = sphi 0, %s93
    $region4: #{forward.3} parent=1 // loop_header_branch
      %14 = sbr.rel (%p12) target = $region8
    $region5: #{forward.3} parent=1 // loop_body
      %s16 = ssub.s32 %s11, 1
      %s17 = ssub.s32 %s11, 2
      %s18 = sadd.s32 %s11, 1
      %s19 = ssub.s32 %s11, %s18
      %p20 = scmp.eq.s32.totalorder %s19, 0
      %s22 = sadd.s32 %s21, 1
      %s23 = scalar_select %p20, %s21, %s22
      %p26 = pneg %p20
      %p27 = scmp.eq.s32.totalorder %s11, 1
      %p28 = por %p26, %p27
      %p29 = scmp.ne.s32.totalorder %s21, %s24
      %p30 = scmp.eq.s32.totalorder %s11, 0
      %p31 = por %p29, %p30
      %p32 = scmp.ne.s32.totalorder %s21, %s24
      %p33 = scmp.eq.s32.totalorder %s16, 1
      %p34 = por %p32, %p33
      %p35 = scmp.ne.s32.totalorder %s24, %s25
      %p36 = scmp.eq.s32.totalorder %s16, 0
      %p37 = por %p35, %p36
      %p38 = scmp.ne.s32.totalorder %s24, %s25
      %p39 = scmp.eq.s32.totalorder %s17, 1
      %p40 = por %p38, %p39
      %p42 = scmp.ne.s32.totalorder %s25, %s41
      %p43 = scmp.eq.s32.totalorder %s17, 0
      %p44 = por %p42, %p43
      %s46 = sadd.s32 %s45, 1
      %p49 = scmp.eq.s32.totalorder %s11, 1
      %p50 = scmp.ne.s32.totalorder %s45, %s47
      %p51 = scmp.eq.s32.totalorder %s11, 0
      %p52 = por %p50, %p51
      %p53 = scmp.ne.s32.totalorder %s45, %s47
      %p54 = scmp.eq.s32.totalorder %s16, 1
      %p55 = por %p53, %p54
      %p56 = scmp.ne.s32.totalorder %s47, %s48
      %p57 = scmp.eq.s32.totalorder %s16, 0
      %p58 = por %p56, %p57
      %p59 = scmp.ne.s32.totalorder %s47, %s48
      %p60 = scmp.eq.s32.totalorder %s17, 1
      %p61 = por %p59, %p60
      %p63 = scmp.ne.s32.totalorder %s48, %s62
      %p64 = scmp.eq.s32.totalorder %s17, 0
      %p65 = por %p63, %p64
      %s67 = sadd.s32 %s66, 1
      %p70 = scmp.eq.s32.totalorder %s11, 1
      %p71 = scmp.ne.s32.totalorder %s66, %s68
      %p72 = scmp.eq.s32.totalorder %s11, 0
      %p73 = por %p71, %p72
      %p74 = scmp.ne.s32.totalorder %s66, %s68
      %p75 = scmp.eq.s32.totalorder %s16, 1
      %p76 = por %p74, %p75
      %p77 = scmp.ne.s32.totalorder %s68, %s69
      %p78 = scmp.eq.s32.totalorder %s16, 0
      %p79 = por %p77, %p78
      %p80 = scmp.ne.s32.totalorder %s68, %s69
      %p81 = scmp.eq.s32.totalorder %s17, 1
      %p82 = por %p80, %p81
      %p84 = scmp.ne.s32.totalorder %s69, %s83
      %p85 = scmp.eq.s32.totalorder %s17, 0
      %p86 = por %p84, %p85
      %s87 = ssub.s32 %s11, %s18
      %p88 = scmp.eq.s32.totalorder %s87, 0
      %s90 = sadd.s32 %s89, 1
      %s91 = scalar_select %p88, %s89, %s90
      %p94 = pneg %p88
      %p95 = scmp.eq.s32.totalorder %s11, 1
      %p96 = por %p94, %p95
      %p97 = scmp.ne.s32.totalorder %s89, %s92
      %p98 = scmp.eq.s32.totalorder %s11, 0
      %p99 = por %p97, %p98
      %p100 = scmp.ne.s32.totalorder %s89, %s92
      %p101 = scmp.eq.s32.totalorder %s16, 1
      %p102 = por %p100, %p101
      %p103 = scmp.ne.s32.totalorder %s92, %s93
      %p104 = scmp.eq.s32.totalorder %s16, 0
      %p105 = por %p103, %p104
      %p106 = scmp.ne.s32.totalorder %s92, %s93
      %p107 = scmp.eq.s32.totalorder %s17, 1
      %p108 = por %p106, %p107
      %p110 = scmp.ne.s32.totalorder %s93, %s109
      %p111 = scmp.eq.s32.totalorder %s17, 0
      %p112 = por %p110, %p111
      %p113 = scmp.le.s32.totalorder 1, %s11
      %p114 = scmp.lt.s32.totalorder %s11, 3
      %p115 = pnand %p113, %p114
      %p116 = pneg %p115
      // Predicated region
      $region9: #{forward.3} parent=5 // pred_check
        _
      $region10: #{forward.3} parent=5 // pred_check_branch
        %118 = sbr.rel (%p115) target = $region12
      $region11: #{forward.3} parent=5 // pred_region
        %s119 = ssub.s32 %s11, 1
        // Predicated region
        $region13: #{forward.3} parent=11 // pred_check
          %p120 = pneg %p58
        $region14: #{forward.3} parent=11 // pred_check_branch
          %122 = sbr.rel (%p120) target = $region16
        $region15: #{forward.3} parent=11 // pred_region
          %s124 = ssub.s32 24576, 24576
          %125 = vsyncadd [#allocation3], %s124
          %s126 = sshll.u32 [#allocation2], 4
          %s127 = int_to_ptr.vmem [resolvable:$true] %s126
          %132 = dma.hbm_to_vmem [thread:$0]  %s1, 24576, %s127, [#allocation3], 512, 512, 32
        $region16: #{forward.3} parent=11 // pred_fallthru
          _
        // Predicated region
        $region17: #{forward.3} parent=11 // pred_check
          %p133 = pneg %p79
        $region18: #{forward.3} parent=11 // pred_check_branch
          %135 = sbr.rel (%p133) target = $region20
        $region19: #{forward.3} parent=11 // pred_region
          %s137 = ssub.s32 32, 32
          %138 = vsyncadd [#allocation5], %s137
          %s140 = sshll.u32 [#allocation4], 4
          %s141 = int_to_ptr.vmem [resolvable:$true] %s140
          %143 = dma.hbm_to_vmem [thread:$0]  %s2, 32, %s141, [#allocation5]
        $region20: #{forward.3} parent=11 // pred_fallthru
          _
      $region12: #{forward.3} parent=5 // pred_fallthru
        _
      %p144 = scmp.lt.s32.totalorder %s11, 2
      // Predicated region
      $region21: #{forward.3} parent=5 // pred_check
        %p145 = pneg %p144
      $region22: #{forward.3} parent=5 // pred_check_branch
        %147 = sbr.rel (%p145) target = $region24
      $region23: #{forward.3} parent=5 // pred_region
        // Predicated region
        $region25: #{forward.3} parent=23 // pred_check
          %p148 = pneg %p31
        $region26: #{forward.3} parent=23 // pred_check_branch
          %150 = sbr.rel (%p148) target = $region28
        $region27: #{forward.3} parent=23 // pred_region
          %s151 = smul.u32 2, %s11
          %p152 = scmp.lt.s32.totalorder %s151, 3
          %s153 = scalar_select %p152, %s151, 3
          %s154 = smul.addr %s153, 3
          %s155 = smul.addr %s154, 4
          %s156 = scalar_lea.vmem %s0, %s155
          %s157 = smul.u32 2, %s11
        $region28: #{forward.3} parent=23 // pred_fallthru
          _
      $region24: #{forward.3} parent=5 // pred_fallthru
        _
      %p158 = scmp.le.s32.totalorder 1, %s11
      %p159 = scmp.lt.s32.totalorder %s11, 3
      %p160 = pnand %p158, %p159
      %p161 = pneg %p160
      // Predicated region
      $region29: #{forward.3} parent=5 // pred_check
        _
      $region30: #{forward.3} parent=5 // pred_check_branch
        %163 = sbr.rel (%p160) target = $region32
      $region31: #{forward.3} parent=5 // pred_region
        %s164 = ssub.s32 %s11, 1
        // Predicated region
        $region33: #{forward.3} parent=31 // pred_check
          %p165 = pneg %p58
        $region34: #{forward.3} parent=31 // pred_check_branch
          %167 = sbr.rel (%p165) target = $region36
        $region35: #{forward.3} parent=31 // pred_region
          %168 = dma.done [#allocation3], 24576
        $region36: #{forward.3} parent=31 // pred_fallthru
          _
        // Predicated region
        $region37: #{forward.3} parent=31 // pred_check
          %p169 = pneg %p79
        $region38: #{forward.3} parent=31 // pred_check_branch
          %171 = sbr.rel (%p169) target = $region40
        $region39: #{forward.3} parent=31 // pred_region
          %172 = dma.done [#allocation5], 32
        $region40: #{forward.3} parent=31 // pred_fallthru
          _
        %s173 = smul.u32 2, %s16
        %p174 = scmp.lt.s32.totalorder %s173, 3
        %s175 = scalar_select %p174, %s173, 3
        %s176 = smul.addr %s175, 3
        %s177 = smul.addr %s176, 4
        %s178 = scalar_lea.vmem %s0, %s177
        %p179 = pneg %p37
        %p180 = pneg %p34
        %p181 = pneg %p58
        %p182 = pneg %p55
        %p183 = pneg %p79
        %p184 = pneg %p76
        %p185 = pneg %p105
        %p186 = pneg %p102
        %s187 = smul.u32 2, %s16
        %p188 = scmp.lt.s32.totalorder %s187, 3
        %s189 = scalar_select %p188, %s187, 3
        %s190 = smul.addr %s189, 2
        %s191 = smul.addr %s190, 4
        %s192 = scalar_lea.vmem %s3, %s191
        %s193 = smul.u32 2, %s16
        %p194 = scmp.lt.s32.totalorder %s193, 3
        %s195 = scalar_select %p194, %s193, 3
        %s196 = smul.addr %s195, 3
        %s197 = smul.addr %s196, 4
        %s198 = scalar_lea.vmem %s0, %s197
        %s199 = smul.u32 2, %s16
        %s200 = smul.u32 2, %s16
        %p201 = scmp.lt.s32.totalorder %s200, 3
        %s202 = scalar_select %p201, %s200, 3
        %s203 = smul.addr %s202, 2
        %s204 = smul.addr %s203, 4
        %s205 = scalar_lea.vmem %s3, %s204
        %s206 = smul.u32 2, %s16
        %v208 = vld [vmem:[%s198] sm:$0xff]
        %v209 = vld [vmem:[%s198 + $0x8] sm:$0xf]
        %v210 = vld [vmem:[%s198 + $0xc] sm:$0xff]
        %v211 = vld [vmem:[%s198 + $0x14] sm:$0xf]
        %v212 = vld [vmem:[#allocation2] sm:$0xff]
        %v213 = vld [vmem:[#allocation2 + $0x20] sm:$0xff]
        %v214 = vld [vmem:[#allocation2 + $0x40] sm:$0xff]
        %v215 = vld [vmem:[#allocation2 + $0x60] sm:$0xff]
        %v216 = vld [vmem:[#allocation2 + $0x80] sm:$0xff]
        %v217 = vld [vmem:[#allocation2 + $0xa0] sm:$0xff]
        %v218 = vld [vmem:[#allocation2 + $0xc0] sm:$0xff]
        %v219 = vld [vmem:[#allocation2 + $0xe0] sm:$0xff]
        %v220 = vld [vmem:[#allocation2 + $0x100] sm:$0xff]
        %v221 = vld [vmem:[#allocation2 + $0x120] sm:$0xff]
        %v222 = vld [vmem:[#allocation2 + $0x140] sm:$0xff]
        %v223 = vld [vmem:[#allocation2 + $0x160] sm:$0xff]
        %v224 = vld [vmem:[#allocation2 + $0x180] sm:$0xff]
        %v225 = vld [vmem:[#allocation2 + $0x1a0] sm:$0xff]
        %v226 = vld [vmem:[#allocation2 + $0x1c0] sm:$0xff]
        %v227 = vld [vmem:[#allocation2 + $0x1e0] sm:$0xff]
        %v228 = vld [vmem:[#allocation2 + $0x200] sm:$0xff]
        %v229 = vld [vmem:[#allocation2 + $0x220] sm:$0xff]
        %v230 = vld [vmem:[#allocation2 + $0x240] sm:$0xff]
        %v231 = vld [vmem:[#allocation2 + $0x260] sm:$0xff]
        %v232 = vld [vmem:[#allocation2 + $0x280] sm:$0xff]
        %v233 = vld [vmem:[#allocation2 + $0x2a0] sm:$0xff]
        %v234 = vld [vmem:[#allocation2 + $0x2c0] sm:$0xff]
        %v235 = vld [vmem:[#allocation2 + $0x2e0] sm:$0xff]
        %v236 = vld [vmem:[#allocation2 + $0x300] sm:$0xff]
        %v237 = vld [vmem:[#allocation2 + $0x320] sm:$0xff]
        %v238 = vld [vmem:[#allocation2 + $0x340] sm:$0xff]
        %v239 = vld [vmem:[#allocation2 + $0x360] sm:$0xff]
        %v240 = vld [vmem:[#allocation2 + $0x380] sm:$0xff]
        %v241 = vld [vmem:[#allocation2 + $0x3a0] sm:$0xff]
        %v242 = vld [vmem:[#allocation2 + $0x3c0] sm:$0xff]
        %v243 = vld [vmem:[#allocation2 + $0x3e0] sm:$0xff]
        %v244 = vld [vmem:[#allocation2 + $0x400] sm:$0xff]
        %v245 = vld [vmem:[#allocation2 + $0x420] sm:$0xff]
        %v246 = vld [vmem:[#allocation2 + $0x440] sm:$0xff]
        %v247 = vld [vmem:[#allocation2 + $0x460] sm:$0xff]
        %v248 = vld [vmem:[#allocation2 + $0x480] sm:$0xff]
        %v249 = vld [vmem:[#allocation2 + $0x4a0] sm:$0xff]
        %v250 = vld [vmem:[#allocation2 + $0x4c0] sm:$0xff]
        %v251 = vld [vmem:[#allocation2 + $0x4e0] sm:$0xff]
        %v252 = vld [vmem:[#allocation2 + $0x500] sm:$0xff]
        %v253 = vld [vmem:[#allocation2 + $0x520] sm:$0xff]
        %v254 = vld [vmem:[#allocation2 + $0x540] sm:$0xff]
        %v255 = vld [vmem:[#allocation2 + $0x560] sm:$0xff]
        %v256 = vld [vmem:[#allocation2 + $0x580] sm:$0xff]
        %v257 = vld [vmem:[#allocation2 + $0x5a0] sm:$0xff]
        %v258 = vld [vmem:[#allocation2 + $0x5c0] sm:$0xff]
        %v259 = vld [vmem:[#allocation2 + $0x5e0] sm:$0xff]
        %v264 = vunpack.c.l.b16 %v208
        %v265 = vunpack.c.h.b16 %v208
        %v266 = vunpack.c.l.b16 %v209
        %v267 = vunpack.c.l.b16 %v210
        %v268 = vunpack.c.h.b16 %v210
        %v269 = vunpack.c.l.b16 %v211
        %v270 = vpack.c.b16 %v267, %v264
        %v271 = vpack.c.b16 %v268, %v265
        %v272 = vpack.c.b16 %v269, %v266
        %v324 = vunpack.c.l.b16 %v212
        %v325 = vunpack.c.h.b16 %v212
        %v326 = vunpack.c.l.b16 %v213
        %v327 = vunpack.c.h.b16 %v213
        %v328 = vunpack.c.l.b16 %v214
        %v329 = vunpack.c.h.b16 %v214
        %v330 = vunpack.c.l.b16 %v215
        %v331 = vunpack.c.h.b16 %v215
        %v332 = vunpack.c.l.b16 %v216
        %v333 = vunpack.c.h.b16 %v216
        %v334 = vunpack.c.l.b16 %v217
        %v335 = vunpack.c.h.b16 %v217
        %v336 = vunpack.c.l.b16 %v218
        %v337 = vunpack.c.h.b16 %v218
        %v338 = vunpack.c.l.b16 %v219
        %v339 = vunpack.c.h.b16 %v219
        %v340 = vunpack.c.l.b16 %v220
        %v341 = vunpack.c.h.b16 %v220
        %v342 = vunpack.c.l.b16 %v221
        %v343 = vunpack.c.h.b16 %v221
        %v344 = vunpack.c.l.b16 %v222
        %v345 = vunpack.c.h.b16 %v222
        %v346 = vunpack.c.l.b16 %v223
        %v347 = vunpack.c.h.b16 %v223
        %v348 = vunpack.c.l.b16 %v224
        %v349 = vunpack.c.h.b16 %v224
        %v350 = vunpack.c.l.b16 %v225
        %v351 = vunpack.c.h.b16 %v225
        %v352 = vunpack.c.l.b16 %v226
        %v353 = vunpack.c.h.b16 %v226
        %v354 = vunpack.c.l.b16 %v227
        %v355 = vunpack.c.h.b16 %v227
        %v356 = vunpack.c.l.b16 %v228
        %v357 = vunpack.c.h.b16 %v228
        %v358 = vunpack.c.l.b16 %v229
        %v359 = vunpack.c.h.b16 %v229
        %v360 = vunpack.c.l.b16 %v230
        %v361 = vunpack.c.h.b16 %v230
        %v362 = vunpack.c.l.b16 %v231
        %v363 = vunpack.c.h.b16 %v231
        %v364 = vunpack.c.l.b16 %v232
        %v365 = vunpack.c.h.b16 %v232
        %v366 = vunpack.c.l.b16 %v233
        %v367 = vunpack.c.h.b16 %v233
        %v368 = vunpack.c.l.b16 %v234
        %v369 = vunpack.c.h.b16 %v234
        %v370 = vunpack.c.l.b16 %v235
        %v371 = vunpack.c.h.b16 %v235
        %v372 = vunpack.c.l.b16 %v236
        %v373 = vunpack.c.h.b16 %v236
        %v374 = vunpack.c.l.b16 %v237
        %v375 = vunpack.c.h.b16 %v237
        %v376 = vunpack.c.l.b16 %v238
        %v377 = vunpack.c.h.b16 %v238
        %v378 = vunpack.c.l.b16 %v239
        %v379 = vunpack.c.h.b16 %v239
        %v380 = vunpack.c.l.b16 %v240
        %v381 = vunpack.c.h.b16 %v240
        %v382 = vunpack.c.l.b16 %v241
        %v383 = vunpack.c.h.b16 %v241
        %v384 = vunpack.c.l.b16 %v242
        %v385 = vunpack.c.h.b16 %v242
        %v386 = vunpack.c.l.b16 %v243
        %v387 = vunpack.c.h.b16 %v243
        %v388 = vunpack.c.l.b16 %v244
        %v389 = vunpack.c.h.b16 %v244
        %v390 = vunpack.c.l.b16 %v245
        %v391 = vunpack.c.h.b16 %v245
        %v392 = vunpack.c.l.b16 %v246
        %v393 = vunpack.c.h.b16 %v246
        %v394 = vunpack.c.l.b16 %v247
        %v395 = vunpack.c.h.b16 %v247
        %v396 = vunpack.c.l.b16 %v248
        %v397 = vunpack.c.h.b16 %v248
        %v398 = vunpack.c.l.b16 %v249
        %v399 = vunpack.c.h.b16 %v249
        %v400 = vunpack.c.l.b16 %v250
        %v401 = vunpack.c.h.b16 %v250
        %v402 = vunpack.c.l.b16 %v251
        %v403 = vunpack.c.h.b16 %v251
        %v404 = vunpack.c.l.b16 %v252
        %v405 = vunpack.c.h.b16 %v252
        %v406 = vunpack.c.l.b16 %v253
        %v407 = vunpack.c.h.b16 %v253
        %v408 = vunpack.c.l.b16 %v254
        %v409 = vunpack.c.h.b16 %v254
        %v410 = vunpack.c.l.b16 %v255
        %v411 = vunpack.c.h.b16 %v255
        %v412 = vunpack.c.l.b16 %v256
        %v413 = vunpack.c.h.b16 %v256
        %v414 = vunpack.c.l.b16 %v257
        %v415 = vunpack.c.h.b16 %v257
        %v416 = vunpack.c.l.b16 %v258
        %v417 = vunpack.c.h.b16 %v258
        %v418 = vunpack.c.l.b16 %v259
        %v419 = vunpack.c.h.b16 %v259
        %v420 = vpack.c.b16 %v326, %v324
        %v421 = vpack.c.b16 %v327, %v325
        %v422 = vpack.c.b16 %v330, %v328
        %v423 = vpack.c.b16 %v331, %v329
        %v424 = vpack.c.b16 %v334, %v332
        %v425 = vpack.c.b16 %v335, %v333
        %v426 = vpack.c.b16 %v338, %v336
        %v427 = vpack.c.b16 %v339, %v337
        %v428 = vpack.c.b16 %v342, %v340
        %v429 = vpack.c.b16 %v343, %v341
        %v430 = vpack.c.b16 %v346, %v344
        %v431 = vpack.c.b16 %v347, %v345
        %v432 = vpack.c.b16 %v350, %v348
        %v433 = vpack.c.b16 %v351, %v349
        %v434 = vpack.c.b16 %v354, %v352
        %v435 = vpack.c.b16 %v355, %v353
        %v436 = vpack.c.b16 %v358, %v356
        %v437 = vpack.c.b16 %v359, %v357
        %v438 = vpack.c.b16 %v362, %v360
        %v439 = vpack.c.b16 %v363, %v361
        %v440 = vpack.c.b16 %v366, %v364
        %v441 = vpack.c.b16 %v367, %v365
        %v442 = vpack.c.b16 %v370, %v368
        %v443 = vpack.c.b16 %v371, %v369
        %v444 = vpack.c.b16 %v374, %v372
        %v445 = vpack.c.b16 %v375, %v373
        %v446 = vpack.c.b16 %v378, %v376
        %v447 = vpack.c.b16 %v379, %v377
        %v448 = vpack.c.b16 %v382, %v380
        %v449 = vpack.c.b16 %v383, %v381
        %v450 = vpack.c.b16 %v386, %v384
        %v451 = vpack.c.b16 %v387, %v385
        %v452 = vpack.c.b16 %v390, %v388
        %v453 = vpack.c.b16 %v391, %v389
        %v454 = vpack.c.b16 %v394, %v392
        %v455 = vpack.c.b16 %v395, %v393
        %v456 = vpack.c.b16 %v398, %v396
        %v457 = vpack.c.b16 %v399, %v397
        %v458 = vpack.c.b16 %v402, %v400
        %v459 = vpack.c.b16 %v403, %v401
        %v460 = vpack.c.b16 %v406, %v404
        %v461 = vpack.c.b16 %v407, %v405
        %v462 = vpack.c.b16 %v410, %v408
        %v463 = vpack.c.b16 %v411, %v409
        %v464 = vpack.c.b16 %v414, %v412
        %v465 = vpack.c.b16 %v415, %v413
        %v466 = vpack.c.b16 %v418, %v416
        %v467 = vpack.c.b16 %v419, %v417
        %516 = vmatprep.subr.bf16.mxu0 %v421
        %517 = vmatpush1.bf16.msra.mxu0 %v420
        %518 = vmatprep.subr.bf16.mxu0 %v423
        %519 = vmatpush1.bf16.msra.mxu0 %v422
        %520 = vmatprep.subr.bf16.mxu0 %v425
        %521 = vmatpush1.bf16.msra.mxu0 %v424
        %522 = vmatprep.subr.bf16.mxu0 %v427
        %523 = vmatpush1.bf16.msra.mxu0 %v426
        %524 = vmatprep.subr.bf16.mxu0 %v429
        %525 = vmatpush1.bf16.msra.mxu0 %v428
        %526 = vmatprep.subr.bf16.mxu0 %v431
        %527 = vmatpush1.bf16.msra.mxu0 %v430
        %528 = vmatprep.subr.bf16.mxu0 %v433
        %529 = vmatpush1.bf16.msra.mxu0 %v432
        %530 = vmatprep.subr.bf16.mxu0 %v435
        %531 = vmatpush1.bf16.msra.mxu0 %v434
        %532 = vmatprep.subr.bf16.mxu0 %v437
        %533 = vmatpush1.bf16.msra.mxu0 %v436
        %534 = vmatprep.subr.bf16.mxu0 %v439
        %535 = vmatpush1.bf16.msra.mxu0 %v438
        %536 = vmatprep.subr.bf16.mxu0 %v441
        %537 = vmatpush1.bf16.msra.mxu0 %v440
        %538 = vmatprep.subr.bf16.mxu0 %v443
        %539 = vmatpush1.bf16.msra.mxu0 %v442
        %540 = vmatprep.subr.bf16.mxu0 %v445
        %541 = vmatpush1.bf16.msra.mxu0 %v444
        %542 = vmatprep.subr.bf16.mxu0 %v447
        %543 = vmatpush1.bf16.msra.mxu0 %v446
        %544 = vmatprep.subr.bf16.mxu0 %v449
        %545 = vmatpush1.bf16.msra.mxu0 %v448
        %546 = vmatprep.subr.bf16.mxu0 %v451
        %547 = vmatpush1.bf16.msra.mxu0 %v450
        %548 = vmatprep.mubr.bf16.mxu0 %v271
        %549 = vmatmul.mubr.bf16.gmra.mrb[0].mxu0 %v270
        %v550 = vpop.f32.mrb[0].mxu0
        %v551 = vadd.f32 0.0, %v550
        %v552 = vpop.f32.mrb[0].mxu0
        %v553 = vadd.f32 0.0, %v552
        %v554 = vpop.f32.mrb[0].mxu0
        %v555 = vadd.f32 0.0, %v554
        %v556 = vpop.f32.mrb[0].mxu0
        %v557 = vadd.f32 0.0, %v556
        %558 = vdwg.mxu0
        %559 = vmatprep.subr.bf16.mxu0 %v453
        %560 = vmatpush1.bf16.msra.mxu0 %v452
        %561 = vmatprep.subr.bf16.mxu0 %v455
        %562 = vmatpush1.bf16.msra.mxu0 %v454
        %563 = vmatprep.subr.bf16.mxu0 %v457
        %564 = vmatpush1.bf16.msra.mxu0 %v456
        %565 = vmatprep.subr.bf16.mxu0 %v459
        %566 = vmatpush1.bf16.msra.mxu0 %v458
        %567 = vmatprep.subr.bf16.mxu0 %v461
        %568 = vmatpush1.bf16.msra.mxu0 %v460
        %569 = vmatprep.subr.bf16.mxu0 %v463
        %570 = vmatpush1.bf16.msra.mxu0 %v462
        %571 = vmatprep.subr.bf16.mxu0 %v465
        %572 = vmatpush1.bf16.msra.mxu0 %v464
        %573 = vmatprep.subr.bf16.mxu0 %v467
        %574 = vmatpush1.bf16.msra.mxu0 %v466
        %575 = vmatprep.subr.bf16.mxu0 0
        %576 = vmatpush1.bf16.msra.mxu0 0
        %577 = vmatprep.subr.bf16.mxu0 0
        %578 = vmatpush1.bf16.msra.mxu0 0
        %579 = vmatprep.subr.bf16.mxu0 0
        %580 = vmatpush1.bf16.msra.mxu0 0
        %581 = vmatprep.subr.bf16.mxu0 0
        %582 = vmatpush1.bf16.msra.mxu0 0
        %583 = vmatprep.subr.bf16.mxu0 0
        %584 = vmatpush1.bf16.msra.mxu0 0
        %585 = vmatprep.subr.bf16.mxu0 0
        %586 = vmatpush1.bf16.msra.mxu0 0
        %587 = vmatprep.subr.bf16.mxu0 0
        %588 = vmatpush1.bf16.msra.mxu0 0
        %589 = vmatprep.subr.bf16.mxu0 0
        %590 = vmatpush1.bf16.msra.mxu0 0
        %591 = vmatprep.mubr.bf16.mxu0 0
        %592 = vmatmul.mubr.bf16.gmra.mrb[0].mxu0 %v272
        %v593 = vpop.f32.mrb[0].mxu0
        %v594 = vadd.f32 %v551, %v593
        %v595 = vpop.f32.mrb[0].mxu0
        %v596 = vadd.f32 %v553, %v595
        %v597 = vpop.f32.mrb[0].mxu0
        %v598 = vadd.f32 %v555, %v597
        %v599 = vpop.f32.mrb[0].mxu0
        %v600 = vadd.f32 %v557, %v599
        %601 = vdwg.mxu0
        %v602 = vld [vmem:[#allocation2 + $0x8] sm:$0xff]
        %v603 = vld [vmem:[#allocation2 + $0x28] sm:$0xff]
        %v604 = vld [vmem:[#allocation2 + $0x48] sm:$0xff]
        %v605 = vld [vmem:[#allocation2 + $0x68] sm:$0xff]
        %v606 = vld [vmem:[#allocation2 + $0x88] sm:$0xff]
        %v607 = vld [vmem:[#allocation2 + $0xa8] sm:$0xff]
        %v608 = vld [vmem:[#allocation2 + $0xc8] sm:$0xff]
        %v609 = vld [vmem:[#allocation2 + $0xe8] sm:$0xff]
        %v610 = vld [vmem:[#allocation2 + $0x108] sm:$0xff]
        %v611 = vld [vmem:[#allocation2 + $0x128] sm:$0xff]
        %v612 = vld [vmem:[#allocation2 + $0x148] sm:$0xff]
        %v613 = vld [vmem:[#allocation2 + $0x168] sm:$0xff]
        %v614 = vld [vmem:[#allocation2 + $0x188] sm:$0xff]
        %v615 = vld [vmem:[#allocation2 + $0x1a8] sm:$0xff]
        %v616 = vld [vmem:[#allocation2 + $0x1c8] sm:$0xff]
        %v617 = vld [vmem:[#allocation2 + $0x1e8] sm:$0xff]
        %v618 = vld [vmem:[#allocation2 + $0x208] sm:$0xff]
        %v619 = vld [vmem:[#allocation2 + $0x228] sm:$0xff]
        %v620 = vld [vmem:[#allocation2 + $0x248] sm:$0xff]
        %v621 = vld [vmem:[#allocation2 + $0x268] sm:$0xff]
        %v622 = vld [vmem:[#allocation2 + $0x288] sm:$0xff]
        %v623 = vld [vmem:[#allocation2 + $0x2a8] sm:$0xff]
        %v624 = vld [vmem:[#allocation2 + $0x2c8] sm:$0xff]
        %v625 = vld [vmem:[#allocation2 + $0x2e8] sm:$0xff]
        %v626 = vld [vmem:[#allocation2 + $0x308] sm:$0xff]
        %v627 = vld [vmem:[#allocation2 + $0x328] sm:$0xff]
        %v628 = vld [vmem:[#allocation2 + $0x348] sm:$0xff]
        %v629 = vld [vmem:[#allocation2 + $0x368] sm:$0xff]
        %v630 = vld [vmem:[#allocation2 + $0x388] sm:$0xff]
        %v631 = vld [vmem:[#allocation2 + $0x3a8] sm:$0xff]
        %v632 = vld [vmem:[#allocation2 + $0x3c8] sm:$0xff]
        %v633 = vld [vmem:[#allocation2 + $0x3e8] sm:$0xff]
        %v634 = vld [vmem:[#allocation2 + $0x408] sm:$0xff]
        %v635 = vld [vmem:[#allocation2 + $0x428] sm:$0xff]
        %v636 = vld [vmem:[#allocation2 + $0x448] sm:$0xff]
        %v637 = vld [vmem:[#allocation2 + $0x468] sm:$0xff]
        %v638 = vld [vmem:[#allocation2 + $0x488] sm:$0xff]
        %v639 = vld [vmem:[#allocation2 + $0x4a8] sm:$0xff]
        %v640 = vld [vmem:[#allocation2 + $0x4c8] sm:$0xff]
        %v641 = vld [vmem:[#allocation2 + $0x4e8] sm:$0xff]
        %v642 = vld [vmem:[#allocation2 + $0x508] sm:$0xff]
        %v643 = vld [vmem:[#allocation2 + $0x528] sm:$0xff]
        %v644 = vld [vmem:[#allocation2 + $0x548] sm:$0xff]
        %v645 = vld [vmem:[#allocation2 + $0x568] sm:$0xff]
        %v646 = vld [vmem:[#allocation2 + $0x588] sm:$0xff]
        %v647 = vld [vmem:[#allocation2 + $0x5a8] sm:$0xff]
        %v648 = vld [vmem:[#allocation2 + $0x5c8] sm:$0xff]
        %v649 = vld [vmem:[#allocation2 + $0x5e8] sm:$0xff]
        %v698 = vunpack.c.l.b16 %v602
        %v699 = vunpack.c.h.b16 %v602
        %v700 = vunpack.c.l.b16 %v603
        %v701 = vunpack.c.h.b16 %v603
        %v702 = vunpack.c.l.b16 %v604
        %v703 = vunpack.c.h.b16 %v604
        %v704 = vunpack.c.l.b16 %v605
        %v705 = vunpack.c.h.b16 %v605
        %v706 = vunpack.c.l.b16 %v606
        %v707 = vunpack.c.h.b16 %v606
        %v708 = vunpack.c.l.b16 %v607
        %v709 = vunpack.c.h.b16 %v607
        %v710 = vunpack.c.l.b16 %v608
        %v711 = vunpack.c.h.b16 %v608
        %v712 = vunpack.c.l.b16 %v609
        %v713 = vunpack.c.h.b16 %v609
        %v714 = vunpack.c.l.b16 %v610
        %v715 = vunpack.c.h.b16 %v610
        %v716 = vunpack.c.l.b16 %v611
        %v717 = vunpack.c.h.b16 %v611
        %v718 = vunpack.c.l.b16 %v612
        %v719 = vunpack.c.h.b16 %v612
        %v720 = vunpack.c.l.b16 %v613
        %v721 = vunpack.c.h.b16 %v613
        %v722 = vunpack.c.l.b16 %v614
        %v723 = vunpack.c.h.b16 %v614
        %v724 = vunpack.c.l.b16 %v615
        %v725 = vunpack.c.h.b16 %v615
        %v726 = vunpack.c.l.b16 %v616
        %v727 = vunpack.c.h.b16 %v616
        %v728 = vunpack.c.l.b16 %v617
        %v729 = vunpack.c.h.b16 %v617
        %v730 = vunpack.c.l.b16 %v618
        %v731 = vunpack.c.h.b16 %v618
        %v732 = vunpack.c.l.b16 %v619
        %v733 = vunpack.c.h.b16 %v619
        %v734 = vunpack.c.l.b16 %v620
        %v735 = vunpack.c.h.b16 %v620
        %v736 = vunpack.c.l.b16 %v621
        %v737 = vunpack.c.h.b16 %v621
        %v738 = vunpack.c.l.b16 %v622
        %v739 = vunpack.c.h.b16 %v622
        %v740 = vunpack.c.l.b16 %v623
        %v741 = vunpack.c.h.b16 %v623
        %v742 = vunpack.c.l.b16 %v624
        %v743 = vunpack.c.h.b16 %v624
        %v744 = vunpack.c.l.b16 %v625
        %v745 = vunpack.c.h.b16 %v625
        %v746 = vunpack.c.l.b16 %v626
        %v747 = vunpack.c.h.b16 %v626
        %v748 = vunpack.c.l.b16 %v627
        %v749 = vunpack.c.h.b16 %v627
        %v750 = vunpack.c.l.b16 %v628
        %v751 = vunpack.c.h.b16 %v628
        %v752 = vunpack.c.l.b16 %v629
        %v753 = vunpack.c.h.b16 %v629
        %v754 = vunpack.c.l.b16 %v630
        %v755 = vunpack.c.h.b16 %v630
        %v756 = vunpack.c.l.b16 %v631
        %v757 = vunpack.c.h.b16 %v631
        %v758 = vunpack.c.l.b16 %v632
        %v759 = vunpack.c.h.b16 %v632
        %v760 = vunpack.c.l.b16 %v633
        %v761 = vunpack.c.h.b16 %v633
        %v762 = vunpack.c.l.b16 %v634
        %v763 = vunpack.c.h.b16 %v634
        %v764 = vunpack.c.l.b16 %v635
        %v765 = vunpack.c.h.b16 %v635
        %v766 = vunpack.c.l.b16 %v636
        %v767 = vunpack.c.h.b16 %v636
        %v768 = vunpack.c.l.b16 %v637
        %v769 = vunpack.c.h.b16 %v637
        %v770 = vunpack.c.l.b16 %v638
        %v771 = vunpack.c.h.b16 %v638
        %v772 = vunpack.c.l.b16 %v639
        %v773 = vunpack.c.h.b16 %v639
        %v774 = vunpack.c.l.b16 %v640
        %v775 = vunpack.c.h.b16 %v640
        %v776 = vunpack.c.l.b16 %v641
        %v777 = vunpack.c.h.b16 %v641
        %v778 = vunpack.c.l.b16 %v642
        %v779 = vunpack.c.h.b16 %v642
        %v780 = vunpack.c.l.b16 %v643
        %v781 = vunpack.c.h.b16 %v643
        %v782 = vunpack.c.l.b16 %v644
        %v783 = vunpack.c.h.b16 %v644
        %v784 = vunpack.c.l.b16 %v645
        %v785 = vunpack.c.h.b16 %v645
        %v786 = vunpack.c.l.b16 %v646
        %v787 = vunpack.c.h.b16 %v646
        %v788 = vunpack.c.l.b16 %v647
        %v789 = vunpack.c.h.b16 %v647
        %v790 = vunpack.c.l.b16 %v648
        %v791 = vunpack.c.h.b16 %v648
        %v792 = vunpack.c.l.b16 %v649
        %v793 = vunpack.c.h.b16 %v649
        %v794 = vpack.c.b16 %v700, %v698
        %v795 = vpack.c.b16 %v701, %v699
        %v796 = vpack.c.b16 %v704, %v702
        %v797 = vpack.c.b16 %v705, %v703
        %v798 = vpack.c.b16 %v708, %v706
        %v799 = vpack.c.b16 %v709, %v707
        %v800 = vpack.c.b16 %v712, %v710
        %v801 = vpack.c.b16 %v713, %v711
        %v802 = vpack.c.b16 %v716, %v714
        %v803 = vpack.c.b16 %v717, %v715
        %v804 = vpack.c.b16 %v720, %v718
        %v805 = vpack.c.b16 %v721, %v719
        %v806 = vpack.c.b16 %v724, %v722
        %v807 = vpack.c.b16 %v725, %v723
        %v808 = vpack.c.b16 %v728, %v726
        %v809 = vpack.c.b16 %v729, %v727
        %v810 = vpack.c.b16 %v732, %v730
        %v811 = vpack.c.b16 %v733, %v731
        %v812 = vpack.c.b16 %v736, %v734
        %v813 = vpack.c.b16 %v737, %v735
        %v814 = vpack.c.b16 %v740, %v738
        %v815 = vpack.c.b16 %v741, %v739
        %v816 = vpack.c.b16 %v744, %v742
        %v817 = vpack.c.b16 %v745, %v743
        %v818 = vpack.c.b16 %v748, %v746
        %v819 = vpack.c.b16 %v749, %v747
        %v820 = vpack.c.b16 %v752, %v750
        %v821 = vpack.c.b16 %v753, %v751
        %v822 = vpack.c.b16 %v756, %v754
        %v823 = vpack.c.b16 %v757, %v755
        %v824 = vpack.c.b16 %v760, %v758
        %v825 = vpack.c.b16 %v761, %v759
        %v826 = vpack.c.b16 %v764, %v762
        %v827 = vpack.c.b16 %v765, %v763
        %v828 = vpack.c.b16 %v768, %v766
        %v829 = vpack.c.b16 %v769, %v767
        %v830 = vpack.c.b16 %v772, %v770
        %v831 = vpack.c.b16 %v773, %v771
        %v832 = vpack.c.b16 %v776, %v774
        %v833 = vpack.c.b16 %v777, %v775
        %v834 = vpack.c.b16 %v780, %v778
        %v835 = vpack.c.b16 %v781, %v779
        %v836 = vpack.c.b16 %v784, %v782
        %v837 = vpack.c.b16 %v785, %v783
        %v838 = vpack.c.b16 %v788, %v786
        %v839 = vpack.c.b16 %v789, %v787
        %v840 = vpack.c.b16 %v792, %v790
        %v841 = vpack.c.b16 %v793, %v791
        %890 = vmatprep.subr.bf16.mxu0 %v795
        %891 = vmatpush1.bf16.msra.mxu0 %v794
        %892 = vmatprep.subr.bf16.mxu0 %v797
        %893 = vmatpush1.bf16.msra.mxu0 %v796
        %894 = vmatprep.subr.bf16.mxu0 %v799
        %895 = vmatpush1.bf16.msra.mxu0 %v798
        %896 = vmatprep.subr.bf16.mxu0 %v801
        %897 = vmatpush1.bf16.msra.mxu0 %v800
        %898 = vmatprep.subr.bf16.mxu0 %v803
        %899 = vmatpush1.bf16.msra.mxu0 %v802
        %900 = vmatprep.subr.bf16.mxu0 %v805
        %901 = vmatpush1.bf16.msra.mxu0 %v804
        %902 = vmatprep.subr.bf16.mxu0 %v807
        %903 = vmatpush1.bf16.msra.mxu0 %v806
        %904 = vmatprep.subr.bf16.mxu0 %v809
        %905 = vmatpush1.bf16.msra.mxu0 %v808
        %906 = vmatprep.subr.bf16.mxu0 %v811
        %907 = vmatpush1.bf16.msra.mxu0 %v810
        %908 = vmatprep.subr.bf16.mxu0 %v813
        %909 = vmatpush1.bf16.msra.mxu0 %v812
        %910 = vmatprep.subr.bf16.mxu0 %v815
        %911 = vmatpush1.bf16.msra.mxu0 %v814
        %912 = vmatprep.subr.bf16.mxu0 %v817
        %913 = vmatpush1.bf16.msra.mxu0 %v816
        %914 = vmatprep.subr.bf16.mxu0 %v819
        %915 = vmatpush1.bf16.msra.mxu0 %v818
        %916 = vmatprep.subr.bf16.mxu0 %v821
        %917 = vmatpush1.bf16.msra.mxu0 %v820
        %918 = vmatprep.subr.bf16.mxu0 %v823
        %919 = vmatpush1.bf16.msra.mxu0 %v822
        %920 = vmatprep.subr.bf16.mxu0 %v825
        %921 = vmatpush1.bf16.msra.mxu0 %v824
        %922 = vmatprep.mubr.bf16.mxu0 %v271
        %923 = vmatmul.mubr.bf16.gmra.mrb[0].mxu0 %v270
        %v924 = vpop.f32.mrb[0].mxu0
        %v925 = vadd.f32 0.0, %v924
        %v926 = vpop.f32.mrb[0].mxu0
        %v927 = vadd.f32 0.0, %v926
        %v928 = vpop.f32.mrb[0].mxu0
        %v929 = vadd.f32 0.0, %v928
        %v930 = vpop.f32.mrb[0].mxu0
        %v931 = vadd.f32 0.0, %v930
        %932 = vdwg.mxu0
        %933 = vmatprep.subr.bf16.mxu0 %v827
        %934 = vmatpush1.bf16.msra.mxu0 %v826
        %935 = vmatprep.subr.bf16.mxu0 %v829
        %936 = vmatpush1.bf16.msra.mxu0 %v828
        %937 = vmatprep.subr.bf16.mxu0 %v831
        %938 = vmatpush1.bf16.msra.mxu0 %v830
        %939 = vmatprep.subr.bf16.mxu0 %v833
        %940 = vmatpush1.bf16.msra.mxu0 %v832
        %941 = vmatprep.subr.bf16.mxu0 %v835
        %942 = vmatpush1.bf16.msra.mxu0 %v834
        %943 = vmatprep.subr.bf16.mxu0 %v837
        %944 = vmatpush1.bf16.msra.mxu0 %v836
        %945 = vmatprep.subr.bf16.mxu0 %v839
        %946 = vmatpush1.bf16.msra.mxu0 %v838
        %947 = vmatprep.subr.bf16.mxu0 %v841
        %948 = vmatpush1.bf16.msra.mxu0 %v840
        %949 = vmatprep.subr.bf16.mxu0 0
        %950 = vmatpush1.bf16.msra.mxu0 0
        %951 = vmatprep.subr.bf16.mxu0 0
        %952 = vmatpush1.bf16.msra.mxu0 0
        %953 = vmatprep.subr.bf16.mxu0 0
        %954 = vmatpush1.bf16.msra.mxu0 0
        %955 = vmatprep.subr.bf16.mxu0 0
        %956 = vmatpush1.bf16.msra.mxu0 0
        %957 = vmatprep.subr.bf16.mxu0 0
        %958 = vmatpush1.bf16.msra.mxu0 0
        %959 = vmatprep.subr.bf16.mxu0 0
        %960 = vmatpush1.bf16.msra.mxu0 0
        %961 = vmatprep.subr.bf16.mxu0 0
        %962 = vmatpush1.bf16.msra.mxu0 0
        %963 = vmatprep.subr.bf16.mxu0 0
        %964 = vmatpush1.bf16.msra.mxu0 0
        %965 = vmatprep.mubr.bf16.mxu0 0
        %966 = vmatmul.mubr.bf16.gmra.mrb[0].mxu0 %v272
        %v967 = vpop.f32.mrb[0].mxu0
        %v968 = vadd.f32 %v925, %v967
        %v969 = vpop.f32.mrb[0].mxu0
        %v970 = vadd.f32 %v927, %v969
        %v971 = vpop.f32.mrb[0].mxu0
        %v972 = vadd.f32 %v929, %v971
        %v973 = vpop.f32.mrb[0].mxu0
        %v974 = vadd.f32 %v931, %v973
        %975 = vdwg.mxu0
        %v976 = vmax.f32 %v594, %v968
        %v977 = vmax.f32 %v596, %v970
        %v978 = vmax.f32 %v598, %v972
        %v979 = vmax.f32 %v600, %v974
        %v980 = vld [vmem:[#allocation2 + $0x10] sm:$0xff]
        %v981 = vld [vmem:[#allocation2 + $0x30] sm:$0xff]
        %v982 = vld [vmem:[#allocation2 + $0x50] sm:$0xff]
        %v983 = vld [vmem:[#allocation2 + $0x70] sm:$0xff]
        %v984 = vld [vmem:[#allocation2 + $0x90] sm:$0xff]
        %v985 = vld [vmem:[#allocation2 + $0xb0] sm:$0xff]
        %v986 = vld [vmem:[#allocation2 + $0xd0] sm:$0xff]
        %v987 = vld [vmem:[#allocation2 + $0xf0] sm:$0xff]
        %v988 = vld [vmem:[#allocation2 + $0x110] sm:$0xff]
        %v989 = vld [vmem:[#allocation2 + $0x130] sm:$0xff]
        %v990 = vld [vmem:[#allocation2 + $0x150] sm:$0xff]
        %v991 = vld [vmem:[#allocation2 + $0x170] sm:$0xff]
        %v992 = vld [vmem:[#allocation2 + $0x190] sm:$0xff]
        %v993 = vld [vmem:[#allocation2 + $0x1b0] sm:$0xff]
        %v994 = vld [vmem:[#allocation2 + $0x1d0] sm:$0xff]
        %v995 = vld [vmem:[#allocation2 + $0x1f0] sm:$0xff]
        %v996 = vld [vmem:[#allocation2 + $0x210] sm:$0xff]
        %v997 = vld [vmem:[#allocation2 + $0x230] sm:$0xff]
        %v998 = vld [vmem:[#allocation2 + $0x250] sm:$0xff]
        %v999 = vld [vmem:[#allocation2 + $0x270] sm:$0xff]
        %v1000 = vld [vmem:[#allocation2 + $0x290] sm:$0xff]
        %v1001 = vld [vmem:[#allocation2 + $0x2b0] sm:$0xff]
        %v1002 = vld [vmem:[#allocation2 + $0x2d0] sm:$0xff]
        %v1003 = vld [vmem:[#allocation2 + $0x2f0] sm:$0xff]
        %v1004 = vld [vmem:[#allocation2 + $0x310] sm:$0xff]
        %v1005 = vld [vmem:[#allocation2 + $0x330] sm:$0xff]
        %v1006 = vld [vmem:[#allocation2 + $0x350] sm:$0xff]
        %v1007 = vld [vmem:[#allocation2 + $0x370] sm:$0xff]
        %v1008 = vld [vmem:[#allocation2 + $0x390] sm:$0xff]
        %v1009 = vld [vmem:[#allocation2 + $0x3b0] sm:$0xff]
        %v1010 = vld [vmem:[#allocation2 + $0x3d0] sm:$0xff]
        %v1011 = vld [vmem:[#allocation2 + $0x3f0] sm:$0xff]
        %v1012 = vld [vmem:[#allocation2 + $0x410] sm:$0xff]
        %v1013 = vld [vmem:[#allocation2 + $0x430] sm:$0xff]
        %v1014 = vld [vmem:[#allocation2 + $0x450] sm:$0xff]
        %v1015 = vld [vmem:[#allocation2 + $0x470] sm:$0xff]
        %v1016 = vld [vmem:[#allocation2 + $0x490] sm:$0xff]
        %v1017 = vld [vmem:[#allocation2 + $0x4b0] sm:$0xff]
        %v1018 = vld [vmem:[#allocation2 + $0x4d0] sm:$0xff]
        %v1019 = vld [vmem:[#allocation2 + $0x4f0] sm:$0xff]
        %v1020 = vld [vmem:[#allocation2 + $0x510] sm:$0xff]
        %v1021 = vld [vmem:[#allocation2 + $0x530] sm:$0xff]
        %v1022 = vld [vmem:[#allocation2 + $0x550] sm:$0xff]
        %v1023 = vld [vmem:[#allocation2 + $0x570] sm:$0xff]
        %v1024 = vld [vmem:[#allocation2 + $0x590] sm:$0xff]
        %v1025 = vld [vmem:[#allocation2 + $0x5b0] sm:$0xff]
        %v1026 = vld [vmem:[#allocation2 + $0x5d0] sm:$0xff]
        %v1027 = vld [vmem:[#allocation2 + $0x5f0] sm:$0xff]
        %v1076 = vunpack.c.l.b16 %v980
        %v1077 = vunpack.c.h.b16 %v980
        %v1078 = vunpack.c.l.b16 %v981
        %v1079 = vunpack.c.h.b16 %v981
        %v1080 = vunpack.c.l.b16 %v982
        %v1081 = vunpack.c.h.b16 %v982
        %v1082 = vunpack.c.l.b16 %v983
        %v1083 = vunpack.c.h.b16 %v983
        %v1084 = vunpack.c.l.b16 %v984
        %v1085 = vunpack.c.h.b16 %v984
        %v1086 = vunpack.c.l.b16 %v985
        %v1087 = vunpack.c.h.b16 %v985
        %v1088 = vunpack.c.l.b16 %v986
        %v1089 = vunpack.c.h.b16 %v986
        %v1090 = vunpack.c.l.b16 %v987
        %v1091 = vunpack.c.h.b16 %v987
        %v1092 = vunpack.c.l.b16 %v988
        %v1093 = vunpack.c.h.b16 %v988
        %v1094 = vunpack.c.l.b16 %v989
        %v1095 = vunpack.c.h.b16 %v989
        %v1096 = vunpack.c.l.b16 %v990
        %v1097 = vunpack.c.h.b16 %v990
        %v1098 = vunpack.c.l.b16 %v991
        %v1099 = vunpack.c.h.b16 %v991
        %v1100 = vunpack.c.l.b16 %v992
        %v1101 = vunpack.c.h.b16 %v992
        %v1102 = vunpack.c.l.b16 %v993
        %v1103 = vunpack.c.h.b16 %v993
        %v1104 = vunpack.c.l.b16 %v994
        %v1105 = vunpack.c.h.b16 %v994
        %v1106 = vunpack.c.l.b16 %v995
        %v1107 = vunpack.c.h.b16 %v995
        %v1108 = vunpack.c.l.b16 %v996
        %v1109 = vunpack.c.h.b16 %v996
        %v1110 = vunpack.c.l.b16 %v997
        %v1111 = vunpack.c.h.b16 %v997
        %v1112 = vunpack.c.l.b16 %v998
        %v1113 = vunpack.c.h.b16 %v998
        %v1114 = vunpack.c.l.b16 %v999
        %v1115 = vunpack.c.h.b16 %v999
        %v1116 = vunpack.c.l.b16 %v1000
        %v1117 = vunpack.c.h.b16 %v1000
        %v1118 = vunpack.c.l.b16 %v1001
        %v1119 = vunpack.c.h.b16 %v1001
        %v1120 = vunpack.c.l.b16 %v1002
        %v1121 = vunpack.c.h.b16 %v1002
        %v1122 = vunpack.c.l.b16 %v1003
        %v1123 = vunpack.c.h.b16 %v1003
        %v1124 = vunpack.c.l.b16 %v1004
        %v1125 = vunpack.c.h.b16 %v1004
        %v1126 = vunpack.c.l.b16 %v1005
        %v1127 = vunpack.c.h.b16 %v1005
        %v1128 = vunpack.c.l.b16 %v1006
        %v1129 = vunpack.c.h.b16 %v1006
        %v1130 = vunpack.c.l.b16 %v1007
        %v1131 = vunpack.c.h.b16 %v1007
        %v1132 = vunpack.c.l.b16 %v1008
        %v1133 = vunpack.c.h.b16 %v1008
        %v1134 = vunpack.c.l.b16 %v1009
        %v1135 = vunpack.c.h.b16 %v1009
        %v1136 = vunpack.c.l.b16 %v1010
        %v1137 = vunpack.c.h.b16 %v1010
        %v1138 = vunpack.c.l.b16 %v1011
        %v1139 = vunpack.c.h.b16 %v1011
        %v1140 = vunpack.c.l.b16 %v1012
        %v1141 = vunpack.c.h.b16 %v1012
        %v1142 = vunpack.c.l.b16 %v1013
        %v1143 = vunpack.c.h.b16 %v1013
        %v1144 = vunpack.c.l.b16 %v1014
        %v1145 = vunpack.c.h.b16 %v1014
        %v1146 = vunpack.c.l.b16 %v1015
        %v1147 = vunpack.c.h.b16 %v1015
        %v1148 = vunpack.c.l.b16 %v1016
        %v1149 = vunpack.c.h.b16 %v1016
        %v1150 = vunpack.c.l.b16 %v1017
        %v1151 = vunpack.c.h.b16 %v1017
        %v1152 = vunpack.c.l.b16 %v1018
        %v1153 = vunpack.c.h.b16 %v1018
        %v1154 = vunpack.c.l.b16 %v1019
        %v1155 = vunpack.c.h.b16 %v1019
        %v1156 = vunpack.c.l.b16 %v1020
        %v1157 = vunpack.c.h.b16 %v1020
        %v1158 = vunpack.c.l.b16 %v1021
        %v1159 = vunpack.c.h.b16 %v1021
        %v1160 = vunpack.c.l.b16 %v1022
        %v1161 = vunpack.c.h.b16 %v1022
        %v1162 = vunpack.c.l.b16 %v1023
        %v1163 = vunpack.c.h.b16 %v1023
        %v1164 = vunpack.c.l.b16 %v1024
        %v1165 = vunpack.c.h.b16 %v1024
        %v1166 = vunpack.c.l.b16 %v1025
        %v1167 = vunpack.c.h.b16 %v1025
        %v1168 = vunpack.c.l.b16 %v1026
        %v1169 = vunpack.c.h.b16 %v1026
        %v1170 = vunpack.c.l.b16 %v1027
        %v1171 = vunpack.c.h.b16 %v1027
        %v1172 = vpack.c.b16 %v1078, %v1076
        %v1173 = vpack.c.b16 %v1079, %v1077
        %v1174 = vpack.c.b16 %v1082, %v1080
        %v1175 = vpack.c.b16 %v1083, %v1081
        %v1176 = vpack.c.b16 %v1086, %v1084
        %v1177 = vpack.c.b16 %v1087, %v1085
        %v1178 = vpack.c.b16 %v1090, %v1088
        %v1179 = vpack.c.b16 %v1091, %v1089
        %v1180 = vpack.c.b16 %v1094, %v1092
        %v1181 = vpack.c.b16 %v1095, %v1093
        %v1182 = vpack.c.b16 %v1098, %v1096
        %v1183 = vpack.c.b16 %v1099, %v1097
        %v1184 = vpack.c.b16 %v1102, %v1100
        %v1185 = vpack.c.b16 %v1103, %v1101
        %v1186 = vpack.c.b16 %v1106, %v1104
        %v1187 = vpack.c.b16 %v1107, %v1105
        %v1188 = vpack.c.b16 %v1110, %v1108
        %v1189 = vpack.c.b16 %v1111, %v1109
        %v1190 = vpack.c.b16 %v1114, %v1112
        %v1191 = vpack.c.b16 %v1115, %v1113
        %v1192 = vpack.c.b16 %v1118, %v1116
        %v1193 = vpack.c.b16 %v1119, %v1117
        %v1194 = vpack.c.b16 %v1122, %v1120
        %v1195 = vpack.c.b16 %v1123, %v1121
        %v1196 = vpack.c.b16 %v1126, %v1124
        %v1197 = vpack.c.b16 %v1127, %v1125
        %v1198 = vpack.c.b16 %v1130, %v1128
        %v1199 = vpack.c.b16 %v1131, %v1129
        %v1200 = vpack.c.b16 %v1134, %v1132
        %v1201 = vpack.c.b16 %v1135, %v1133
        %v1202 = vpack.c.b16 %v1138, %v1136
        %v1203 = vpack.c.b16 %v1139, %v1137
        %v1204 = vpack.c.b16 %v1142, %v1140
        %v1205 = vpack.c.b16 %v1143, %v1141
        %v1206 = vpack.c.b16 %v1146, %v1144
        %v1207 = vpack.c.b16 %v1147, %v1145
        %v1208 = vpack.c.b16 %v1150, %v1148
        %v1209 = vpack.c.b16 %v1151, %v1149
        %v1210 = vpack.c.b16 %v1154, %v1152
        %v1211 = vpack.c.b16 %v1155, %v1153
        %v1212 = vpack.c.b16 %v1158, %v1156
        %v1213 = vpack.c.b16 %v1159, %v1157
        %v1214 = vpack.c.b16 %v1162, %v1160
        %v1215 = vpack.c.b16 %v1163, %v1161
        %v1216 = vpack.c.b16 %v1166, %v1164
        %v1217 = vpack.c.b16 %v1167, %v1165
        %v1218 = vpack.c.b16 %v1170, %v1168
        %v1219 = vpack.c.b16 %v1171, %v1169
        %1268 = vmatprep.subr.bf16.mxu0 %v1173
        %1269 = vmatpush1.bf16.msra.mxu0 %v1172
        %1270 = vmatprep.subr.bf16.mxu0 %v1175
        %1271 = vmatpush1.bf16.msra.mxu0 %v1174
        %1272 = vmatprep.subr.bf16.mxu0 %v1177
        %1273 = vmatpush1.bf16.msra.mxu0 %v1176
        %1274 = vmatprep.subr.bf16.mxu0 %v1179
        %1275 = vmatpush1.bf16.msra.mxu0 %v1178
        %1276 = vmatprep.subr.bf16.mxu0 %v1181
        %1277 = vmatpush1.bf16.msra.mxu0 %v1180
        %1278 = vmatprep.subr.bf16.mxu0 %v1183
        %1279 = vmatpush1.bf16.msra.mxu0 %v1182
        %1280 = vmatprep.subr.bf16.mxu0 %v1185
        %1281 = vmatpush1.bf16.msra.mxu0 %v1184
        %1282 = vmatprep.subr.bf16.mxu0 %v1187
        %1283 = vmatpush1.bf16.msra.mxu0 %v1186
        %1284 = vmatprep.subr.bf16.mxu0 %v1189
        %1285 = vmatpush1.bf16.msra.mxu0 %v1188
        %1286 = vmatprep.subr.bf16.mxu0 %v1191
        %1287 = vmatpush1.bf16.msra.mxu0 %v1190
        %1288 = vmatprep.subr.bf16.mxu0 %v1193
        %1289 = vmatpush1.bf16.msra.mxu0 %v1192
        %1290 = vmatprep.subr.bf16.mxu0 %v1195
        %1291 = vmatpush1.bf16.msra.mxu0 %v1194
        %1292 = vmatprep.subr.bf16.mxu0 %v1197
        %1293 = vmatpush1.bf16.msra.mxu0 %v1196
        %1294 = vmatprep.subr.bf16.mxu0 %v1199
        %1295 = vmatpush1.bf16.msra.mxu0 %v1198
        %1296 = vmatprep.subr.bf16.mxu0 %v1201
        %1297 = vmatpush1.bf16.msra.mxu0 %v1200
        %1298 = vmatprep.subr.bf16.mxu0 %v1203
        %1299 = vmatpush1.bf16.msra.mxu0 %v1202
        %1300 = vmatprep.mubr.bf16.mxu0 %v271
        %1301 = vmatmul.mubr.bf16.gmra.mrb[0].mxu0 %v270
        %v1302 = vpop.f32.mrb[0].mxu0
        %v1303 = vadd.f32 0.0, %v1302
        %v1304 = vpop.f32.mrb[0].mxu0
        %v1305 = vadd.f32 0.0, %v1304
        %v1306 = vpop.f32.mrb[0].mxu0
        %v1307 = vadd.f32 0.0, %v1306
        %v1308 = vpop.f32.mrb[0].mxu0
        %v1309 = vadd.f32 0.0, %v1308
        %1310 = vdwg.mxu0
        %1311 = vmatprep.subr.bf16.mxu0 %v1205
        %1312 = vmatpush1.bf16.msra.mxu0 %v1204
        %1313 = vmatprep.subr.bf16.mxu0 %v1207
        %1314 = vmatpush1.bf16.msra.mxu0 %v1206
        %1315 = vmatprep.subr.bf16.mxu0 %v1209
        %1316 = vmatpush1.bf16.msra.mxu0 %v1208
        %1317 = vmatprep.subr.bf16.mxu0 %v1211
        %1318 = vmatpush1.bf16.msra.mxu0 %v1210
        %1319 = vmatprep.subr.bf16.mxu0 %v1213
        %1320 = vmatpush1.bf16.msra.mxu0 %v1212
        %1321 = vmatprep.subr.bf16.mxu0 %v1215
        %1322 = vmatpush1.bf16.msra.mxu0 %v1214
        %1323 = vmatprep.subr.bf16.mxu0 %v1217
        %1324 = vmatpush1.bf16.msra.mxu0 %v1216
        %1325 = vmatprep.subr.bf16.mxu0 %v1219
        %1326 = vmatpush1.bf16.msra.mxu0 %v1218
        %1327 = vmatprep.subr.bf16.mxu0 0
        %1328 = vmatpush1.bf16.msra.mxu0 0
        %1329 = vmatprep.subr.bf16.mxu0 0
        %1330 = vmatpush1.bf16.msra.mxu0 0
        %1331 = vmatprep.subr.bf16.mxu0 0
        %1332 = vmatpush1.bf16.msra.mxu0 0
        %1333 = vmatprep.subr.bf16.mxu0 0
        %1334 = vmatpush1.bf16.msra.mxu0 0
        %1335 = vmatprep.subr.bf16.mxu0 0
        %1336 = vmatpush1.bf16.msra.mxu0 0
        %1337 = vmatprep.subr.bf16.mxu0 0
        %1338 = vmatpush1.bf16.msra.mxu0 0
        %1339 = vmatprep.subr.bf16.mxu0 0
        %1340 = vmatpush1.bf16.msra.mxu0 0
        %1341 = vmatprep.subr.bf16.mxu0 0
        %1342 = vmatpush1.bf16.msra.mxu0 0
        %1343 = vmatprep.mubr.bf16.mxu0 0
        %1344 = vmatmul.mubr.bf16.gmra.mrb[0].mxu0 %v272
        %v1345 = vpop.f32.mrb[0].mxu0
        %v1346 = vadd.f32 %v1303, %v1345
        %v1347 = vpop.f32.mrb[0].mxu0
        %v1348 = vadd.f32 %v1305, %v1347
        %v1349 = vpop.f32.mrb[0].mxu0
        %v1350 = vadd.f32 %v1307, %v1349
        %v1351 = vpop.f32.mrb[0].mxu0
        %v1352 = vadd.f32 %v1309, %v1351
        %1353 = vdwg.mxu0
        %v1354 = vmax.f32 %v976, %v1346
        %v1355 = vmax.f32 %v977, %v1348
        %v1356 = vmax.f32 %v978, %v1350
        %v1357 = vmax.f32 %v979, %v1352
        %v1358 = vld [vmem:[#allocation2 + $0x18] sm:$0xff]
        %v1359 = vld [vmem:[#allocation2 + $0x38] sm:$0xff]
        %v1360 = vld [vmem:[#allocation2 + $0x58] sm:$0xff]
        %v1361 = vld [vmem:[#allocation2 + $0x78] sm:$0xff]
        %v1362 = vld [vmem:[#allocation2 + $0x98] sm:$0xff]
        %v1363 = vld [vmem:[#allocation2 + $0xb8] sm:$0xff]
        %v1364 = vld [vmem:[#allocation2 + $0xd8] sm:$0xff]
        %v1365 = vld [vmem:[#allocation2 + $0xf8] sm:$0xff]
        %v1366 = vld [vmem:[#allocation2 + $0x118] sm:$0xff]
        %v1367 = vld [vmem:[#allocation2 + $0x138] sm:$0xff]
        %v1368 = vld [vmem:[#allocation2 + $0x158] sm:$0xff]
        %v1369 = vld [vmem:[#allocation2 + $0x178] sm:$0xff]
        %v1370 = vld [vmem:[#allocation2 + $0x198] sm:$0xff]
        %v1371 = vld [vmem:[#allocation2 + $0x1b8] sm:$0xff]
        %v1372 = vld [vmem:[#allocation2 + $0x1d8] sm:$0xff]
        %v1373 = vld [vmem:[#allocation2 + $0x1f8] sm:$0xff]
        %v1374 = vld [vmem:[#allocation2 + $0x218] sm:$0xff]
        %v1375 = vld [vmem:[#allocation2 + $0x238] sm:$0xff]
        %v1376 = vld [vmem:[#allocation2 + $0x258] sm:$0xff]
        %v1377 = vld [vmem:[#allocation2 + $0x278] sm:$0xff]
        %v1378 = vld [vmem:[#allocation2 + $0x298] sm:$0xff]
        %v1379 = vld [vmem:[#allocation2 + $0x2b8] sm:$0xff]
        %v1380 = vld [vmem:[#allocation2 + $0x2d8] sm:$0xff]
        %v1381 = vld [vmem:[#allocation2 + $0x2f8] sm:$0xff]
        %v1382 = vld [vmem:[#allocation2 + $0x318] sm:$0xff]
        %v1383 = vld [vmem:[#allocation2 + $0x338] sm:$0xff]
        %v1384 = vld [vmem:[#allocation2 + $0x358] sm:$0xff]
        %v1385 = vld [vmem:[#allocation2 + $0x378] sm:$0xff]
        %v1386 = vld [vmem:[#allocation2 + $0x398] sm:$0xff]
        %v1387 = vld [vmem:[#allocation2 + $0x3b8] sm:$0xff]
        %v1388 = vld [vmem:[#allocation2 + $0x3d8] sm:$0xff]
        %v1389 = vld [vmem:[#allocation2 + $0x3f8] sm:$0xff]
        %v1390 = vld [vmem:[#allocation2 + $0x418] sm:$0xff]
        %v1391 = vld [vmem:[#allocation2 + $0x438] sm:$0xff]
        %v1392 = vld [vmem:[#allocation2 + $0x458] sm:$0xff]
        %v1393 = vld [vmem:[#allocation2 + $0x478] sm:$0xff]
        %v1394 = vld [vmem:[#allocation2 + $0x498] sm:$0xff]
        %v1395 = vld [vmem:[#allocation2 + $0x4b8] sm:$0xff]
        %v1396 = vld [vmem:[#allocation2 + $0x4d8] sm:$0xff]
        %v1397 = vld [vmem:[#allocation2 + $0x4f8] sm:$0xff]
        %v1398 = vld [vmem:[#allocation2 + $0x518] sm:$0xff]
        %v1399 = vld [vmem:[#allocation2 + $0x538] sm:$0xff]
        %v1400 = vld [vmem:[#allocation2 + $0x558] sm:$0xff]
        %v1401 = vld [vmem:[#allocation2 + $0x578] sm:$0xff]
        %v1402 = vld [vmem:[#allocation2 + $0x598] sm:$0xff]
        %v1403 = vld [vmem:[#allocation2 + $0x5b8] sm:$0xff]
        %v1404 = vld [vmem:[#allocation2 + $0x5d8] sm:$0xff]
        %v1405 = vld [vmem:[#allocation2 + $0x5f8] sm:$0xff]
        %v1454 = vunpack.c.l.b16 %v1358
        %v1455 = vunpack.c.h.b16 %v1358
        %v1456 = vunpack.c.l.b16 %v1359
        %v1457 = vunpack.c.h.b16 %v1359
        %v1458 = vunpack.c.l.b16 %v1360
        %v1459 = vunpack.c.h.b16 %v1360
        %v1460 = vunpack.c.l.b16 %v1361
        %v1461 = vunpack.c.h.b16 %v1361
        %v1462 = vunpack.c.l.b16 %v1362
        %v1463 = vunpack.c.h.b16 %v1362
        %v1464 = vunpack.c.l.b16 %v1363
        %v1465 = vunpack.c.h.b16 %v1363
        %v1466 = vunpack.c.l.b16 %v1364
        %v1467 = vunpack.c.h.b16 %v1364
        %v1468 = vunpack.c.l.b16 %v1365
        %v1469 = vunpack.c.h.b16 %v1365
        %v1470 = vunpack.c.l.b16 %v1366
        %v1471 = vunpack.c.h.b16 %v1366
        %v1472 = vunpack.c.l.b16 %v1367
        %v1473 = vunpack.c.h.b16 %v1367
        %v1474 = vunpack.c.l.b16 %v1368
        %v1475 = vunpack.c.h.b16 %v1368
        %v1476 = vunpack.c.l.b16 %v1369
        %v1477 = vunpack.c.h.b16 %v1369
        %v1478 = vunpack.c.l.b16 %v1370
        %v1479 = vunpack.c.h.b16 %v1370
        %v1480 = vunpack.c.l.b16 %v1371
        %v1481 = vunpack.c.h.b16 %v1371
        %v1482 = vunpack.c.l.b16 %v1372
        %v1483 = vunpack.c.h.b16 %v1372
        %v1484 = vunpack.c.l.b16 %v1373
        %v1485 = vunpack.c.h.b16 %v1373
        %v1486 = vunpack.c.l.b16 %v1374
        %v1487 = vunpack.c.h.b16 %v1374
        %v1488 = vunpack.c.l.b16 %v1375
        %v1489 = vunpack.c.h.b16 %v1375
        %v1490 = vunpack.c.l.b16 %v1376
        %v1491 = vunpack.c.h.b16 %v1376
        %v1492 = vunpack.c.l.b16 %v1377
        %v1493 = vunpack.c.h.b16 %v1377
        %v1494 = vunpack.c.l.b16 %v1378
        %v1495 = vunpack.c.h.b16 %v1378
        %v1496 = vunpack.c.l.b16 %v1379
        %v1497 = vunpack.c.h.b16 %v1379
        %v1498 = vunpack.c.l.b16 %v1380
        %v1499 = vunpack.c.h.b16 %v1380
        %v1500 = vunpack.c.l.b16 %v1381
        %v1501 = vunpack.c.h.b16 %v1381
        %v1502 = vunpack.c.l.b16 %v1382
        %v1503 = vunpack.c.h.b16 %v1382
        %v1504 = vunpack.c.l.b16 %v1383
        %v1505 = vunpack.c.h.b16 %v1383
        %v1506 = vunpack.c.l.b16 %v1384
        %v1507 = vunpack.c.h.b16 %v1384
        %v1508 = vunpack.c.l.b16 %v1385
        %v1509 = vunpack.c.h.b16 %v1385
        %v1510 = vunpack.c.l.b16 %v1386
        %v1511 = vunpack.c.h.b16 %v1386
        %v1512 = vunpack.c.l.b16 %v1387
        %v1513 = vunpack.c.h.b16 %v1387
        %v1514 = vunpack.c.l.b16 %v1388
        %v1515 = vunpack.c.h.b16 %v1388
        %v1516 = vunpack.c.l.b16 %v1389
        %v1517 = vunpack.c.h.b16 %v1389
        %v1518 = vunpack.c.l.b16 %v1390
        %v1519 = vunpack.c.h.b16 %v1390
        %v1520 = vunpack.c.l.b16 %v1391
        %v1521 = vunpack.c.h.b16 %v1391
        %v1522 = vunpack.c.l.b16 %v1392
        %v1523 = vunpack.c.h.b16 %v1392
        %v1524 = vunpack.c.l.b16 %v1393
        %v1525 = vunpack.c.h.b16 %v1393
        %v1526 = vunpack.c.l.b16 %v1394
        %v1527 = vunpack.c.h.b16 %v1394
        %v1528 = vunpack.c.l.b16 %v1395
        %v1529 = vunpack.c.h.b16 %v1395
        %v1530 = vunpack.c.l.b16 %v1396
        %v1531 = vunpack.c.h.b16 %v1396
        %v1532 = vunpack.c.l.b16 %v1397
        %v1533 = vunpack.c.h.b16 %v1397
        %v1534 = vunpack.c.l.b16 %v1398
        %v1535 = vunpack.c.h.b16 %v1398
        %v1536 = vunpack.c.l.b16 %v1399
        %v1537 = vunpack.c.h.b16 %v1399
        %v1538 = vunpack.c.l.b16 %v1400
        %v1539 = vunpack.c.h.b16 %v1400
        %v1540 = vunpack.c.l.b16 %v1401
        %v1541 = vunpack.c.h.b16 %v1401
        %v1542 = vunpack.c.l.b16 %v1402
        %v1543 = vunpack.c.h.b16 %v1402
        %v1544 = vunpack.c.l.b16 %v1403
        %v1545 = vunpack.c.h.b16 %v1403
        %v1546 = vunpack.c.l.b16 %v1404
        %v1547 = vunpack.c.h.b16 %v1404
        %v1548 = vunpack.c.l.b16 %v1405
        %v1549 = vunpack.c.h.b16 %v1405
        %v1550 = vpack.c.b16 %v1456, %v1454
        %v1551 = vpack.c.b16 %v1457, %v1455
        %v1552 = vpack.c.b16 %v1460, %v1458
        %v1553 = vpack.c.b16 %v1461, %v1459
        %v1554 = vpack.c.b16 %v1464, %v1462
        %v1555 = vpack.c.b16 %v1465, %v1463
        %v1556 = vpack.c.b16 %v1468, %v1466
        %v1557 = vpack.c.b16 %v1469, %v1467
        %v1558 = vpack.c.b16 %v1472, %v1470
        %v1559 = vpack.c.b16 %v1473, %v1471
        %v1560 = vpack.c.b16 %v1476, %v1474
        %v1561 = vpack.c.b16 %v1477, %v1475
        %v1562 = vpack.c.b16 %v1480, %v1478
        %v1563 = vpack.c.b16 %v1481, %v1479
        %v1564 = vpack.c.b16 %v1484, %v1482
        %v1565 = vpack.c.b16 %v1485, %v1483
        %v1566 = vpack.c.b16 %v1488, %v1486
        %v1567 = vpack.c.b16 %v1489, %v1487
        %v1568 = vpack.c.b16 %v1492, %v1490
        %v1569 = vpack.c.b16 %v1493, %v1491
        %v1570 = vpack.c.b16 %v1496, %v1494
        %v1571 = vpack.c.b16 %v1497, %v1495
        %v1572 = vpack.c.b16 %v1500, %v1498
        %v1573 = vpack.c.b16 %v1501, %v1499
        %v1574 = vpack.c.b16 %v1504, %v1502
        %v1575 = vpack.c.b16 %v1505, %v1503
        %v1576 = vpack.c.b16 %v1508, %v1506
        %v1577 = vpack.c.b16 %v1509, %v1507
        %v1578 = vpack.c.b16 %v1512, %v1510
        %v1579 = vpack.c.b16 %v1513, %v1511
        %v1580 = vpack.c.b16 %v1516, %v1514
        %v1581 = vpack.c.b16 %v1517, %v1515
        %v1582 = vpack.c.b16 %v1520, %v1518
        %v1583 = vpack.c.b16 %v1521, %v1519
        %v1584 = vpack.c.b16 %v1524, %v1522
        %v1585 = vpack.c.b16 %v1525, %v1523
        %v1586 = vpack.c.b16 %v1528, %v1526
        %v1587 = vpack.c.b16 %v1529, %v1527
        %v1588 = vpack.c.b16 %v1532, %v1530
        %v1589 = vpack.c.b16 %v1533, %v1531
        %v1590 = vpack.c.b16 %v1536, %v1534
        %v1591 = vpack.c.b16 %v1537, %v1535
        %v1592 = vpack.c.b16 %v1540, %v1538
        %v1593 = vpack.c.b16 %v1541, %v1539
        %v1594 = vpack.c.b16 %v1544, %v1542
        %v1595 = vpack.c.b16 %v1545, %v1543
        %v1596 = vpack.c.b16 %v1548, %v1546
        %v1597 = vpack.c.b16 %v1549, %v1547
        %1646 = vmatprep.subr.bf16.mxu0 %v1551
        %1647 = vmatpush1.bf16.msra.mxu0 %v1550
        %1648 = vmatprep.subr.bf16.mxu0 %v1553
        %1649 = vmatpush1.bf16.msra.mxu0 %v1552
        %1650 = vmatprep.subr.bf16.mxu0 %v1555
        %1651 = vmatpush1.bf16.msra.mxu0 %v1554
        %1652 = vmatprep.subr.bf16.mxu0 %v1557
        %1653 = vmatpush1.bf16.msra.mxu0 %v1556
        %1654 = vmatprep.subr.bf16.mxu0 %v1559
        %1655 = vmatpush1.bf16.msra.mxu0 %v1558
        %1656 = vmatprep.subr.bf16.mxu0 %v1561
        %1657 = vmatpush1.bf16.msra.mxu0 %v1560
        %1658 = vmatprep.subr.bf16.mxu0 %v1563
        %1659 = vmatpush1.bf16.msra.mxu0 %v1562
        %1660 = vmatprep.subr.bf16.mxu0 %v1565
        %1661 = vmatpush1.bf16.msra.mxu0 %v1564
        %1662 = vmatprep.subr.bf16.mxu0 %v1567
        %1663 = vmatpush1.bf16.msra.mxu0 %v1566
        %1664 = vmatprep.subr.bf16.mxu0 %v1569
        %1665 = vmatpush1.bf16.msra.mxu0 %v1568
        %1666 = vmatprep.subr.bf16.mxu0 %v1571
        %1667 = vmatpush1.bf16.msra.mxu0 %v1570
        %1668 = vmatprep.subr.bf16.mxu0 %v1573
        %1669 = vmatpush1.bf16.msra.mxu0 %v1572
        %1670 = vmatprep.subr.bf16.mxu0 %v1575
        %1671 = vmatpush1.bf16.msra.mxu0 %v1574
        %1672 = vmatprep.subr.bf16.mxu0 %v1577
        %1673 = vmatpush1.bf16.msra.mxu0 %v1576
        %1674 = vmatprep.subr.bf16.mxu0 %v1579
        %1675 = vmatpush1.bf16.msra.mxu0 %v1578
        %1676 = vmatprep.subr.bf16.mxu0 %v1581
        %1677 = vmatpush1.bf16.msra.mxu0 %v1580
        %1678 = vmatprep.mubr.bf16.mxu0 %v271
        %1679 = vmatmul.mubr.bf16.gmra.mrb[0].mxu0 %v270
        %v1680 = vpop.f32.mrb[0].mxu0
        %v1681 = vadd.f32 0.0, %v1680
        %v1682 = vpop.f32.mrb[0].mxu0
        %v1683 = vadd.f32 0.0, %v1682
        %v1684 = vpop.f32.mrb[0].mxu0
        %v1685 = vadd.f32 0.0, %v1684
        %v1686 = vpop.f32.mrb[0].mxu0
        %v1687 = vadd.f32 0.0, %v1686
        %1688 = vdwg.mxu0
        %1689 = vmatprep.subr.bf16.mxu0 %v1583
        %1690 = vmatpush1.bf16.msra.mxu0 %v1582
        %1691 = vmatprep.subr.bf16.mxu0 %v1585
        %1692 = vmatpush1.bf16.msra.mxu0 %v1584
        %1693 = vmatprep.subr.bf16.mxu0 %v1587
        %1694 = vmatpush1.bf16.msra.mxu0 %v1586
        %1695 = vmatprep.subr.bf16.mxu0 %v1589
        %1696 = vmatpush1.bf16.msra.mxu0 %v1588
        %1697 = vmatprep.subr.bf16.mxu0 %v1591
        %1698 = vmatpush1.bf16.msra.mxu0 %v1590
        %1699 = vmatprep.subr.bf16.mxu0 %v1593
        %1700 = vmatpush1.bf16.msra.mxu0 %v1592
        %1701 = vmatprep.subr.bf16.mxu0 %v1595
        %1702 = vmatpush1.bf16.msra.mxu0 %v1594
        %1703 = vmatprep.subr.bf16.mxu0 %v1597
        %1704 = vmatpush1.bf16.msra.mxu0 %v1596
        %1705 = vmatprep.subr.bf16.mxu0 0
        %1706 = vmatpush1.bf16.msra.mxu0 0
        %1707 = vmatprep.subr.bf16.mxu0 0
        %1708 = vmatpush1.bf16.msra.mxu0 0
        %1709 = vmatprep.subr.bf16.mxu0 0
        %1710 = vmatpush1.bf16.msra.mxu0 0
        %1711 = vmatprep.subr.bf16.mxu0 0
        %1712 = vmatpush1.bf16.msra.mxu0 0
        %1713 = vmatprep.subr.bf16.mxu0 0
        %1714 = vmatpush1.bf16.msra.mxu0 0
        %1715 = vmatprep.subr.bf16.mxu0 0
        %1716 = vmatpush1.bf16.msra.mxu0 0
        %1717 = vmatprep.subr.bf16.mxu0 0
        %1718 = vmatpush1.bf16.msra.mxu0 0
        %1719 = vmatprep.subr.bf16.mxu0 0
        %1720 = vmatpush1.bf16.msra.mxu0 0
        %1721 = vmatprep.mubr.bf16.mxu0 0
        %1722 = vmatmul.mubr.bf16.gmra.mrb[0].mxu0 %v272
        %v1723 = vpop.f32.mrb[0].mxu0
        %v1724 = vadd.f32 %v1681, %v1723
        %v1725 = vpop.f32.mrb[0].mxu0
        %v1726 = vadd.f32 %v1683, %v1725
        %v1727 = vpop.f32.mrb[0].mxu0
        %v1728 = vadd.f32 %v1685, %v1727
        %v1729 = vpop.f32.mrb[0].mxu0
        %v1730 = vadd.f32 %v1687, %v1729
        %1731 = vdwg.mxu0
        %v1732 = vmax.f32 %v1354, %v1724
        %v1733 = vmax.f32 %v1355, %v1726
        %v1734 = vmax.f32 %v1356, %v1728
        %v1735 = vmax.f32 %v1357, %v1730
        %v1736 = vld [vmem:[#allocation4] sm:$0x3]
        %v1738 = vlaneseq
        %v1739 = vshrl.u32 %v1738, 7
        %v1740 = vsub.s32 0, %v1739
        %v1741 = vrot.slane %v1736, %v1740
        %v1742 = vlaneseq
        %v1743 = vshrl.u32 %v1742, 7
        %v1744 = vsub.s32 1, %v1743
        %v1745 = vrot.slane %v1736, %v1744
        %v1748 = vadd.f32 %v1732, %v1741
        %v1749 = vadd.f32 %v1733, %v1745
        %v1750 = vadd.f32 %v1734, %v1741
        %v1751 = vadd.f32 %v1735, %v1745
        %v1752 = vmax.f32 %v1748, 0.0
        %v1753 = vmax.f32 %v1749, 0.0
        %v1754 = vmax.f32 %v1750, 0.0
        %v1755 = vmax.f32 %v1751, 0.0
        %v1756 = vpack.c.bf16 %v1754, %v1752
        %v1757 = vpack.c.bf16 %v1755, %v1753
        %v1760 = vunpack.c.l.b16 %v1756
        %v1761 = vunpack.c.l.b16 %v1757
        %v1762 = vunpack.c.h.b16 %v1756
        %v1763 = vunpack.c.h.b16 %v1757
        %v1764 = vpack.c.b16 %v1761, %v1760
        %v1765 = vpack.c.b16 %v1763, %v1762
        %1768 = vst [vmem:[%s205] sm:$0xff] %v1764
        %1769 = vst [vmem:[%s205 + $0x8] sm:$0xff] %v1765
        %s1770 = smul.u32 2, %s16
        %p1771 = scmp.lt.s32.totalorder %s1770, 3
        %s1772 = scalar_select %p1771, %s1770, 3
        %s1773 = smul.addr %s1772, 2
        %s1774 = smul.addr %s1773, 4
        %s1775 = scalar_lea.vmem %s3, %s1774
        // Predicated region
        $region41: #{forward.3} parent=31 // pred_check
          %p1776 = pneg %p102
        $region42: #{forward.3} parent=31 // pred_check_branch
          %1778 = sbr.rel (%p1776) target = $region44
        $region43: #{forward.3} parent=31 // pred_region
          %s1779 = smul.u32 2, %s16
        $region44: #{forward.3} parent=31 // pred_fallthru
          _
      $region32: #{forward.3} parent=5 // pred_fallthru
        _
      %p1780 = scmp.le.s32.totalorder 2, %s11
      // Predicated region
      $region45: #{forward.3} parent=5 // pred_check
        %p1781 = pneg %p1780
      $region46: #{forward.3} parent=5 // pred_check_branch
        %1783 = sbr.rel (%p1781) target = $region48
      $region47: #{forward.3} parent=5 // pred_region
        %s1784 = ssub.s32 %s11, 2
        // Predicated region
        $region49: #{forward.3} parent=47 // pred_check
          %p1785 = pneg %p108
        $region50: #{forward.3} parent=47 // pred_check_branch
          %1787 = sbr.rel (%p1785) target = $region52
        $region51: #{forward.3} parent=47 // pred_region
          %s1788 = smul.u32 2, %s17
          %p1789 = scmp.lt.s32.totalorder %s1788, 3
          %s1790 = scalar_select %p1789, %s1788, 3
          %s1791 = smul.addr %s1790, 2
          %s1792 = smul.addr %s1791, 4
          %s1793 = scalar_lea.vmem %s3, %s1792
        $region52: #{forward.3} parent=47 // pred_fallthru
          _
      $region48: #{forward.3} parent=5 // pred_fallthru
        _
    $region6: #{forward.3} parent=1 // loop_footer
      %s15 = sadd.s32 1, %s11
    $region7: #{forward.3} parent=1 // loop_footer_branch
      %10 = sbr.rel target = $region3
    $region8: #{forward.3} parent=1 // loop_exit
      _
    %1794 = vsyncpa [#allocation3], 1
    %s1795 = scalar_lea.sflag [#allocation3], 1
    %1796 = vsyncpa %s1795, 1
    %1797 = vsyncpa [#allocation5], 1

// kernel: forward.5
$region0: #{forward.5}
  #allocation0 [shape = 'u32[]', space=smem, size = 0x4, offset = 0x4, fixed_abs, tag = 'smem constant byte address 0x4 - core index']
  #allocation1 [shape = 'u32[144,128]{1,0:T(1,128)}', space=vmem, size = 0x12000, scoped, tag = 'internal scratch']
  %s0 = inlined_call_operand.vmem [shape: bf16[8,1536], index: 0, kind: input, shape index: {}]
  %s1 = inlined_call_operand.vmem [shape: bf16[1536,128], index: 1, kind: input, shape index: {}]
  %s2 = inlined_call_operand.vmem [shape: f32[1,128], index: 2, kind: input, shape index: {}]
  %s3 = inlined_call_operand.vmem [shape: bf16[128,128], index: 3, kind: input, shape index: {}]
  %s4 = inlined_call_operand.vmem [shape: f32[1,128], index: 4, kind: input, shape index: {}]
  %s5 = inlined_call_operand.vmem [shape: f32[8,128], index: 5, kind: output, shape index: {}]
  %s6 = sld [smem:[#allocation0]]
  $region30: #{forward.5} parent=0
    _
  %s8 = ssub.s32 1, %s6
  %s9 = scalar_select 0, %s8, %s6
  // Predicated region
  $region2: #{forward.5} parent=0 // pred_check
    _
  $region3: #{forward.5} parent=0 // pred_check_branch
    %11 = sbr.rel (0) target = $region5
  $region4: #{forward.5} parent=0 // pred_region
    _
  $region5: #{forward.5} parent=0 // pred_fallthru
    _
  // Predicated region
  $region6: #{forward.5} parent=0 // pred_check
    _
  $region7: #{forward.5} parent=0 // pred_check_branch
    %13 = sbr.rel (0) target = $region9
  $region8: #{forward.5} parent=0 // pred_region
    _
  $region9: #{forward.5} parent=0 // pred_fallthru
    _
  // Predicated region
  $region10: #{forward.5} parent=0 // pred_check
    _
  $region11: #{forward.5} parent=0 // pred_check_branch
    %15 = sbr.rel (0) target = $region13
  $region12: #{forward.5} parent=0 // pred_region
    _
  $region13: #{forward.5} parent=0 // pred_fallthru
    _
  // Predicated region
  $region14: #{forward.5} parent=0 // pred_check
    _
  $region15: #{forward.5} parent=0 // pred_check_branch
    %17 = sbr.rel (0) target = $region17
  $region16: #{forward.5} parent=0 // pred_region
    _
  $region17: #{forward.5} parent=0 // pred_fallthru
    _
  // Predicated region
  $region18: #{forward.5} parent=0 // pred_check
    _
  $region19: #{forward.5} parent=0 // pred_check_branch
    %19 = sbr.rel (0) target = $region21
  $region20: #{forward.5} parent=0 // pred_region
    _
  $region21: #{forward.5} parent=0 // pred_fallthru
    _
  %v21 = vld [vmem:[%s0] sm:$0xff]
  %v22 = vld [vmem:[%s0 + $0x8] sm:$0xff]
  %v23 = vld [vmem:[%s0 + $0x10] sm:$0xff]
  %v24 = vld [vmem:[%s0 + $0x18] sm:$0xff]
  %v25 = vld [vmem:[%s0 + $0x20] sm:$0xff]
  %v26 = vld [vmem:[%s0 + $0x28] sm:$0xff]
  %v27 = vld [vmem:[%s1] sm:$0xf]
  %v28 = vld [vmem:[%s1 + $0x4] sm:$0xf]
  %v29 = vld [vmem:[%s1 + $0x8] sm:$0xf]
  %v30 = vld [vmem:[%s1 + $0xc] sm:$0xf]
  %v31 = vld [vmem:[%s1 + $0x10] sm:$0xf]
  %v32 = vld [vmem:[%s1 + $0x14] sm:$0xf]
  %v33 = vld [vmem:[%s1 + $0x18] sm:$0xf]
  %v34 = vld [vmem:[%s1 + $0x1c] sm:$0xf]
  %v35 = vld [vmem:[%s1 + $0x20] sm:$0xf]
  %v36 = vld [vmem:[%s1 + $0x24] sm:$0xf]
  %v37 = vld [vmem:[%s1 + $0x28] sm:$0xf]
  %v38 = vld [vmem:[%s1 + $0x2c] sm:$0xf]
  %v39 = vld [vmem:[%s1 + $0x30] sm:$0xf]
  %v40 = vld [vmem:[%s1 + $0x34] sm:$0xf]
  %v41 = vld [vmem:[%s1 + $0x38] sm:$0xf]
  %v42 = vld [vmem:[%s1 + $0x3c] sm:$0xf]
  %v43 = vld [vmem:[%s1 + $0x40] sm:$0xf]
  %v44 = vld [vmem:[%s1 + $0x44] sm:$0xf]
  %v45 = vld [vmem:[%s1 + $0x48] sm:$0xf]
  %v46 = vld [vmem:[%s1 + $0x4c] sm:$0xf]
  %v47 = vld [vmem:[%s1 + $0x50] sm:$0xf]
  %v48 = vld [vmem:[%s1 + $0x54] sm:$0xf]
  %v49 = vld [vmem:[%s1 + $0x58] sm:$0xf]
  %v50 = vld [vmem:[%s1 + $0x5c] sm:$0xf]
  %v51 = vld [vmem:[%s1 + $0x60] sm:$0xf]
  %v52 = vld [vmem:[%s1 + $0x64] sm:$0xf]
  %v53 = vld [vmem:[%s1 + $0x68] sm:$0xf]
  %v54 = vld [vmem:[%s1 + $0x6c] sm:$0xf]
  %v55 = vld [vmem:[%s1 + $0x70] sm:$0xf]
  %v56 = vld [vmem:[%s1 + $0x74] sm:$0xf]
  %v57 = vld [vmem:[%s1 + $0x78] sm:$0xf]
  %v58 = vld [vmem:[%s1 + $0x7c] sm:$0xf]
  %v59 = vld [vmem:[%s1 + $0x80] sm:$0xf]
  %v60 = vld [vmem:[%s1 + $0x84] sm:$0xf]
  %v61 = vld [vmem:[%s1 + $0x88] sm:$0xf]
  %v62 = vld [vmem:[%s1 + $0x8c] sm:$0xf]
  %v63 = vld [vmem:[%s1 + $0x90] sm:$0xf]
  %v64 = vld [vmem:[%s1 + $0x94] sm:$0xf]
  %v65 = vld [vmem:[%s1 + $0x98] sm:$0xf]
  %v66 = vld [vmem:[%s1 + $0x9c] sm:$0xf]
  %v67 = vld [vmem:[%s1 + $0xa0] sm:$0xf]
  %v68 = vld [vmem:[%s1 + $0xa4] sm:$0xf]
  %v69 = vld [vmem:[%s1 + $0xa8] sm:$0xf]
  %v70 = vld [vmem:[%s1 + $0xac] sm:$0xf]
  %v71 = vld [vmem:[%s1 + $0xb0] sm:$0xf]
  %v72 = vld [vmem:[%s1 + $0xb4] sm:$0xf]
  %v73 = vld [vmem:[%s1 + $0xb8] sm:$0xf]
  %v74 = vld [vmem:[%s1 + $0xbc] sm:$0xf]
  %v75 = vld [vmem:[%s1 + $0xc0] sm:$0xf]
  %v76 = vld [vmem:[%s1 + $0xc4] sm:$0xf]
  %v77 = vld [vmem:[%s1 + $0xc8] sm:$0xf]
  %v78 = vld [vmem:[%s1 + $0xcc] sm:$0xf]
  %v79 = vld [vmem:[%s1 + $0xd0] sm:$0xf]
  %v80 = vld [vmem:[%s1 + $0xd4] sm:$0xf]
  %v81 = vld [vmem:[%s1 + $0xd8] sm:$0xf]
  %v82 = vld [vmem:[%s1 + $0xdc] sm:$0xf]
  %v83 = vld [vmem:[%s1 + $0xe0] sm:$0xf]
  %v84 = vld [vmem:[%s1 + $0xe4] sm:$0xf]
  %v85 = vld [vmem:[%s1 + $0xe8] sm:$0xf]
  %v86 = vld [vmem:[%s1 + $0xec] sm:$0xf]
  %v87 = vld [vmem:[%s1 + $0xf0] sm:$0xf]
  %v88 = vld [vmem:[%s1 + $0xf4] sm:$0xf]
  %v89 = vld [vmem:[%s1 + $0xf8] sm:$0xf]
  %v90 = vld [vmem:[%s1 + $0xfc] sm:$0xf]
  %v91 = vld [vmem:[%s1 + $0x100] sm:$0xf]
  %v92 = vld [vmem:[%s1 + $0x104] sm:$0xf]
  %v93 = vld [vmem:[%s1 + $0x108] sm:$0xf]
  %v94 = vld [vmem:[%s1 + $0x10c] sm:$0xf]
  %v95 = vld [vmem:[%s1 + $0x110] sm:$0xf]
  %v96 = vld [vmem:[%s1 + $0x114] sm:$0xf]
  %v97 = vld [vmem:[%s1 + $0x118] sm:$0xf]
  %v98 = vld [vmem:[%s1 + $0x11c] sm:$0xf]
  %v99 = vld [vmem:[%s1 + $0x120] sm:$0xf]
  %v100 = vld [vmem:[%s1 + $0x124] sm:$0xf]
  %v101 = vld [vmem:[%s1 + $0x128] sm:$0xf]
  %v102 = vld [vmem:[%s1 + $0x12c] sm:$0xf]
  %v103 = vld [vmem:[%s1 + $0x130] sm:$0xf]
  %v104 = vld [vmem:[%s1 + $0x134] sm:$0xf]
  %v105 = vld [vmem:[%s1 + $0x138] sm:$0xf]
  %v106 = vld [vmem:[%s1 + $0x13c] sm:$0xf]
  %v107 = vld [vmem:[%s1 + $0x140] sm:$0xf]
  %v108 = vld [vmem:[%s1 + $0x144] sm:$0xf]
  %v109 = vld [vmem:[%s1 + $0x148] sm:$0xf]
  %v110 = vld [vmem:[%s1 + $0x14c] sm:$0xf]
  %v111 = vld [vmem:[%s1 + $0x150] sm:$0xf]
  %v112 = vld [vmem:[%s1 + $0x154] sm:$0xf]
  %v113 = vld [vmem:[%s1 + $0x158] sm:$0xf]
  %v114 = vld [vmem:[%s1 + $0x15c] sm:$0xf]
  %v115 = vld [vmem:[%s1 + $0x160] sm:$0xf]
  %v116 = vld [vmem:[%s1 + $0x164] sm:$0xf]
  %v117 = vld [vmem:[%s1 + $0x168] sm:$0xf]
  %v118 = vld [vmem:[%s1 + $0x16c] sm:$0xf]
  %v119 = vld [vmem:[%s1 + $0x170] sm:$0xf]
  %v120 = vld [vmem:[%s1 + $0x174] sm:$0xf]
  %v121 = vld [vmem:[%s1 + $0x178] sm:$0xf]
  %v122 = vld [vmem:[%s1 + $0x17c] sm:$0xf]
  %v123 = vld [vmem:[%s1 + $0x180] sm:$0xf]
  %v124 = vld [vmem:[%s1 + $0x184] sm:$0xf]
  %v125 = vld [vmem:[%s1 + $0x188] sm:$0xf]
  %v126 = vld [vmem:[%s1 + $0x18c] sm:$0xf]
  %v127 = vld [vmem:[%s1 + $0x190] sm:$0xf]
  %v128 = vld [vmem:[%s1 + $0x194] sm:$0xf]
  %v129 = vld [vmem:[%s1 + $0x198] sm:$0xf]
  %v130 = vld [vmem:[%s1 + $0x19c] sm:$0xf]
  %v131 = vld [vmem:[%s1 + $0x1a0] sm:$0xf]
  %v132 = vld [vmem:[%s1 + $0x1a4] sm:$0xf]
  %v133 = vld [vmem:[%s1 + $0x1a8] sm:$0xf]
  %v134 = vld [vmem:[%s1 + $0x1ac] sm:$0xf]
  %v135 = vld [vmem:[%s1 + $0x1b0] sm:$0xf]
  %v136 = vld [vmem:[%s1 + $0x1b4] sm:$0xf]
  %v137 = vld [vmem:[%s1 + $0x1b8] sm:$0xf]
  %v138 = vld [vmem:[%s1 + $0x1bc] sm:$0xf]
  %v139 = vld [vmem:[%s1 + $0x1c0] sm:$0xf]
  %v140 = vld [vmem:[%s1 + $0x1c4] sm:$0xf]
  %v141 = vld [vmem:[%s1 + $0x1c8] sm:$0xf]
  %v142 = vld [vmem:[%s1 + $0x1cc] sm:$0xf]
  %v143 = vld [vmem:[%s1 + $0x1d0] sm:$0xf]
  %v144 = vld [vmem:[%s1 + $0x1d4] sm:$0xf]
  %v145 = vld [vmem:[%s1 + $0x1d8] sm:$0xf]
  %v146 = vld [vmem:[%s1 + $0x1dc] sm:$0xf]
  %v147 = vld [vmem:[%s1 + $0x1e0] sm:$0xf]
  %v148 = vld [vmem:[%s1 + $0x1e4] sm:$0xf]
  %v149 = vld [vmem:[%s1 + $0x1e8] sm:$0xf]
  %v150 = vld [vmem:[%s1 + $0x1ec] sm:$0xf]
  %v151 = vld [vmem:[%s1 + $0x1f0] sm:$0xf]
  %v152 = vld [vmem:[%s1 + $0x1f4] sm:$0xf]
  %v153 = vld [vmem:[%s1 + $0x1f8] sm:$0xf]
  %v154 = vld [vmem:[%s1 + $0x1fc] sm:$0xf]
  %v155 = vld [vmem:[%s1 + $0x200] sm:$0xf]
  %v156 = vld [vmem:[%s1 + $0x204] sm:$0xf]
  %v157 = vld [vmem:[%s1 + $0x208] sm:$0xf]
  %v158 = vld [vmem:[%s1 + $0x20c] sm:$0xf]
  %v159 = vld [vmem:[%s1 + $0x210] sm:$0xf]
  %v160 = vld [vmem:[%s1 + $0x214] sm:$0xf]
  %v161 = vld [vmem:[%s1 + $0x218] sm:$0xf]
  %v162 = vld [vmem:[%s1 + $0x21c] sm:$0xf]
  %v163 = vld [vmem:[%s1 + $0x220] sm:$0xf]
  %v164 = vld [vmem:[%s1 + $0x224] sm:$0xf]
  %v165 = vld [vmem:[%s1 + $0x228] sm:$0xf]
  %v166 = vld [vmem:[%s1 + $0x22c] sm:$0xf]
  %v167 = vld [vmem:[%s1 + $0x230] sm:$0xf]
  %v168 = vld [vmem:[%s1 + $0x234] sm:$0xf]
  %v169 = vld [vmem:[%s1 + $0x238] sm:$0xf]
  %v170 = vld [vmem:[%s1 + $0x23c] sm:$0xf]
  %v171 = vld [vmem:[%s1 + $0x240] sm:$0xf]
  %v172 = vld [vmem:[%s1 + $0x244] sm:$0xf]
  %v173 = vld [vmem:[%s1 + $0x248] sm:$0xf]
  %v174 = vld [vmem:[%s1 + $0x24c] sm:$0xf]
  %v175 = vld [vmem:[%s1 + $0x250] sm:$0xf]
  %v176 = vld [vmem:[%s1 + $0x254] sm:$0xf]
  %v177 = vld [vmem:[%s1 + $0x258] sm:$0xf]
  %v178 = vld [vmem:[%s1 + $0x25c] sm:$0xf]
  %v179 = vld [vmem:[%s1 + $0x260] sm:$0xf]
  %v180 = vld [vmem:[%s1 + $0x264] sm:$0xf]
  %v181 = vld [vmem:[%s1 + $0x268] sm:$0xf]
  %v182 = vld [vmem:[%s1 + $0x26c] sm:$0xf]
  %v183 = vld [vmem:[%s1 + $0x270] sm:$0xf]
  %v184 = vld [vmem:[%s1 + $0x274] sm:$0xf]
  %v185 = vld [vmem:[%s1 + $0x278] sm:$0xf]
  %v186 = vld [vmem:[%s1 + $0x27c] sm:$0xf]
  %v187 = vld [vmem:[%s1 + $0x280] sm:$0xf]
  %v188 = vld [vmem:[%s1 + $0x284] sm:$0xf]
  %v189 = vld [vmem:[%s1 + $0x288] sm:$0xf]
  %v190 = vld [vmem:[%s1 + $0x28c] sm:$0xf]
  %v191 = vld [vmem:[%s1 + $0x290] sm:$0xf]
  %v192 = vld [vmem:[%s1 + $0x294] sm:$0xf]
  %v193 = vld [vmem:[%s1 + $0x298] sm:$0xf]
  %v194 = vld [vmem:[%s1 + $0x29c] sm:$0xf]
  %v195 = vld [vmem:[%s1 + $0x2a0] sm:$0xf]
  %v196 = vld [vmem:[%s1 + $0x2a4] sm:$0xf]
  %v197 = vld [vmem:[%s1 + $0x2a8] sm:$0xf]
  %v198 = vld [vmem:[%s1 + $0x2ac] sm:$0xf]
  %v199 = vld [vmem:[%s1 + $0x2b0] sm:$0xf]
  %v200 = vld [vmem:[%s1 + $0x2b4] sm:$0xf]
  %v201 = vld [vmem:[%s1 + $0x2b8] sm:$0xf]
  %v202 = vld [vmem:[%s1 + $0x2bc] sm:$0xf]
  %v203 = vld [vmem:[%s1 + $0x2c0] sm:$0xf]
  %v204 = vld [vmem:[%s1 + $0x2c4] sm:$0xf]
  %v205 = vld [vmem:[%s1 + $0x2c8] sm:$0xf]
  %v206 = vld [vmem:[%s1 + $0x2cc] sm:$0xf]
  %v207 = vld [vmem:[%s1 + $0x2d0] sm:$0xf]
  %v208 = vld [vmem:[%s1 + $0x2d4] sm:$0xf]
  %v209 = vld [vmem:[%s1 + $0x2d8] sm:$0xf]
  %v210 = vld [vmem:[%s1 + $0x2dc] sm:$0xf]
  %v211 = vld [vmem:[%s1 + $0x2e0] sm:$0xf]
  %v212 = vld [vmem:[%s1 + $0x2e4] sm:$0xf]
  %v213 = vld [vmem:[%s1 + $0x2e8] sm:$0xf]
  %v214 = vld [vmem:[%s1 + $0x2ec] sm:$0xf]
  %v215 = vld [vmem:[%s1 + $0x2f0] sm:$0xf]
  %v216 = vld [vmem:[%s1 + $0x2f4] sm:$0xf]
  %v217 = vld [vmem:[%s1 + $0x2f8] sm:$0xf]
  %v218 = vld [vmem:[%s1 + $0x2fc] sm:$0xf]
  %v219 = vld [vmem:[%s2] sm:$0x1]
  %v221 = vlaneseq
  %v222 = vshrl.u32 %v221, 7
  %v223 = vsub.s32 0, %v222
  %v224 = vrot.slane %v219, %v223
  %v232 = vunpack.c.l.b16 %v21
  %v233 = vunpack.c.h.b16 %v21
  %v234 = vunpack.c.l.b16 %v22
  %v235 = vunpack.c.h.b16 %v22
  %v236 = vunpack.c.l.b16 %v23
  %v237 = vunpack.c.h.b16 %v23
  %v238 = vunpack.c.l.b16 %v24
  %v239 = vunpack.c.h.b16 %v24
  %v240 = vunpack.c.l.b16 %v25
  %v241 = vunpack.c.h.b16 %v25
  %v242 = vunpack.c.l.b16 %v26
  %v243 = vunpack.c.h.b16 %v26
  %v244 = vpack.c.b16 %v232, %v232
  %v245 = vpack.c.b16 %v233, %v233
  %v246 = vpack.c.b16 %v234, %v234
  %v247 = vpack.c.b16 %v235, %v235
  %v248 = vpack.c.b16 %v236, %v236
  %v249 = vpack.c.b16 %v237, %v237
  %v250 = vpack.c.b16 %v238, %v238
  %v251 = vpack.c.b16 %v239, %v239
  %v252 = vpack.c.b16 %v240, %v240
  %v253 = vpack.c.b16 %v241, %v241
  %v254 = vpack.c.b16 %v242, %v242
  %v255 = vpack.c.b16 %v243, %v243
  %v460 = vunpack.c.l.b16 %v27
  %v461 = vunpack.c.l.b16 %v28
  %v462 = vunpack.c.l.b16 %v29
  %v463 = vunpack.c.l.b16 %v30
  %v464 = vunpack.c.l.b16 %v31
  %v465 = vunpack.c.l.b16 %v32
  %v466 = vunpack.c.l.b16 %v33
  %v467 = vunpack.c.l.b16 %v34
  %v468 = vunpack.c.l.b16 %v35
  %v469 = vunpack.c.l.b16 %v36
  %v470 = vunpack.c.l.b16 %v37
  %v471 = vunpack.c.l.b16 %v38
  %v472 = vunpack.c.l.b16 %v39
  %v473 = vunpack.c.l.b16 %v40
  %v474 = vunpack.c.l.b16 %v41
  %v475 = vunpack.c.l.b16 %v42
  %v476 = vunpack.c.l.b16 %v43
  %v477 = vunpack.c.l.b16 %v44
  %v478 = vunpack.c.l.b16 %v45
  %v479 = vunpack.c.l.b16 %v46
  %v480 = vunpack.c.l.b16 %v47
  %v481 = vunpack.c.l.b16 %v48
  %v482 = vunpack.c.l.b16 %v49
  %v483 = vunpack.c.l.b16 %v50
  %v484 = vunpack.c.l.b16 %v51
  %v485 = vunpack.c.l.b16 %v52
  %v486 = vunpack.c.l.b16 %v53
  %v487 = vunpack.c.l.b16 %v54
  %v488 = vunpack.c.l.b16 %v55
  %v489 = vunpack.c.l.b16 %v56
  %v490 = vunpack.c.l.b16 %v57
  %v491 = vunpack.c.l.b16 %v58
  %v492 = vunpack.c.l.b16 %v59
  %v493 = vunpack.c.l.b16 %v60
  %v494 = vunpack.c.l.b16 %v61
  %v495 = vunpack.c.l.b16 %v62
  %v496 = vunpack.c.l.b16 %v63
  %v497 = vunpack.c.l.b16 %v64
  %v498 = vunpack.c.l.b16 %v65
  %v499 = vunpack.c.l.b16 %v66
  %v500 = vunpack.c.l.b16 %v67
  %v501 = vunpack.c.l.b16 %v68
  %v502 = vunpack.c.l.b16 %v69
  %v503 = vunpack.c.l.b16 %v70
  %v504 = vunpack.c.l.b16 %v71
  %v505 = vunpack.c.l.b16 %v72
  %v506 = vunpack.c.l.b16 %v73
  %v507 = vunpack.c.l.b16 %v74
  %v508 = vunpack.c.l.b16 %v75
  %v509 = vunpack.c.l.b16 %v76
  %v510 = vunpack.c.l.b16 %v77
  %v511 = vunpack.c.l.b16 %v78
  %v512 = vunpack.c.l.b16 %v79
  %v513 = vunpack.c.l.b16 %v80
  %v514 = vunpack.c.l.b16 %v81
  %v515 = vunpack.c.l.b16 %v82
  %v516 = vunpack.c.l.b16 %v83
  %v517 = vunpack.c.l.b16 %v84
  %v518 = vunpack.c.l.b16 %v85
  %v519 = vunpack.c.l.b16 %v86
  %v520 = vunpack.c.l.b16 %v87
  %v521 = vunpack.c.l.b16 %v88
  %v522 = vunpack.c.l.b16 %v89
  %v523 = vunpack.c.l.b16 %v90
  %v524 = vunpack.c.l.b16 %v91
  %v525 = vunpack.c.l.b16 %v92
  %v526 = vunpack.c.l.b16 %v93
  %v527 = vunpack.c.l.b16 %v94
  %v528 = vunpack.c.l.b16 %v95
  %v529 = vunpack.c.l.b16 %v96
  %v530 = vunpack.c.l.b16 %v97
  %v531 = vunpack.c.l.b16 %v98
  %v532 = vunpack.c.l.b16 %v99
  %v533 = vunpack.c.l.b16 %v100
  %v534 = vunpack.c.l.b16 %v101
  %v535 = vunpack.c.l.b16 %v102
  %v536 = vunpack.c.l.b16 %v103
  %v537 = vunpack.c.l.b16 %v104
  %v538 = vunpack.c.l.b16 %v105
  %v539 = vunpack.c.l.b16 %v106
  %v540 = vunpack.c.l.b16 %v107
  %v541 = vunpack.c.l.b16 %v108
  %v542 = vunpack.c.l.b16 %v109
  %v543 = vunpack.c.l.b16 %v110
  %v544 = vunpack.c.l.b16 %v111
  %v545 = vunpack.c.l.b16 %v112
  %v546 = vunpack.c.l.b16 %v113
  %v547 = vunpack.c.l.b16 %v114
  %v548 = vunpack.c.l.b16 %v115
  %v549 = vunpack.c.l.b16 %v116
  %v550 = vunpack.c.l.b16 %v117
  %v551 = vunpack.c.l.b16 %v118
  %v552 = vunpack.c.l.b16 %v119
  %v553 = vunpack.c.l.b16 %v120
  %v554 = vunpack.c.l.b16 %v121
  %v555 = vunpack.c.l.b16 %v122
  %v556 = vunpack.c.l.b16 %v123
  %v557 = vunpack.c.l.b16 %v124
  %v558 = vunpack.c.l.b16 %v125
  %v559 = vunpack.c.l.b16 %v126
  %v560 = vunpack.c.l.b16 %v127
  %v561 = vunpack.c.l.b16 %v128
  %v562 = vunpack.c.l.b16 %v129
  %v563 = vunpack.c.l.b16 %v130
  %v564 = vunpack.c.l.b16 %v131
  %v565 = vunpack.c.l.b16 %v132
  %v566 = vunpack.c.l.b16 %v133
  %v567 = vunpack.c.l.b16 %v134
  %v568 = vunpack.c.l.b16 %v135
  %v569 = vunpack.c.l.b16 %v136
  %v570 = vunpack.c.l.b16 %v137
  %v571 = vunpack.c.l.b16 %v138
  %v572 = vunpack.c.l.b16 %v139
  %v573 = vunpack.c.l.b16 %v140
  %v574 = vunpack.c.l.b16 %v141
  %v575 = vunpack.c.l.b16 %v142
  %v576 = vunpack.c.l.b16 %v143
  %v577 = vunpack.c.l.b16 %v144
  %v578 = vunpack.c.l.b16 %v145
  %v579 = vunpack.c.l.b16 %v146
  %v580 = vunpack.c.l.b16 %v147
  %v581 = vunpack.c.l.b16 %v148
  %v582 = vunpack.c.l.b16 %v149
  %v583 = vunpack.c.l.b16 %v150
  %v584 = vunpack.c.l.b16 %v151
  %v585 = vunpack.c.l.b16 %v152
  %v586 = vunpack.c.l.b16 %v153
  %v587 = vunpack.c.l.b16 %v154
  %v588 = vunpack.c.l.b16 %v155
  %v589 = vunpack.c.l.b16 %v156
  %v590 = vunpack.c.l.b16 %v157
  %v591 = vunpack.c.l.b16 %v158
  %v592 = vunpack.c.l.b16 %v159
  %v593 = vunpack.c.l.b16 %v160
  %v594 = vunpack.c.l.b16 %v161
  %v595 = vunpack.c.l.b16 %v162
  %v596 = vunpack.c.l.b16 %v163
  %v597 = vunpack.c.l.b16 %v164
  %v598 = vunpack.c.l.b16 %v165
  %v599 = vunpack.c.l.b16 %v166
  %v600 = vunpack.c.l.b16 %v167
  %v601 = vunpack.c.l.b16 %v168
  %v602 = vunpack.c.l.b16 %v169
  %v603 = vunpack.c.l.b16 %v170
  %v604 = vunpack.c.l.b16 %v171
  %v605 = vunpack.c.l.b16 %v172
  %v606 = vunpack.c.l.b16 %v173
  %v607 = vunpack.c.l.b16 %v174
  %v608 = vunpack.c.l.b16 %v175
  %v609 = vunpack.c.l.b16 %v176
  %v610 = vunpack.c.l.b16 %v177
  %v611 = vunpack.c.l.b16 %v178
  %v612 = vunpack.c.l.b16 %v179
  %v613 = vunpack.c.l.b16 %v180
  %v614 = vunpack.c.l.b16 %v181
  %v615 = vunpack.c.l.b16 %v182
  %v616 = vunpack.c.l.b16 %v183
  %v617 = vunpack.c.l.b16 %v184
  %v618 = vunpack.c.l.b16 %v185
  %v619 = vunpack.c.l.b16 %v186
  %v620 = vunpack.c.l.b16 %v187
  %v621 = vunpack.c.l.b16 %v188
  %v622 = vunpack.c.l.b16 %v189
  %v623 = vunpack.c.l.b16 %v190
  %v624 = vunpack.c.l.b16 %v191
  %v625 = vunpack.c.l.b16 %v192
  %v626 = vunpack.c.l.b16 %v193
  %v627 = vunpack.c.l.b16 %v194
  %v628 = vunpack.c.l.b16 %v195
  %v629 = vunpack.c.l.b16 %v196
  %v630 = vunpack.c.l.b16 %v197
  %v631 = vunpack.c.l.b16 %v198
  %v632 = vunpack.c.l.b16 %v199
  %v633 = vunpack.c.l.b16 %v200
  %v634 = vunpack.c.l.b16 %v201
  %v635 = vunpack.c.l.b16 %v202
  %v636 = vunpack.c.l.b16 %v203
  %v637 = vunpack.c.l.b16 %v204
  %v638 = vunpack.c.l.b16 %v205
  %v639 = vunpack.c.l.b16 %v206
  %v640 = vunpack.c.l.b16 %v207
  %v641 = vunpack.c.l.b16 %v208
  %v642 = vunpack.c.l.b16 %v209
  %v643 = vunpack.c.l.b16 %v210
  %v644 = vunpack.c.l.b16 %v211
  %v645 = vunpack.c.l.b16 %v212
  %v646 = vunpack.c.l.b16 %v213
  %v647 = vunpack.c.l.b16 %v214
  %v648 = vunpack.c.l.b16 %v215
  %v649 = vunpack.c.l.b16 %v216
  %v650 = vunpack.c.l.b16 %v217
  %v651 = vunpack.c.l.b16 %v218
  %v652 = vpack.c.b16 %v461, %v460
  %v653 = vpack.c.b16 %v463, %v462
  %v654 = vpack.c.b16 %v465, %v464
  %v655 = vpack.c.b16 %v467, %v466
  %v656 = vpack.c.b16 %v469, %v468
  %v657 = vpack.c.b16 %v471, %v470
  %v658 = vpack.c.b16 %v473, %v472
  %v659 = vpack.c.b16 %v475, %v474
  %v660 = vpack.c.b16 %v477, %v476
  %v661 = vpack.c.b16 %v479, %v478
  %v662 = vpack.c.b16 %v481, %v480
  %v663 = vpack.c.b16 %v483, %v482
  %v664 = vpack.c.b16 %v485, %v484
  %v665 = vpack.c.b16 %v487, %v486
  %v666 = vpack.c.b16 %v489, %v488
  %v667 = vpack.c.b16 %v491, %v490
  %v668 = vpack.c.b16 %v493, %v492
  %v669 = vpack.c.b16 %v495, %v494
  %v670 = vpack.c.b16 %v497, %v496
  %v671 = vpack.c.b16 %v499, %v498
  %v672 = vpack.c.b16 %v501, %v500
  %v673 = vpack.c.b16 %v503, %v502
  %v674 = vpack.c.b16 %v505, %v504
  %v675 = vpack.c.b16 %v507, %v506
  %v676 = vpack.c.b16 %v509, %v508
  %v677 = vpack.c.b16 %v511, %v510
  %v678 = vpack.c.b16 %v513, %v512
  %v679 = vpack.c.b16 %v515, %v514
  %v680 = vpack.c.b16 %v517, %v516
  %v681 = vpack.c.b16 %v519, %v518
  %v682 = vpack.c.b16 %v521, %v520
  %v683 = vpack.c.b16 %v523, %v522
  %v684 = vpack.c.b16 %v525, %v524
  %v685 = vpack.c.b16 %v527, %v526
  %v686 = vpack.c.b16 %v529, %v528
  %v687 = vpack.c.b16 %v531, %v530
  %v688 = vpack.c.b16 %v533, %v532
  %v689 = vpack.c.b16 %v535, %v534
  %v690 = vpack.c.b16 %v537, %v536
  %v691 = vpack.c.b16 %v539, %v538
  %v692 = vpack.c.b16 %v541, %v540
  %v693 = vpack.c.b16 %v543, %v542
  %v694 = vpack.c.b16 %v545, %v544
  %v695 = vpack.c.b16 %v547, %v546
  %v696 = vpack.c.b16 %v549, %v548
  %v697 = vpack.c.b16 %v551, %v550
  %v698 = vpack.c.b16 %v553, %v552
  %v699 = vpack.c.b16 %v555, %v554
  %v700 = vpack.c.b16 %v557, %v556
  %v701 = vpack.c.b16 %v559, %v558
  %v702 = vpack.c.b16 %v561, %v560
  %v703 = vpack.c.b16 %v563, %v562
  %v704 = vpack.c.b16 %v565, %v564
  %v705 = vpack.c.b16 %v567, %v566
  %v706 = vpack.c.b16 %v569, %v568
  %v707 = vpack.c.b16 %v571, %v570
  %v708 = vpack.c.b16 %v573, %v572
  %v709 = vpack.c.b16 %v575, %v574
  %v710 = vpack.c.b16 %v577, %v576
  %v711 = vpack.c.b16 %v579, %v578
  %v712 = vpack.c.b16 %v581, %v580
  %v713 = vpack.c.b16 %v583, %v582
  %v714 = vpack.c.b16 %v585, %v584
  %v715 = vpack.c.b16 %v587, %v586
  %v716 = vpack.c.b16 %v589, %v588
  %v717 = vpack.c.b16 %v591, %v590
  %v718 = vpack.c.b16 %v593, %v592
  %v719 = vpack.c.b16 %v595, %v594
  %v720 = vpack.c.b16 %v597, %v596
  %v721 = vpack.c.b16 %v599, %v598
  %v722 = vpack.c.b16 %v601, %v600
  %v723 = vpack.c.b16 %v603, %v602
  %v724 = vpack.c.b16 %v605, %v604
  %v725 = vpack.c.b16 %v607, %v606
  %v726 = vpack.c.b16 %v609, %v608
  %v727 = vpack.c.b16 %v611, %v610
  %v728 = vpack.c.b16 %v613, %v612
  %v729 = vpack.c.b16 %v615, %v614
  %v730 = vpack.c.b16 %v617, %v616
  %v731 = vpack.c.b16 %v619, %v618
  %v732 = vpack.c.b16 %v621, %v620
  %v733 = vpack.c.b16 %v623, %v622
  %v734 = vpack.c.b16 %v625, %v624
  %v735 = vpack.c.b16 %v627, %v626
  %v736 = vpack.c.b16 %v629, %v628
  %v737 = vpack.c.b16 %v631, %v630
  %v738 = vpack.c.b16 %v633, %v632
  %v739 = vpack.c.b16 %v635, %v634
  %v740 = vpack.c.b16 %v637, %v636
  %v741 = vpack.c.b16 %v639, %v638
  %v742 = vpack.c.b16 %v641, %v640
  %v743 = vpack.c.b16 %v643, %v642
  %v744 = vpack.c.b16 %v645, %v644
  %v745 = vpack.c.b16 %v647, %v646
  %v746 = vpack.c.b16 %v649, %v648
  %v747 = vpack.c.b16 %v651, %v650
  %844 = vmatprep.subr.bf16.mxu0 0
  %845 = vmatpush1.bf16.msra.mxu0 %v652
  %846 = vmatprep.subr.bf16.mxu0 0
  %847 = vmatpush1.bf16.msra.mxu0 %v653
  %848 = vmatprep.subr.bf16.mxu0 0
  %849 = vmatpush1.bf16.msra.mxu0 %v654
  %850 = vmatprep.subr.bf16.mxu0 0
  %851 = vmatpush1.bf16.msra.mxu0 %v655
  %852 = vmatprep.subr.bf16.mxu0 0
  %853 = vmatpush1.bf16.msra.mxu0 %v656
  %854 = vmatprep.subr.bf16.mxu0 0
  %855 = vmatpush1.bf16.msra.mxu0 %v657
  %856 = vmatprep.subr.bf16.mxu0 0
  %857 = vmatpush1.bf16.msra.mxu0 %v658
  %858 = vmatprep.subr.bf16.mxu0 0
  %859 = vmatpush1.bf16.msra.mxu0 %v659
  %860 = vmatprep.subr.bf16.mxu0 0
  %861 = vmatpush1.bf16.msra.mxu0 %v660
  %862 = vmatprep.subr.bf16.mxu0 0
  %863 = vmatpush1.bf16.msra.mxu0 %v661
  %864 = vmatprep.subr.bf16.mxu0 0
  %865 = vmatpush1.bf16.msra.mxu0 %v662
  %866 = vmatprep.subr.bf16.mxu0 0
  %867 = vmatpush1.bf16.msra.mxu0 %v663
  %868 = vmatprep.subr.bf16.mxu0 0
  %869 = vmatpush1.bf16.msra.mxu0 %v664
  %870 = vmatprep.subr.bf16.mxu0 0
  %871 = vmatpush1.bf16.msra.mxu0 %v665
  %872 = vmatprep.subr.bf16.mxu0 0
  %873 = vmatpush1.bf16.msra.mxu0 %v666
  %874 = vmatprep.subr.bf16.mxu0 0
  %875 = vmatpush1.bf16.msra.mxu0 %v667
  %876 = vmatprep.mubr.bf16.mxu0 %v245
  %877 = vmatmul.mubr.bf16.gmra.mrb[0].mxu0 %v244
  %v878 = vpop.f32.mrb[0].mxu0
  %v879 = vadd.f32 %v224, %v878
  %v880 = vpop.f32.mrb[0].mxu0
  %v881 = vpop.f32.mrb[0].mxu0
  %v882 = vpop.f32.mrb[0].mxu0
  %883 = vdwg.mxu0
  %884 = vmatprep.subr.bf16.mxu0 0
  %885 = vmatpush1.bf16.msra.mxu0 %v668
  %886 = vmatprep.subr.bf16.mxu0 0
  %887 = vmatpush1.bf16.msra.mxu0 %v669
  %888 = vmatprep.subr.bf16.mxu0 0
  %889 = vmatpush1.bf16.msra.mxu0 %v670
  %890 = vmatprep.subr.bf16.mxu0 0
  %891 = vmatpush1.bf16.msra.mxu0 %v671
  %892 = vmatprep.subr.bf16.mxu0 0
  %893 = vmatpush1.bf16.msra.mxu0 %v672
  %894 = vmatprep.subr.bf16.mxu0 0
  %895 = vmatpush1.bf16.msra.mxu0 %v673
  %896 = vmatprep.subr.bf16.mxu0 0
  %897 = vmatpush1.bf16.msra.mxu0 %v674
  %898 = vmatprep.subr.bf16.mxu0 0
  %899 = vmatpush1.bf16.msra.mxu0 %v675
  %900 = vmatprep.subr.bf16.mxu0 0
  %901 = vmatpush1.bf16.msra.mxu0 %v676
  %902 = vmatprep.subr.bf16.mxu0 0
  %903 = vmatpush1.bf16.msra.mxu0 %v677
  %904 = vmatprep.subr.bf16.mxu0 0
  %905 = vmatpush1.bf16.msra.mxu0 %v678
  %906 = vmatprep.subr.bf16.mxu0 0
  %907 = vmatpush1.bf16.msra.mxu0 %v679
  %908 = vmatprep.subr.bf16.mxu0 0
  %909 = vmatpush1.bf16.msra.mxu0 %v680
  %910 = vmatprep.subr.bf16.mxu0 0
  %911 = vmatpush1.bf16.msra.mxu0 %v681
  %912 = vmatprep.subr.bf16.mxu0 0
  %913 = vmatpush1.bf16.msra.mxu0 %v682
  %914 = vmatprep.subr.bf16.mxu0 0
  %915 = vmatpush1.bf16.msra.mxu0 %v683
  %916 = vmatprep.mubr.bf16.mxu0 %v247
  %917 = vmatmul.mubr.bf16.gmra.mrb[0].mxu0 %v246
  %v918 = vpop.f32.mrb[0].mxu0
  %v919 = vadd.f32 %v879, %v918
  %v920 = vpop.f32.mrb[0].mxu0
  %v921 = vpop.f32.mrb[0].mxu0
  %v922 = vpop.f32.mrb[0].mxu0
  %923 = vdwg.mxu0
  %924 = vmatprep.subr.bf16.mxu0 0
  %925 = vmatpush1.bf16.msra.mxu0 %v684
  %926 = vmatprep.subr.bf16.mxu0 0
  %927 = vmatpush1.bf16.msra.mxu0 %v685
  %928 = vmatprep.subr.bf16.mxu0 0
  %929 = vmatpush1.bf16.msra.mxu0 %v686
  %930 = vmatprep.subr.bf16.mxu0 0
  %931 = vmatpush1.bf16.msra.mxu0 %v687
  %932 = vmatprep.subr.bf16.mxu0 0
  %933 = vmatpush1.bf16.msra.mxu0 %v688
  %934 = vmatprep.subr.bf16.mxu0 0
  %935 = vmatpush1.bf16.msra.mxu0 %v689
  %936 = vmatprep.subr.bf16.mxu0 0
  %937 = vmatpush1.bf16.msra.mxu0 %v690
  %938 = vmatprep.subr.bf16.mxu0 0
  %939 = vmatpush1.bf16.msra.mxu0 %v691
  %940 = vmatprep.subr.bf16.mxu0 0
  %941 = vmatpush1.bf16.msra.mxu0 %v692
  %942 = vmatprep.subr.bf16.mxu0 0
  %943 = vmatpush1.bf16.msra.mxu0 %v693
  %944 = vmatprep.subr.bf16.mxu0 0
  %945 = vmatpush1.bf16.msra.mxu0 %v694
  %946 = vmatprep.subr.bf16.mxu0 0
  %947 = vmatpush1.bf16.msra.mxu0 %v695
  %948 = vmatprep.subr.bf16.mxu0 0
  %949 = vmatpush1.bf16.msra.mxu0 %v696
  %950 = vmatprep.subr.bf16.mxu0 0
  %951 = vmatpush1.bf16.msra.mxu0 %v697
  %952 = vmatprep.subr.bf16.mxu0 0
  %953 = vmatpush1.bf16.msra.mxu0 %v698
  %954 = vmatprep.subr.bf16.mxu0 0
  %955 = vmatpush1.bf16.msra.mxu0 %v699
  %956 = vmatprep.mubr.bf16.mxu0 %v249
  %957 = vmatmul.mubr.bf16.gmra.mrb[0].mxu0 %v248
  %v958 = vpop.f32.mrb[0].mxu0
  %v959 = vadd.f32 %v919, %v958
  %v960 = vpop.f32.mrb[0].mxu0
  %v961 = vpop.f32.mrb[0].mxu0
  %v962 = vpop.f32.mrb[0].mxu0
  %963 = vdwg.mxu0
  %964 = vmatprep.subr.bf16.mxu0 0
  %965 = vmatpush1.bf16.msra.mxu0 %v700
  %966 = vmatprep.subr.bf16.mxu0 0
  %967 = vmatpush1.bf16.msra.mxu0 %v701
  %968 = vmatprep.subr.bf16.mxu0 0
  %969 = vmatpush1.bf16.msra.mxu0 %v702
  %970 = vmatprep.subr.bf16.mxu0 0
  %971 = vmatpush1.bf16.msra.mxu0 %v703
  %972 = vmatprep.subr.bf16.mxu0 0
  %973 = vmatpush1.bf16.msra.mxu0 %v704
  %974 = vmatprep.subr.bf16.mxu0 0
  %975 = vmatpush1.bf16.msra.mxu0 %v705
  %976 = vmatprep.subr.bf16.mxu0 0
  %977 = vmatpush1.bf16.msra.mxu0 %v706
  %978 = vmatprep.subr.bf16.mxu0 0
  %979 = vmatpush1.bf16.msra.mxu0 %v707
  %980 = vmatprep.subr.bf16.mxu0 0
  %981 = vmatpush1.bf16.msra.mxu0 %v708
  %982 = vmatprep.subr.bf16.mxu0 0
  %983 = vmatpush1.bf16.msra.mxu0 %v709
  %984 = vmatprep.subr.bf16.mxu0 0
  %985 = vmatpush1.bf16.msra.mxu0 %v710
  %986 = vmatprep.subr.bf16.mxu0 0
  %987 = vmatpush1.bf16.msra.mxu0 %v711
  %988 = vmatprep.subr.bf16.mxu0 0
  %989 = vmatpush1.bf16.msra.mxu0 %v712
  %990 = vmatprep.subr.bf16.mxu0 0
  %991 = vmatpush1.bf16.msra.mxu0 %v713
  %992 = vmatprep.subr.bf16.mxu0 0
  %993 = vmatpush1.bf16.msra.mxu0 %v714
  %994 = vmatprep.subr.bf16.mxu0 0
  %995 = vmatpush1.bf16.msra.mxu0 %v715
  %996 = vmatprep.mubr.bf16.mxu0 %v251
  %997 = vmatmul.mubr.bf16.gmra.mrb[0].mxu0 %v250
  %v998 = vpop.f32.mrb[0].mxu0
  %v999 = vadd.f32 %v959, %v998
  %v1000 = vpop.f32.mrb[0].mxu0
  %v1001 = vpop.f32.mrb[0].mxu0
  %v1002 = vpop.f32.mrb[0].mxu0
  %1003 = vdwg.mxu0
  %1004 = vmatprep.subr.bf16.mxu0 0
  %1005 = vmatpush1.bf16.msra.mxu0 %v716
  %1006 = vmatprep.subr.bf16.mxu0 0
  %1007 = vmatpush1.bf16.msra.mxu0 %v717
  %1008 = vmatprep.subr.bf16.mxu0 0
  %1009 = vmatpush1.bf16.msra.mxu0 %v718
  %1010 = vmatprep.subr.bf16.mxu0 0
  %1011 = vmatpush1.bf16.msra.mxu0 %v719
  %1012 = vmatprep.subr.bf16.mxu0 0
  %1013 = vmatpush1.bf16.msra.mxu0 %v720
  %1014 = vmatprep.subr.bf16.mxu0 0
  %1015 = vmatpush1.bf16.msra.mxu0 %v721
  %1016 = vmatprep.subr.bf16.mxu0 0
  %1017 = vmatpush1.bf16.msra.mxu0 %v722
  %1018 = vmatprep.subr.bf16.mxu0 0
  %1019 = vmatpush1.bf16.msra.mxu0 %v723
  %1020 = vmatprep.subr.bf16.mxu0 0
  %1021 = vmatpush1.bf16.msra.mxu0 %v724
  %1022 = vmatprep.subr.bf16.mxu0 0
  %1023 = vmatpush1.bf16.msra.mxu0 %v725
  %1024 = vmatprep.subr.bf16.mxu0 0
  %1025 = vmatpush1.bf16.msra.mxu0 %v726
  %1026 = vmatprep.subr.bf16.mxu0 0
  %1027 = vmatpush1.bf16.msra.mxu0 %v727
  %1028 = vmatprep.subr.bf16.mxu0 0
  %1029 = vmatpush1.bf16.msra.mxu0 %v728
  %1030 = vmatprep.subr.bf16.mxu0 0
  %1031 = vmatpush1.bf16.msra.mxu0 %v729
  %1032 = vmatprep.subr.bf16.mxu0 0
  %1033 = vmatpush1.bf16.msra.mxu0 %v730
  %1034 = vmatprep.subr.bf16.mxu0 0
  %1035 = vmatpush1.bf16.msra.mxu0 %v731
  %1036 = vmatprep.mubr.bf16.mxu0 %v253
  %1037 = vmatmul.mubr.bf16.gmra.mrb[0].mxu0 %v252
  %v1038 = vpop.f32.mrb[0].mxu0
  %v1039 = vadd.f32 %v999, %v1038
  %v1040 = vpop.f32.mrb[0].mxu0
  %v1041 = vpop.f32.mrb[0].mxu0
  %v1042 = vpop.f32.mrb[0].mxu0
  %1043 = vdwg.mxu0
  %1044 = vmatprep.subr.bf16.mxu0 0
  %1045 = vmatpush1.bf16.msra.mxu0 %v732
  %1046 = vmatprep.subr.bf16.mxu0 0
  %1047 = vmatpush1.bf16.msra.mxu0 %v733
  %1048 = vmatprep.subr.bf16.mxu0 0
  %1049 = vmatpush1.bf16.msra.mxu0 %v734
  %1050 = vmatprep.subr.bf16.mxu0 0
  %1051 = vmatpush1.bf16.msra.mxu0 %v735
  %1052 = vmatprep.subr.bf16.mxu0 0
  %1053 = vmatpush1.bf16.msra.mxu0 %v736
  %1054 = vmatprep.subr.bf16.mxu0 0
  %1055 = vmatpush1.bf16.msra.mxu0 %v737
  %1056 = vmatprep.subr.bf16.mxu0 0
  %1057 = vmatpush1.bf16.msra.mxu0 %v738
  %1058 = vmatprep.subr.bf16.mxu0 0
  %1059 = vmatpush1.bf16.msra.mxu0 %v739
  %1060 = vmatprep.subr.bf16.mxu0 0
  %1061 = vmatpush1.bf16.msra.mxu0 %v740
  %1062 = vmatprep.subr.bf16.mxu0 0
  %1063 = vmatpush1.bf16.msra.mxu0 %v741
  %1064 = vmatprep.subr.bf16.mxu0 0
  %1065 = vmatpush1.bf16.msra.mxu0 %v742
  %1066 = vmatprep.subr.bf16.mxu0 0
  %1067 = vmatpush1.bf16.msra.mxu0 %v743
  %1068 = vmatprep.subr.bf16.mxu0 0
  %1069 = vmatpush1.bf16.msra.mxu0 %v744
  %1070 = vmatprep.subr.bf16.mxu0 0
  %1071 = vmatpush1.bf16.msra.mxu0 %v745
  %1072 = vmatprep.subr.bf16.mxu0 0
  %1073 = vmatpush1.bf16.msra.mxu0 %v746
  %1074 = vmatprep.subr.bf16.mxu0 0
  %1075 = vmatpush1.bf16.msra.mxu0 %v747
  %1076 = vmatprep.mubr.bf16.mxu0 %v255
  %1077 = vmatmul.mubr.bf16.gmra.mrb[0].mxu0 %v254
  %v1078 = vpop.f32.mrb[0].mxu0
  %v1079 = vadd.f32 %v1039, %v1078
  %v1080 = vpop.f32.mrb[0].mxu0
  %v1081 = vpop.f32.mrb[0].mxu0
  %v1082 = vpop.f32.mrb[0].mxu0
  %1083 = vdwg.mxu0
  %v1084 = vmax.f32 %v1079, 0.0
  %v1085 = vpack.c.bf16 %v1084, %v1084
  %v1086 = vld [vmem:[%s3] sm:$0xf]
  %v1087 = vld [vmem:[%s3 + $0x4] sm:$0xf]
  %v1088 = vld [vmem:[%s3 + $0x8] sm:$0xf]
  %v1089 = vld [vmem:[%s3 + $0xc] sm:$0xf]
  %v1090 = vld [vmem:[%s3 + $0x10] sm:$0xf]
  %v1091 = vld [vmem:[%s3 + $0x14] sm:$0xf]
  %v1092 = vld [vmem:[%s3 + $0x18] sm:$0xf]
  %v1093 = vld [vmem:[%s3 + $0x1c] sm:$0xf]
  %v1094 = vld [vmem:[%s3 + $0x20] sm:$0xf]
  %v1095 = vld [vmem:[%s3 + $0x24] sm:$0xf]
  %v1096 = vld [vmem:[%s3 + $0x28] sm:$0xf]
  %v1097 = vld [vmem:[%s3 + $0x2c] sm:$0xf]
  %v1098 = vld [vmem:[%s3 + $0x30] sm:$0xf]
  %v1099 = vld [vmem:[%s3 + $0x34] sm:$0xf]
  %v1100 = vld [vmem:[%s3 + $0x38] sm:$0xf]
  %v1101 = vld [vmem:[%s3 + $0x3c] sm:$0xf]
  %v1102 = vld [vmem:[%s4] sm:$0x1]
  %v1104 = vlaneseq
  %v1105 = vshrl.u32 %v1104, 7
  %v1106 = vsub.s32 0, %v1105
  %v1107 = vrot.slane %v1102, %v1106
  %v1125 = vunpack.c.l.b16 %v1086
  %v1126 = vunpack.c.l.b16 %v1087
  %v1127 = vunpack.c.l.b16 %v1088
  %v1128 = vunpack.c.l.b16 %v1089
  %v1129 = vunpack.c.l.b16 %v1090
  %v1130 = vunpack.c.l.b16 %v1091
  %v1131 = vunpack.c.l.b16 %v1092
  %v1132 = vunpack.c.l.b16 %v1093
  %v1133 = vunpack.c.l.b16 %v1094
  %v1134 = vunpack.c.l.b16 %v1095
  %v1135 = vunpack.c.l.b16 %v1096
  %v1136 = vunpack.c.l.b16 %v1097
  %v1137 = vunpack.c.l.b16 %v1098
  %v1138 = vunpack.c.l.b16 %v1099
  %v1139 = vunpack.c.l.b16 %v1100
  %v1140 = vunpack.c.l.b16 %v1101
  %v1141 = vpack.c.b16 %v1126, %v1125
  %v1142 = vpack.c.b16 %v1128, %v1127
  %v1143 = vpack.c.b16 %v1130, %v1129
  %v1144 = vpack.c.b16 %v1132, %v1131
  %v1145 = vpack.c.b16 %v1134, %v1133
  %v1146 = vpack.c.b16 %v1136, %v1135
  %v1147 = vpack.c.b16 %v1138, %v1137
  %v1148 = vpack.c.b16 %v1140, %v1139
  %1157 = vmatprep.subr.bf16.mxu0 0
  %1158 = vmatpush1.bf16.msra.mxu0 %v1141
  %1159 = vmatprep.subr.bf16.mxu0 0
  %1160 = vmatpush1.bf16.msra.mxu0 %v1142
  %1161 = vmatprep.subr.bf16.mxu0 0
  %1162 = vmatpush1.bf16.msra.mxu0 %v1143
  %1163 = vmatprep.subr.bf16.mxu0 0
  %1164 = vmatpush1.bf16.msra.mxu0 %v1144
  %1165 = vmatprep.subr.bf16.mxu0 0
  %1166 = vmatpush1.bf16.msra.mxu0 %v1145
  %1167 = vmatprep.subr.bf16.mxu0 0
  %1168 = vmatpush1.bf16.msra.mxu0 %v1146
  %1169 = vmatprep.subr.bf16.mxu0 0
  %1170 = vmatpush1.bf16.msra.mxu0 %v1147
  %1171 = vmatprep.subr.bf16.mxu0 0
  %1172 = vmatpush1.bf16.msra.mxu0 %v1148
  %1173 = vmatprep.subr.bf16.mxu0 0
  %1174 = vmatpush1.bf16.msra.mxu0 0
  %1175 = vmatprep.subr.bf16.mxu0 0
  %1176 = vmatpush1.bf16.msra.mxu0 0
  %1177 = vmatprep.subr.bf16.mxu0 0
  %1178 = vmatpush1.bf16.msra.mxu0 0
  %1179 = vmatprep.subr.bf16.mxu0 0
  %1180 = vmatpush1.bf16.msra.mxu0 0
  %1181 = vmatprep.subr.bf16.mxu0 0
  %1182 = vmatpush1.bf16.msra.mxu0 0
  %1183 = vmatprep.subr.bf16.mxu0 0
  %1184 = vmatpush1.bf16.msra.mxu0 0
  %1185 = vmatprep.subr.bf16.mxu0 0
  %1186 = vmatpush1.bf16.msra.mxu0 0
  %1187 = vmatprep.subr.bf16.mxu0 0
  %1188 = vmatpush1.bf16.msra.mxu0 0
  %1189 = vmatprep.mubr.bf16.mxu0 0
  %1190 = vmatmul.mubr.bf16.gmra.mrb[0].mxu0 %v1085
  %v1191 = vpop.f32.mrb[0].mxu0
  %v1192 = vadd.f32 %v1107, %v1191
  %v1193 = vpop.f32.mrb[0].mxu0
  %v1194 = vpop.f32.mrb[0].mxu0
  %v1195 = vpop.f32.mrb[0].mxu0
  %1196 = vdwg.mxu0
  %1197 = vst [vmem:[%s5] sm:$0xff] %v1192
  // Predicated region
  $region22: #{forward.5} parent=0 // pred_check
    _
  $region23: #{forward.5} parent=0 // pred_check_branch
    %1199 = sbr.rel (0) target = $region25
  $region24: #{forward.5} parent=0 // pred_region
    _
  $region25: #{forward.5} parent=0 // pred_fallthru
    _
  // Predicated region
  $region26: #{forward.5} parent=0 // pred_check
    _
  $region27: #{forward.5} parent=0 // pred_check_branch
    %1201 = sbr.rel (0) target = $region29
  $region28: #{forward.5} parent=0 // pred_region
    _
  $region29: #{forward.5} parent=0 // pred_fallthru
    _

// kernel: forward.4
$region0: #{forward.4}
  #allocation0 [shape = 'u32[]', space=smem, size = 0x4, offset = 0x4, fixed_abs, tag = 'smem constant byte address 0x4 - core index']
  #allocation1 [shape = 'u32[144,128]{1,0:T(1,128)}', space=vmem, size = 0x12000, scoped, tag = 'internal scratch']
  %s0 = inlined_call_operand.vmem [shape: bf16[12,1024], index: 0, kind: input, shape index: {}]
  %s1 = inlined_call_operand.hbm [shape: bf16[1024,1024], index: 1, kind: input, shape index: {}]
  %s2 = inlined_call_operand.hbm [shape: f32[1,256], index: 2, kind: input, shape index: {}]
  %s3 = inlined_call_operand.vmem [shape: bf16[12,256], index: 3, kind: output, shape index: {}]
  %s4 = sld [smem:[#allocation0]]
  $region53: #{forward.4} parent=0
    _
  %s6 = ssub.s32 1, %s4
  %s7 = scalar_select 0, %s6, %s4
  $region1: #{forward.4} parent=0
    #allocation2 [shape = 'u8[2097152]{0}', space=vmem, size = 0x200000, scoped, tag = 'input window, operand 1, single buffered']
    #allocation3 [shape = 's32[2]{0}', space=sflag, size = 0x8, scoped, tag = 'scoped memory for forward.4']
    #allocation4 [shape = 'u8[1024]{0}', space=vmem, size = 0x400, scoped, tag = 'input window, operand 2, single buffered']
    #allocation5 [shape = 's32[1]{0}', space=sflag, size = 0x4, scoped, tag = 'scoped memory for forward.4']
    %8 = vsyncpa [#allocation3], 0
    %9 = vsyncpa [#allocation5], 0
    loop: start=0, step=1, limit=4
    $region2: #{forward.4} parent=1 // loop_pre_header
      _
    $region3: #{forward.4} parent=1 // loop_header
      %s11 = sphi 0, %s15
      %p12 = scmp.ge.s32.totalorder %s11, 4
      %s21 = sphi 0, %s23
      %s24 = sphi 0, %s21
      %s25 = sphi 0, %s24
      %s41 = sphi 0, %s25
      %s45 = sphi 0, %s45
      %s47 = sphi 0, %s45
      %s48 = sphi 0, %s47
      %s62 = sphi 0, %s48
      %s66 = sphi 0, %s66
      %s68 = sphi 0, %s66
      %s69 = sphi 0, %s68
      %s83 = sphi 0, %s69
      %s89 = sphi 0, %s91
      %s92 = sphi 0, %s89
      %s93 = sphi 0, %s92
      %s109 = sphi 0, %s93
    $region4: #{forward.4} parent=1 // loop_header_branch
      %14 = sbr.rel (%p12) target = $region8
    $region5: #{forward.4} parent=1 // loop_body
      %s16 = ssub.s32 %s11, 1
      %s17 = ssub.s32 %s11, 2
      %s18 = sadd.s32 %s11, 1
      %s19 = ssub.s32 %s11, %s18
      %p20 = scmp.eq.s32.totalorder %s19, 0
      %s22 = sadd.s32 %s21, 1
      %s23 = scalar_select %p20, %s21, %s22
      %p26 = pneg %p20
      %p27 = scmp.eq.s32.totalorder %s11, 1
      %p28 = por %p26, %p27
      %p29 = scmp.ne.s32.totalorder %s21, %s24
      %p30 = scmp.eq.s32.totalorder %s11, 0
      %p31 = por %p29, %p30
      %p32 = scmp.ne.s32.totalorder %s21, %s24
      %p33 = scmp.eq.s32.totalorder %s16, 1
      %p34 = por %p32, %p33
      %p35 = scmp.ne.s32.totalorder %s24, %s25
      %p36 = scmp.eq.s32.totalorder %s16, 0
      %p37 = por %p35, %p36
      %p38 = scmp.ne.s32.totalorder %s24, %s25
      %p39 = scmp.eq.s32.totalorder %s17, 1
      %p40 = por %p38, %p39
      %p42 = scmp.ne.s32.totalorder %s25, %s41
      %p43 = scmp.eq.s32.totalorder %s17, 0
      %p44 = por %p42, %p43
      %s46 = sadd.s32 %s45, 1
      %p49 = scmp.eq.s32.totalorder %s11, 1
      %p50 = scmp.ne.s32.totalorder %s45, %s47
      %p51 = scmp.eq.s32.totalorder %s11, 0
      %p52 = por %p50, %p51
      %p53 = scmp.ne.s32.totalorder %s45, %s47
      %p54 = scmp.eq.s32.totalorder %s16, 1
      %p55 = por %p53, %p54
      %p56 = scmp.ne.s32.totalorder %s47, %s48
      %p57 = scmp.eq.s32.totalorder %s16, 0
      %p58 = por %p56, %p57
      %p59 = scmp.ne.s32.totalorder %s47, %s48
      %p60 = scmp.eq.s32.totalorder %s17, 1
      %p61 = por %p59, %p60
      %p63 = scmp.ne.s32.totalorder %s48, %s62
      %p64 = scmp.eq.s32.totalorder %s17, 0
      %p65 = por %p63, %p64
      %s67 = sadd.s32 %s66, 1
      %p70 = scmp.eq.s32.totalorder %s11, 1
      %p71 = scmp.ne.s32.totalorder %s66, %s68
      %p72 = scmp.eq.s32.totalorder %s11, 0
      %p73 = por %p71, %p72
      %p74 = scmp.ne.s32.totalorder %s66, %s68
      %p75 = scmp.eq.s32.totalorder %s16, 1
      %p76 = por %p74, %p75
      %p77 = scmp.ne.s32.totalorder %s68, %s69
      %p78 = scmp.eq.s32.totalorder %s16, 0
      %p79 = por %p77, %p78
      %p80 = scmp.ne.s32.totalorder %s68, %s69
      %p81 = scmp.eq.s32.totalorder %s17, 1
      %p82 = por %p80, %p81
      %p84 = scmp.ne.s32.totalorder %s69, %s83
      %p85 = scmp.eq.s32.totalorder %s17, 0
      %p86 = por %p84, %p85
      %s87 = ssub.s32 %s11, %s18
      %p88 = scmp.eq.s32.totalorder %s87, 0
      %s90 = sadd.s32 %s89, 1
      %s91 = scalar_select %p88, %s89, %s90
      %p94 = pneg %p88
      %p95 = scmp.eq.s32.totalorder %s11, 1
      %p96 = por %p94, %p95
      %p97 = scmp.ne.s32.totalorder %s89, %s92
      %p98 = scmp.eq.s32.totalorder %s11, 0
      %p99 = por %p97, %p98
      %p100 = scmp.ne.s32.totalorder %s89, %s92
      %p101 = scmp.eq.s32.totalorder %s16, 1
      %p102 = por %p100, %p101
      %p103 = scmp.ne.s32.totalorder %s92, %s93
      %p104 = scmp.eq.s32.totalorder %s16, 0
      %p105 = por %p103, %p104
      %p106 = scmp.ne.s32.totalorder %s92, %s93
      %p107 = scmp.eq.s32.totalorder %s17, 1
      %p108 = por %p106, %p107
      %p110 = scmp.ne.s32.totalorder %s93, %s109
      %p111 = scmp.eq.s32.totalorder %s17, 0
      %p112 = por %p110, %p111
      %p113 = scmp.le.s32.totalorder 1, %s11
      %p114 = scmp.lt.s32.totalorder %s11, 3
      %p115 = pnand %p113, %p114
      %p116 = pneg %p115
      // Predicated region
      $region9: #{forward.4} parent=5 // pred_check
        _
      $region10: #{forward.4} parent=5 // pred_check_branch
        %118 = sbr.rel (%p115) target = $region12
      $region11: #{forward.4} parent=5 // pred_region
        %s119 = ssub.s32 %s11, 1
        // Predicated region
        $region13: #{forward.4} parent=11 // pred_check
          %p120 = pneg %p58
        $region14: #{forward.4} parent=11 // pred_check_branch
          %122 = sbr.rel (%p120) target = $region16
        $region15: #{forward.4} parent=11 // pred_region
          %s124 = ssub.s32 65536, 65536
          %125 = vsyncadd [#allocation3], %s124
          %s126 = sshll.u32 [#allocation2], 4
          %s127 = int_to_ptr.vmem [resolvable:$true] %s126
          %132 = dma.hbm_to_vmem [thread:$0]  %s1, 65536, %s127, [#allocation3], 512, 512, 32
        $region16: #{forward.4} parent=11 // pred_fallthru
          _
        // Predicated region
        $region17: #{forward.4} parent=11 // pred_check
          %p133 = pneg %p79
        $region18: #{forward.4} parent=11 // pred_check_branch
          %135 = sbr.rel (%p133) target = $region20
        $region19: #{forward.4} parent=11 // pred_region
          %s137 = ssub.s32 32, 32
          %138 = vsyncadd [#allocation5], %s137
          %s140 = sshll.u32 [#allocation4], 4
          %s141 = int_to_ptr.vmem [resolvable:$true] %s140
          %143 = dma.hbm_to_vmem [thread:$0]  %s2, 32, %s141, [#allocation5]
        $region20: #{forward.4} parent=11 // pred_fallthru
          _
      $region12: #{forward.4} parent=5 // pred_fallthru
        _
      %p144 = scmp.lt.s32.totalorder %s11, 2
      // Predicated region
      $region21: #{forward.4} parent=5 // pred_check
        %p145 = pneg %p144
      $region22: #{forward.4} parent=5 // pred_check_branch
        %147 = sbr.rel (%p145) target = $region24
      $region23: #{forward.4} parent=5 // pred_region
        // Predicated region
        $region25: #{forward.4} parent=23 // pred_check
          %p148 = pneg %p31
        $region26: #{forward.4} parent=23 // pred_check_branch
          %150 = sbr.rel (%p148) target = $region28
        $region27: #{forward.4} parent=23 // pred_region
          %p151 = scmp.lt.s32.totalorder %s11, 1
          %s152 = scalar_select %p151, %s11, 1
          %s153 = smul.addr %s152, 8
          %s154 = smul.addr %s153, 4
          %s155 = scalar_lea.vmem %s0, %s154
        $region28: #{forward.4} parent=23 // pred_fallthru
          _
      $region24: #{forward.4} parent=5 // pred_fallthru
        _
      %p156 = scmp.le.s32.totalorder 1, %s11
      %p157 = scmp.lt.s32.totalorder %s11, 3
      %p158 = pnand %p156, %p157
      %p159 = pneg %p158
      // Predicated region
      $region29: #{forward.4} parent=5 // pred_check
        _
      $region30: #{forward.4} parent=5 // pred_check_branch
        %161 = sbr.rel (%p158) target = $region32
      $region31: #{forward.4} parent=5 // pred_region
        %s162 = ssub.s32 %s11, 1
        // Predicated region
        $region33: #{forward.4} parent=31 // pred_check
          %p163 = pneg %p58
        $region34: #{forward.4} parent=31 // pred_check_branch
          %165 = sbr.rel (%p163) target = $region36
        $region35: #{forward.4} parent=31 // pred_region
          %166 = dma.done [#allocation3], 65536
        $region36: #{forward.4} parent=31 // pred_fallthru
          _
        // Predicated region
        $region37: #{forward.4} parent=31 // pred_check
          %p167 = pneg %p79
        $region38: #{forward.4} parent=31 // pred_check_branch
          %169 = sbr.rel (%p167) target = $region40
        $region39: #{forward.4} parent=31 // pred_region
          %170 = dma.done [#allocation5], 32
        $region40: #{forward.4} parent=31 // pred_fallthru
          _
        %p171 = scmp.lt.s32.totalorder %s16, 1
        %s172 = scalar_select %p171, %s16, 1
        %s173 = smul.addr %s172, 8
        %s174 = smul.addr %s173, 4
        %s175 = scalar_lea.vmem %s0, %s174
        %p176 = pneg %p37
        %p177 = pneg %p34
        %p178 = pneg %p58
        %p179 = pneg %p55
        %p180 = pneg %p79
        %p181 = pneg %p76
        %p182 = pneg %p105
        %p183 = pneg %p102
        %p184 = scmp.lt.s32.totalorder %s16, 1
        %s185 = scalar_select %p184, %s16, 1
        %s186 = smul.addr %s185, 2
        %s187 = smul.addr %s186, 4
        %s188 = scalar_lea.vmem %s3, %s187
        %p189 = scmp.lt.s32.totalorder %s16, 1
        %s190 = scalar_select %p189, %s16, 1
        %s191 = smul.addr %s190, 8
        %s192 = smul.addr %s191, 4
        %s193 = scalar_lea.vmem %s0, %s192
        %p194 = scmp.lt.s32.totalorder %s16, 1
        %s195 = scalar_select %p194, %s16, 1
        %s196 = smul.addr %s195, 2
        %s197 = smul.addr %s196, 4
        %s198 = scalar_lea.vmem %s3, %s197
        %v199 = vld [vmem:[%s193] sm:$0xff]
        %v200 = vld [vmem:[%s193 + $0x8] sm:$0xff]
        %v201 = vld [vmem:[%s193 + $0x10] sm:$0xff]
        %v202 = vld [vmem:[%s193 + $0x18] sm:$0xff]
        %v203 = vld [vmem:[#allocation2] sm:$0xff]
        %v204 = vld [vmem:[#allocation2 + $0x20] sm:$0xff]
        %v205 = vld [vmem:[#allocation2 + $0x40] sm:$0xff]
        %v206 = vld [vmem:[#allocation2 + $0x60] sm:$0xff]
        %v207 = vld [vmem:[#allocation2 + $0x80] sm:$0xff]
        %v208 = vld [vmem:[#allocation2 + $0xa0] sm:$0xff]
        %v209 = vld [vmem:[#allocation2 + $0xc0] sm:$0xff]
        %v210 = vld [vmem:[#allocation2 + $0xe0] sm:$0xff]
        %v211 = vld [vmem:[#allocation2 + $0x100] sm:$0xff]
        %v212 = vld [vmem:[#allocation2 + $0x120] sm:$0xff]
        %v213 = vld [vmem:[#allocation2 + $0x140] sm:$0xff]
        %v214 = vld [vmem:[#allocation2 + $0x160] sm:$0xff]
        %v215 = vld [vmem:[#allocation2 + $0x180] sm:$0xff]
        %v216 = vld [vmem:[#allocation2 + $0x1a0] sm:$0xff]
        %v217 = vld [vmem:[#allocation2 + $0x1c0] sm:$0xff]
        %v218 = vld [vmem:[#allocation2 + $0x1e0] sm:$0xff]
        %v219 = vld [vmem:[#allocation2 + $0x200] sm:$0xff]
        %v220 = vld [vmem:[#allocation2 + $0x220] sm:$0xff]
        %v221 = vld [vmem:[#allocation2 + $0x240] sm:$0xff]
        %v222 = vld [vmem:[#allocation2 + $0x260] sm:$0xff]
        %v223 = vld [vmem:[#allocation2 + $0x280] sm:$0xff]
        %v224 = vld [vmem:[#allocation2 + $0x2a0] sm:$0xff]
        %v225 = vld [vmem:[#allocation2 + $0x2c0] sm:$0xff]
        %v226 = vld [vmem:[#allocation2 + $0x2e0] sm:$0xff]
        %v227 = vld [vmem:[#allocation2 + $0x300] sm:$0xff]
        %v228 = vld [vmem:[#allocation2 + $0x320] sm:$0xff]
        %v229 = vld [vmem:[#allocation2 + $0x340] sm:$0xff]
        %v230 = vld [vmem:[#allocation2 + $0x360] sm:$0xff]
        %v231 = vld [vmem:[#allocation2 + $0x380] sm:$0xff]
        %v232 = vld [vmem:[#allocation2 + $0x3a0] sm:$0xff]
        %v233 = vld [vmem:[#allocation2 + $0x3c0] sm:$0xff]
        %v234 = vld [vmem:[#allocation2 + $0x3e0] sm:$0xff]
        %v235 = vld [vmem:[#allocation2 + $0x400] sm:$0xff]
        %v236 = vld [vmem:[#allocation2 + $0x420] sm:$0xff]
        %v237 = vld [vmem:[#allocation2 + $0x440] sm:$0xff]
        %v238 = vld [vmem:[#allocation2 + $0x460] sm:$0xff]
        %v239 = vld [vmem:[#allocation2 + $0x480] sm:$0xff]
        %v240 = vld [vmem:[#allocation2 + $0x4a0] sm:$0xff]
        %v241 = vld [vmem:[#allocation2 + $0x4c0] sm:$0xff]
        %v242 = vld [vmem:[#allocation2 + $0x4e0] sm:$0xff]
        %v243 = vld [vmem:[#allocation2 + $0x500] sm:$0xff]
        %v244 = vld [vmem:[#allocation2 + $0x520] sm:$0xff]
        %v245 = vld [vmem:[#allocation2 + $0x540] sm:$0xff]
        %v246 = vld [vmem:[#allocation2 + $0x560] sm:$0xff]
        %v247 = vld [vmem:[#allocation2 + $0x580] sm:$0xff]
        %v248 = vld [vmem:[#allocation2 + $0x5a0] sm:$0xff]
        %v249 = vld [vmem:[#allocation2 + $0x5c0] sm:$0xff]
        %v250 = vld [vmem:[#allocation2 + $0x5e0] sm:$0xff]
        %v251 = vld [vmem:[#allocation2 + $0x600] sm:$0xff]
        %v252 = vld [vmem:[#allocation2 + $0x620] sm:$0xff]
        %v253 = vld [vmem:[#allocation2 + $0x640] sm:$0xff]
        %v254 = vld [vmem:[#allocation2 + $0x660] sm:$0xff]
        %v255 = vld [vmem:[#allocation2 + $0x680] sm:$0xff]
        %v256 = vld [vmem:[#allocation2 + $0x6a0] sm:$0xff]
        %v257 = vld [vmem:[#allocation2 + $0x6c0] sm:$0xff]
        %v258 = vld [vmem:[#allocation2 + $0x6e0] sm:$0xff]
        %v259 = vld [vmem:[#allocation2 + $0x700] sm:$0xff]
        %v260 = vld [vmem:[#allocation2 + $0x720] sm:$0xff]
        %v261 = vld [vmem:[#allocation2 + $0x740] sm:$0xff]
        %v262 = vld [vmem:[#allocation2 + $0x760] sm:$0xff]
        %v263 = vld [vmem:[#allocation2 + $0x780] sm:$0xff]
        %v264 = vld [vmem:[#allocation2 + $0x7a0] sm:$0xff]
        %v265 = vld [vmem:[#allocation2 + $0x7c0] sm:$0xff]
        %v266 = vld [vmem:[#allocation2 + $0x7e0] sm:$0xff]
        %v267 = vld [vmem:[#allocation2 + $0x800] sm:$0xff]
        %v268 = vld [vmem:[#allocation2 + $0x820] sm:$0xff]
        %v269 = vld [vmem:[#allocation2 + $0x840] sm:$0xff]
        %v270 = vld [vmem:[#allocation2 + $0x860] sm:$0xff]
        %v271 = vld [vmem:[#allocation2 + $0x880] sm:$0xff]
        %v272 = vld [vmem:[#allocation2 + $0x8a0] sm:$0xff]
        %v273 = vld [vmem:[#allocation2 + $0x8c0] sm:$0xff]
        %v274 = vld [vmem:[#allocation2 + $0x8e0] sm:$0xff]
        %v275 = vld [vmem:[#allocation2 + $0x900] sm:$0xff]
        %v276 = vld [vmem:[#allocation2 + $0x920] sm:$0xff]
        %v277 = vld [vmem:[#allocation2 + $0x940] sm:$0xff]
        %v278 = vld [vmem:[#allocation2 + $0x960] sm:$0xff]
        %v279 = vld [vmem:[#allocation2 + $0x980] sm:$0xff]
        %v280 = vld [vmem:[#allocation2 + $0x9a0] sm:$0xff]
        %v281 = vld [vmem:[#allocation2 + $0x9c0] sm:$0xff]
        %v282 = vld [vmem:[#allocation2 + $0x9e0] sm:$0xff]
        %v283 = vld [vmem:[#allocation2 + $0xa00] sm:$0xff]
        %v284 = vld [vmem:[#allocation2 + $0xa20] sm:$0xff]
        %v285 = vld [vmem:[#allocation2 + $0xa40] sm:$0xff]
        %v286 = vld [vmem:[#allocation2 + $0xa60] sm:$0xff]
        %v287 = vld [vmem:[#allocation2 + $0xa80] sm:$0xff]
        %v288 = vld [vmem:[#allocation2 + $0xaa0] sm:$0xff]
        %v289 = vld [vmem:[#allocation2 + $0xac0] sm:$0xff]
        %v290 = vld [vmem:[#allocation2 + $0xae0] sm:$0xff]
        %v291 = vld [vmem:[#allocation2 + $0xb00] sm:$0xff]
        %v292 = vld [vmem:[#allocation2 + $0xb20] sm:$0xff]
        %v293 = vld [vmem:[#allocation2 + $0xb40] sm:$0xff]
        %v294 = vld [vmem:[#allocation2 + $0xb60] sm:$0xff]
        %v295 = vld [vmem:[#allocation2 + $0xb80] sm:$0xff]
        %v296 = vld [vmem:[#allocation2 + $0xba0] sm:$0xff]
        %v297 = vld [vmem:[#allocation2 + $0xbc0] sm:$0xff]
        %v298 = vld [vmem:[#allocation2 + $0xbe0] sm:$0xff]
        %v299 = vld [vmem:[#allocation2 + $0xc00] sm:$0xff]
        %v300 = vld [vmem:[#allocation2 + $0xc20] sm:$0xff]
        %v301 = vld [vmem:[#allocation2 + $0xc40] sm:$0xff]
        %v302 = vld [vmem:[#allocation2 + $0xc60] sm:$0xff]
        %v303 = vld [vmem:[#allocation2 + $0xc80] sm:$0xff]
        %v304 = vld [vmem:[#allocation2 + $0xca0] sm:$0xff]
        %v305 = vld [vmem:[#allocation2 + $0xcc0] sm:$0xff]
        %v306 = vld [vmem:[#allocation2 + $0xce0] sm:$0xff]
        %v307 = vld [vmem:[#allocation2 + $0xd00] sm:$0xff]
        %v308 = vld [vmem:[#allocation2 + $0xd20] sm:$0xff]
        %v309 = vld [vmem:[#allocation2 + $0xd40] sm:$0xff]
        %v310 = vld [vmem:[#allocation2 + $0xd60] sm:$0xff]
        %v311 = vld [vmem:[#allocation2 + $0xd80] sm:$0xff]
        %v312 = vld [vmem:[#allocation2 + $0xda0] sm:$0xff]
        %v313 = vld [vmem:[#allocation2 + $0xdc0] sm:$0xff]
        %v314 = vld [vmem:[#allocation2 + $0xde0] sm:$0xff]
        %v315 = vld [vmem:[#allocation2 + $0xe00] sm:$0xff]
        %v316 = vld [vmem:[#allocation2 + $0xe20] sm:$0xff]
        %v317 = vld [vmem:[#allocation2 + $0xe40] sm:$0xff]
        %v318 = vld [vmem:[#allocation2 + $0xe60] sm:$0xff]
        %v319 = vld [vmem:[#allocation2 + $0xe80] sm:$0xff]
        %v320 = vld [vmem:[#allocation2 + $0xea0] sm:$0xff]
        %v321 = vld [vmem:[#allocation2 + $0xec0] sm:$0xff]
        %v322 = vld [vmem:[#allocation2 + $0xee0] sm:$0xff]
        %v323 = vld [vmem:[#allocation2 + $0xf00] sm:$0xff]
        %v324 = vld [vmem:[#allocation2 + $0xf20] sm:$0xff]
        %v325 = vld [vmem:[#allocation2 + $0xf40] sm:$0xff]
        %v326 = vld [vmem:[#allocation2 + $0xf60] sm:$0xff]
        %v327 = vld [vmem:[#allocation2 + $0xf80] sm:$0xff]
        %v328 = vld [vmem:[#allocation2 + $0xfa0] sm:$0xff]
        %v329 = vld [vmem:[#allocation2 + $0xfc0] sm:$0xff]
        %v330 = vld [vmem:[#allocation2 + $0xfe0] sm:$0xff]
        %v335 = vunpack.c.l.b16 %v199
        %v336 = vunpack.c.h.b16 %v199
        %v337 = vunpack.c.l.b16 %v200
        %v338 = vunpack.c.h.b16 %v200
        %v339 = vunpack.c.l.b16 %v201
        %v340 = vunpack.c.h.b16 %v201
        %v341 = vunpack.c.l.b16 %v202
        %v342 = vunpack.c.h.b16 %v202
        %v343 = vpack.c.b16 %v335, %v335
        %v344 = vpack.c.b16 %v336, %v336
        %v345 = vpack.c.b16 %v337, %v337
        %v346 = vpack.c.b16 %v338, %v338
        %v347 = vpack.c.b16 %v339, %v339
        %v348 = vpack.c.b16 %v340, %v340
        %v349 = vpack.c.b16 %v341, %v341
        %v350 = vpack.c.b16 %v342, %v342
        %v487 = vunpack.c.l.b16 %v203
        %v488 = vunpack.c.h.b16 %v203
        %v489 = vunpack.c.l.b16 %v204
        %v490 = vunpack.c.h.b16 %v204
        %v491 = vunpack.c.l.b16 %v205
        %v492 = vunpack.c.h.b16 %v205
        %v493 = vunpack.c.l.b16 %v206
        %v494 = vunpack.c.h.b16 %v206
        %v495 = vunpack.c.l.b16 %v207
        %v496 = vunpack.c.h.b16 %v207
        %v497 = vunpack.c.l.b16 %v208
        %v498 = vunpack.c.h.b16 %v208
        %v499 = vunpack.c.l.b16 %v209
        %v500 = vunpack.c.h.b16 %v209
        %v501 = vunpack.c.l.b16 %v210
        %v502 = vunpack.c.h.b16 %v210
        %v503 = vunpack.c.l.b16 %v211
        %v504 = vunpack.c.h.b16 %v211
        %v505 = vunpack.c.l.b16 %v212
        %v506 = vunpack.c.h.b16 %v212
        %v507 = vunpack.c.l.b16 %v213
        %v508 = vunpack.c.h.b16 %v213
        %v509 = vunpack.c.l.b16 %v214
        %v510 = vunpack.c.h.b16 %v214
        %v511 = vunpack.c.l.b16 %v215
        %v512 = vunpack.c.h.b16 %v215
        %v513 = vunpack.c.l.b16 %v216
        %v514 = vunpack.c.h.b16 %v216
        %v515 = vunpack.c.l.b16 %v217
        %v516 = vunpack.c.h.b16 %v217
        %v517 = vunpack.c.l.b16 %v218
        %v518 = vunpack.c.h.b16 %v218
        %v519 = vunpack.c.l.b16 %v219
        %v520 = vunpack.c.h.b16 %v219
        %v521 = vunpack.c.l.b16 %v220
        %v522 = vunpack.c.h.b16 %v220
        %v523 = vunpack.c.l.b16 %v221
        %v524 = vunpack.c.h.b16 %v221
        %v525 = vunpack.c.l.b16 %v222
        %v526 = vunpack.c.h.b16 %v222
        %v527 = vunpack.c.l.b16 %v223
        %v528 = vunpack.c.h.b16 %v223
        %v529 = vunpack.c.l.b16 %v224
        %v530 = vunpack.c.h.b16 %v224
        %v531 = vunpack.c.l.b16 %v225
        %v532 = vunpack.c.h.b16 %v225
        %v533 = vunpack.c.l.b16 %v226
        %v534 = vunpack.c.h.b16 %v226
        %v535 = vunpack.c.l.b16 %v227
        %v536 = vunpack.c.h.b16 %v227
        %v537 = vunpack.c.l.b16 %v228
        %v538 = vunpack.c.h.b16 %v228
        %v539 = vunpack.c.l.b16 %v229
        %v540 = vunpack.c.h.b16 %v229
        %v541 = vunpack.c.l.b16 %v230
        %v542 = vunpack.c.h.b16 %v230
        %v543 = vunpack.c.l.b16 %v231
        %v544 = vunpack.c.h.b16 %v231
        %v545 = vunpack.c.l.b16 %v232
        %v546 = vunpack.c.h.b16 %v232
        %v547 = vunpack.c.l.b16 %v233
        %v548 = vunpack.c.h.b16 %v233
        %v549 = vunpack.c.l.b16 %v234
        %v550 = vunpack.c.h.b16 %v234
        %v551 = vunpack.c.l.b16 %v235
        %v552 = vunpack.c.h.b16 %v235
        %v553 = vunpack.c.l.b16 %v236
        %v554 = vunpack.c.h.b16 %v236
        %v555 = vunpack.c.l.b16 %v237
        %v556 = vunpack.c.h.b16 %v237
        %v557 = vunpack.c.l.b16 %v238
        %v558 = vunpack.c.h.b16 %v238
        %v559 = vunpack.c.l.b16 %v239
        %v560 = vunpack.c.h.b16 %v239
        %v561 = vunpack.c.l.b16 %v240
        %v562 = vunpack.c.h.b16 %v240
        %v563 = vunpack.c.l.b16 %v241
        %v564 = vunpack.c.h.b16 %v241
        %v565 = vunpack.c.l.b16 %v242
        %v566 = vunpack.c.h.b16 %v242
        %v567 = vunpack.c.l.b16 %v243
        %v568 = vunpack.c.h.b16 %v243
        %v569 = vunpack.c.l.b16 %v244
        %v570 = vunpack.c.h.b16 %v244
        %v571 = vunpack.c.l.b16 %v245
        %v572 = vunpack.c.h.b16 %v245
        %v573 = vunpack.c.l.b16 %v246
        %v574 = vunpack.c.h.b16 %v246
        %v575 = vunpack.c.l.b16 %v247
        %v576 = vunpack.c.h.b16 %v247
        %v577 = vunpack.c.l.b16 %v248
        %v578 = vunpack.c.h.b16 %v248
        %v579 = vunpack.c.l.b16 %v249
        %v580 = vunpack.c.h.b16 %v249
        %v581 = vunpack.c.l.b16 %v250
        %v582 = vunpack.c.h.b16 %v250
        %v583 = vunpack.c.l.b16 %v251
        %v584 = vunpack.c.h.b16 %v251
        %v585 = vunpack.c.l.b16 %v252
        %v586 = vunpack.c.h.b16 %v252
        %v587 = vunpack.c.l.b16 %v253
        %v588 = vunpack.c.h.b16 %v253
        %v589 = vunpack.c.l.b16 %v254
        %v590 = vunpack.c.h.b16 %v254
        %v591 = vunpack.c.l.b16 %v255
        %v592 = vunpack.c.h.b16 %v255
        %v593 = vunpack.c.l.b16 %v256
        %v594 = vunpack.c.h.b16 %v256
        %v595 = vunpack.c.l.b16 %v257
        %v596 = vunpack.c.h.b16 %v257
        %v597 = vunpack.c.l.b16 %v258
        %v598 = vunpack.c.h.b16 %v258
        %v599 = vunpack.c.l.b16 %v259
        %v600 = vunpack.c.h.b16 %v259
        %v601 = vunpack.c.l.b16 %v260
        %v602 = vunpack.c.h.b16 %v260
        %v603 = vunpack.c.l.b16 %v261
        %v604 = vunpack.c.h.b16 %v261
        %v605 = vunpack.c.l.b16 %v262
        %v606 = vunpack.c.h.b16 %v262
        %v607 = vunpack.c.l.b16 %v263
        %v608 = vunpack.c.h.b16 %v263
        %v609 = vunpack.c.l.b16 %v264
        %v610 = vunpack.c.h.b16 %v264
        %v611 = vunpack.c.l.b16 %v265
        %v612 = vunpack.c.h.b16 %v265
        %v613 = vunpack.c.l.b16 %v266
        %v614 = vunpack.c.h.b16 %v266
        %v615 = vunpack.c.l.b16 %v267
        %v616 = vunpack.c.h.b16 %v267
        %v617 = vunpack.c.l.b16 %v268
        %v618 = vunpack.c.h.b16 %v268
        %v619 = vunpack.c.l.b16 %v269
        %v620 = vunpack.c.h.b16 %v269
        %v621 = vunpack.c.l.b16 %v270
        %v622 = vunpack.c.h.b16 %v270
        %v623 = vunpack.c.l.b16 %v271
        %v624 = vunpack.c.h.b16 %v271
        %v625 = vunpack.c.l.b16 %v272
        %v626 = vunpack.c.h.b16 %v272
        %v627 = vunpack.c.l.b16 %v273
        %v628 = vunpack.c.h.b16 %v273
        %v629 = vunpack.c.l.b16 %v274
        %v630 = vunpack.c.h.b16 %v274
        %v631 = vunpack.c.l.b16 %v275
        %v632 = vunpack.c.h.b16 %v275
        %v633 = vunpack.c.l.b16 %v276
        %v634 = vunpack.c.h.b16 %v276
        %v635 = vunpack.c.l.b16 %v277
        %v636 = vunpack.c.h.b16 %v277
        %v637 = vunpack.c.l.b16 %v278
        %v638 = vunpack.c.h.b16 %v278
        %v639 = vunpack.c.l.b16 %v279
        %v640 = vunpack.c.h.b16 %v279
        %v641 = vunpack.c.l.b16 %v280
        %v642 = vunpack.c.h.b16 %v280
        %v643 = vunpack.c.l.b16 %v281
        %v644 = vunpack.c.h.b16 %v281
        %v645 = vunpack.c.l.b16 %v282
        %v646 = vunpack.c.h.b16 %v282
        %v647 = vunpack.c.l.b16 %v283
        %v648 = vunpack.c.h.b16 %v283
        %v649 = vunpack.c.l.b16 %v284
        %v650 = vunpack.c.h.b16 %v284
        %v651 = vunpack.c.l.b16 %v285
        %v652 = vunpack.c.h.b16 %v285
        %v653 = vunpack.c.l.b16 %v286
        %v654 = vunpack.c.h.b16 %v286
        %v655 = vunpack.c.l.b16 %v287
        %v656 = vunpack.c.h.b16 %v287
        %v657 = vunpack.c.l.b16 %v288
        %v658 = vunpack.c.h.b16 %v288
        %v659 = vunpack.c.l.b16 %v289
        %v660 = vunpack.c.h.b16 %v289
        %v661 = vunpack.c.l.b16 %v290
        %v662 = vunpack.c.h.b16 %v290
        %v663 = vunpack.c.l.b16 %v291
        %v664 = vunpack.c.h.b16 %v291
        %v665 = vunpack.c.l.b16 %v292
        %v666 = vunpack.c.h.b16 %v292
        %v667 = vunpack.c.l.b16 %v293
        %v668 = vunpack.c.h.b16 %v293
        %v669 = vunpack.c.l.b16 %v294
        %v670 = vunpack.c.h.b16 %v294
        %v671 = vunpack.c.l.b16 %v295
        %v672 = vunpack.c.h.b16 %v295
        %v673 = vunpack.c.l.b16 %v296
        %v674 = vunpack.c.h.b16 %v296
        %v675 = vunpack.c.l.b16 %v297
        %v676 = vunpack.c.h.b16 %v297
        %v677 = vunpack.c.l.b16 %v298
        %v678 = vunpack.c.h.b16 %v298
        %v679 = vunpack.c.l.b16 %v299
        %v680 = vunpack.c.h.b16 %v299
        %v681 = vunpack.c.l.b16 %v300
        %v682 = vunpack.c.h.b16 %v300
        %v683 = vunpack.c.l.b16 %v301
        %v684 = vunpack.c.h.b16 %v301
        %v685 = vunpack.c.l.b16 %v302
        %v686 = vunpack.c.h.b16 %v302
        %v687 = vunpack.c.l.b16 %v303
        %v688 = vunpack.c.h.b16 %v303
        %v689 = vunpack.c.l.b16 %v304
        %v690 = vunpack.c.h.b16 %v304
        %v691 = vunpack.c.l.b16 %v305
        %v692 = vunpack.c.h.b16 %v305
        %v693 = vunpack.c.l.b16 %v306
        %v694 = vunpack.c.h.b16 %v306
        %v695 = vunpack.c.l.b16 %v307
        %v696 = vunpack.c.h.b16 %v307
        %v697 = vunpack.c.l.b16 %v308
        %v698 = vunpack.c.h.b16 %v308
        %v699 = vunpack.c.l.b16 %v309
        %v700 = vunpack.c.h.b16 %v309
        %v701 = vunpack.c.l.b16 %v310
        %v702 = vunpack.c.h.b16 %v310
        %v703 = vunpack.c.l.b16 %v311
        %v704 = vunpack.c.h.b16 %v311
        %v705 = vunpack.c.l.b16 %v312
        %v706 = vunpack.c.h.b16 %v312
        %v707 = vunpack.c.l.b16 %v313
        %v708 = vunpack.c.h.b16 %v313
        %v709 = vunpack.c.l.b16 %v314
        %v710 = vunpack.c.h.b16 %v314
        %v711 = vunpack.c.l.b16 %v315
        %v712 = vunpack.c.h.b16 %v315
        %v713 = vunpack.c.l.b16 %v316
        %v714 = vunpack.c.h.b16 %v316
        %v715 = vunpack.c.l.b16 %v317
        %v716 = vunpack.c.h.b16 %v317
        %v717 = vunpack.c.l.b16 %v318
        %v718 = vunpack.c.h.b16 %v318
        %v719 = vunpack.c.l.b16 %v319
        %v720 = vunpack.c.h.b16 %v319
        %v721 = vunpack.c.l.b16 %v320
        %v722 = vunpack.c.h.b16 %v320
        %v723 = vunpack.c.l.b16 %v321
        %v724 = vunpack.c.h.b16 %v321
        %v725 = vunpack.c.l.b16 %v322
        %v726 = vunpack.c.h.b16 %v322
        %v727 = vunpack.c.l.b16 %v323
        %v728 = vunpack.c.h.b16 %v323
        %v729 = vunpack.c.l.b16 %v324
        %v730 = vunpack.c.h.b16 %v324
        %v731 = vunpack.c.l.b16 %v325
        %v732 = vunpack.c.h.b16 %v325
        %v733 = vunpack.c.l.b16 %v326
        %v734 = vunpack.c.h.b16 %v326
        %v735 = vunpack.c.l.b16 %v327
        %v736 = vunpack.c.h.b16 %v327
        %v737 = vunpack.c.l.b16 %v328
        %v738 = vunpack.c.h.b16 %v328
        %v739 = vunpack.c.l.b16 %v329
        %v740 = vunpack.c.h.b16 %v329
        %v741 = vunpack.c.l.b16 %v330
        %v742 = vunpack.c.h.b16 %v330
        %v743 = vpack.c.b16 %v489, %v487
        %v744 = vpack.c.b16 %v490, %v488
        %v745 = vpack.c.b16 %v493, %v491
        %v746 = vpack.c.b16 %v494, %v492
        %v747 = vpack.c.b16 %v497, %v495
        %v748 = vpack.c.b16 %v498, %v496
        %v749 = vpack.c.b16 %v501, %v499
        %v750 = vpack.c.b16 %v502, %v500
        %v751 = vpack.c.b16 %v505, %v503
        %v752 = vpack.c.b16 %v506, %v504
        %v753 = vpack.c.b16 %v509, %v507
        %v754 = vpack.c.b16 %v510, %v508
        %v755 = vpack.c.b16 %v513, %v511
        %v756 = vpack.c.b16 %v514, %v512
        %v757 = vpack.c.b16 %v517, %v515
        %v758 = vpack.c.b16 %v518, %v516
        %v759 = vpack.c.b16 %v521, %v519
        %v760 = vpack.c.b16 %v522, %v520
        %v761 = vpack.c.b16 %v525, %v523
        %v762 = vpack.c.b16 %v526, %v524
        %v763 = vpack.c.b16 %v529, %v527
        %v764 = vpack.c.b16 %v530, %v528
        %v765 = vpack.c.b16 %v533, %v531
        %v766 = vpack.c.b16 %v534, %v532
        %v767 = vpack.c.b16 %v537, %v535
        %v768 = vpack.c.b16 %v538, %v536
        %v769 = vpack.c.b16 %v541, %v539
        %v770 = vpack.c.b16 %v542, %v540
        %v771 = vpack.c.b16 %v545, %v543
        %v772 = vpack.c.b16 %v546, %v544
        %v773 = vpack.c.b16 %v549, %v547
        %v774 = vpack.c.b16 %v550, %v548
        %v775 = vpack.c.b16 %v553, %v551
        %v776 = vpack.c.b16 %v554, %v552
        %v777 = vpack.c.b16 %v557, %v555
        %v778 = vpack.c.b16 %v558, %v556
        %v779 = vpack.c.b16 %v561, %v559
        %v780 = vpack.c.b16 %v562, %v560
        %v781 = vpack.c.b16 %v565, %v563
        %v782 = vpack.c.b16 %v566, %v564
        %v783 = vpack.c.b16 %v569, %v567
        %v784 = vpack.c.b16 %v570, %v568
        %v785 = vpack.c.b16 %v573, %v571
        %v786 = vpack.c.b16 %v574, %v572
        %v787 = vpack.c.b16 %v577, %v575
        %v788 = vpack.c.b16 %v578, %v576
        %v789 = vpack.c.b16 %v581, %v579
        %v790 = vpack.c.b16 %v582, %v580
        %v791 = vpack.c.b16 %v585, %v583
        %v792 = vpack.c.b16 %v586, %v584
        %v793 = vpack.c.b16 %v589, %v587
        %v794 = vpack.c.b16 %v590, %v588
        %v795 = vpack.c.b16 %v593, %v591
        %v796 = vpack.c.b16 %v594, %v592
        %v797 = vpack.c.b16 %v597, %v595
        %v798 = vpack.c.b16 %v598, %v596
        %v799 = vpack.c.b16 %v601, %v599
        %v800 = vpack.c.b16 %v602, %v600
        %v801 = vpack.c.b16 %v605, %v603
        %v802 = vpack.c.b16 %v606, %v604
        %v803 = vpack.c.b16 %v609, %v607
        %v804 = vpack.c.b16 %v610, %v608
        %v805 = vpack.c.b16 %v613, %v611
        %v806 = vpack.c.b16 %v614, %v612
        %v807 = vpack.c.b16 %v617, %v615
        %v808 = vpack.c.b16 %v618, %v616
        %v809 = vpack.c.b16 %v621, %v619
        %v810 = vpack.c.b16 %v622, %v620
        %v811 = vpack.c.b16 %v625, %v623
        %v812 = vpack.c.b16 %v626, %v624
        %v813 = vpack.c.b16 %v629, %v627
        %v814 = vpack.c.b16 %v630, %v628
        %v815 = vpack.c.b16 %v633, %v631
        %v816 = vpack.c.b16 %v634, %v632
        %v817 = vpack.c.b16 %v637, %v635
        %v818 = vpack.c.b16 %v638, %v636
        %v819 = vpack.c.b16 %v641, %v639
        %v820 = vpack.c.b16 %v642, %v640
        %v821 = vpack.c.b16 %v645, %v643
        %v822 = vpack.c.b16 %v646, %v644
        %v823 = vpack.c.b16 %v649, %v647
        %v824 = vpack.c.b16 %v650, %v648
        %v825 = vpack.c.b16 %v653, %v651
        %v826 = vpack.c.b16 %v654, %v652
        %v827 = vpack.c.b16 %v657, %v655
        %v828 = vpack.c.b16 %v658, %v656
        %v829 = vpack.c.b16 %v661, %v659
        %v830 = vpack.c.b16 %v662, %v660
        %v831 = vpack.c.b16 %v665, %v663
        %v832 = vpack.c.b16 %v666, %v664
        %v833 = vpack.c.b16 %v669, %v667
        %v834 = vpack.c.b16 %v670, %v668
        %v835 = vpack.c.b16 %v673, %v671
        %v836 = vpack.c.b16 %v674, %v672
        %v837 = vpack.c.b16 %v677, %v675
        %v838 = vpack.c.b16 %v678, %v676
        %v839 = vpack.c.b16 %v681, %v679
        %v840 = vpack.c.b16 %v682, %v680
        %v841 = vpack.c.b16 %v685, %v683
        %v842 = vpack.c.b16 %v686, %v684
        %v843 = vpack.c.b16 %v689, %v687
        %v844 = vpack.c.b16 %v690, %v688
        %v845 = vpack.c.b16 %v693, %v691
        %v846 = vpack.c.b16 %v694, %v692
        %v847 = vpack.c.b16 %v697, %v695
        %v848 = vpack.c.b16 %v698, %v696
        %v849 = vpack.c.b16 %v701, %v699
        %v850 = vpack.c.b16 %v702, %v700
        %v851 = vpack.c.b16 %v705, %v703
        %v852 = vpack.c.b16 %v706, %v704
        %v853 = vpack.c.b16 %v709, %v707
        %v854 = vpack.c.b16 %v710, %v708
        %v855 = vpack.c.b16 %v713, %v711
        %v856 = vpack.c.b16 %v714, %v712
        %v857 = vpack.c.b16 %v717, %v715
        %v858 = vpack.c.b16 %v718, %v716
        %v859 = vpack.c.b16 %v721, %v719
        %v860 = vpack.c.b16 %v722, %v720
        %v861 = vpack.c.b16 %v725, %v723
        %v862 = vpack.c.b16 %v726, %v724
        %v863 = vpack.c.b16 %v729, %v727
        %v864 = vpack.c.b16 %v730, %v728
        %v865 = vpack.c.b16 %v733, %v731
        %v866 = vpack.c.b16 %v734, %v732
        %v867 = vpack.c.b16 %v737, %v735
        %v868 = vpack.c.b16 %v738, %v736
        %v869 = vpack.c.b16 %v741, %v739
        %v870 = vpack.c.b16 %v742, %v740
        %999 = vmatprep.subr.bf16.mxu0 %v744
        %1000 = vmatpush1.bf16.msra.mxu0 %v743
        %1001 = vmatprep.subr.bf16.mxu0 %v746
        %1002 = vmatpush1.bf16.msra.mxu0 %v745
        %1003 = vmatprep.subr.bf16.mxu0 %v748
        %1004 = vmatpush1.bf16.msra.mxu0 %v747
        %1005 = vmatprep.subr.bf16.mxu0 %v750
        %1006 = vmatpush1.bf16.msra.mxu0 %v749
        %1007 = vmatprep.subr.bf16.mxu0 %v752
        %1008 = vmatpush1.bf16.msra.mxu0 %v751
        %1009 = vmatprep.subr.bf16.mxu0 %v754
        %1010 = vmatpush1.bf16.msra.mxu0 %v753
        %1011 = vmatprep.subr.bf16.mxu0 %v756
        %1012 = vmatpush1.bf16.msra.mxu0 %v755
        %1013 = vmatprep.subr.bf16.mxu0 %v758
        %1014 = vmatpush1.bf16.msra.mxu0 %v757
        %1015 = vmatprep.subr.bf16.mxu0 %v760
        %1016 = vmatpush1.bf16.msra.mxu0 %v759
        %1017 = vmatprep.subr.bf16.mxu0 %v762
        %1018 = vmatpush1.bf16.msra.mxu0 %v761
        %1019 = vmatprep.subr.bf16.mxu0 %v764
        %1020 = vmatpush1.bf16.msra.mxu0 %v763
        %1021 = vmatprep.subr.bf16.mxu0 %v766
        %1022 = vmatpush1.bf16.msra.mxu0 %v765
        %1023 = vmatprep.subr.bf16.mxu0 %v768
        %1024 = vmatpush1.bf16.msra.mxu0 %v767
        %1025 = vmatprep.subr.bf16.mxu0 %v770
        %1026 = vmatpush1.bf16.msra.mxu0 %v769
        %1027 = vmatprep.subr.bf16.mxu0 %v772
        %1028 = vmatpush1.bf16.msra.mxu0 %v771
        %1029 = vmatprep.subr.bf16.mxu0 %v774
        %1030 = vmatpush1.bf16.msra.mxu0 %v773
        %1031 = vmatprep.mubr.bf16.mxu0 %v344
        %1032 = vmatmul.mubr.bf16.gmra.mrb[0].mxu0 %v343
        %v1033 = vpop.f32.mrb[0].mxu0
        %v1034 = vadd.f32 0.0, %v1033
        %v1035 = vpop.f32.mrb[0].mxu0
        %v1036 = vadd.f32 0.0, %v1035
        %v1037 = vpop.f32.mrb[0].mxu0
        %v1038 = vpop.f32.mrb[0].mxu0
        %1039 = vdwg.mxu0
        %1040 = vmatprep.subr.bf16.mxu0 %v776
        %1041 = vmatpush1.bf16.msra.mxu0 %v775
        %1042 = vmatprep.subr.bf16.mxu0 %v778
        %1043 = vmatpush1.bf16.msra.mxu0 %v777
        %1044 = vmatprep.subr.bf16.mxu0 %v780
        %1045 = vmatpush1.bf16.msra.mxu0 %v779
        %1046 = vmatprep.subr.bf16.mxu0 %v782
        %1047 = vmatpush1.bf16.msra.mxu0 %v781
        %1048 = vmatprep.subr.bf16.mxu0 %v784
        %1049 = vmatpush1.bf16.msra.mxu0 %v783
        %1050 = vmatprep.subr.bf16.mxu0 %v786
        %1051 = vmatpush1.bf16.msra.mxu0 %v785
        %1052 = vmatprep.subr.bf16.mxu0 %v788
        %1053 = vmatpush1.bf16.msra.mxu0 %v787
        %1054 = vmatprep.subr.bf16.mxu0 %v790
        %1055 = vmatpush1.bf16.msra.mxu0 %v789
        %1056 = vmatprep.subr.bf16.mxu0 %v792
        %1057 = vmatpush1.bf16.msra.mxu0 %v791
        %1058 = vmatprep.subr.bf16.mxu0 %v794
        %1059 = vmatpush1.bf16.msra.mxu0 %v793
        %1060 = vmatprep.subr.bf16.mxu0 %v796
        %1061 = vmatpush1.bf16.msra.mxu0 %v795
        %1062 = vmatprep.subr.bf16.mxu0 %v798
        %1063 = vmatpush1.bf16.msra.mxu0 %v797
        %1064 = vmatprep.subr.bf16.mxu0 %v800
        %1065 = vmatpush1.bf16.msra.mxu0 %v799
        %1066 = vmatprep.subr.bf16.mxu0 %v802
        %1067 = vmatpush1.bf16.msra.mxu0 %v801
        %1068 = vmatprep.subr.bf16.mxu0 %v804
        %1069 = vmatpush1.bf16.msra.mxu0 %v803
        %1070 = vmatprep.subr.bf16.mxu0 %v806
        %1071 = vmatpush1.bf16.msra.mxu0 %v805
        %1072 = vmatprep.mubr.bf16.mxu0 %v346
        %1073 = vmatmul.mubr.bf16.gmra.mrb[0].mxu0 %v345
        %v1074 = vpop.f32.mrb[0].mxu0
        %v1075 = vadd.f32 %v1034, %v1074
        %v1076 = vpop.f32.mrb[0].mxu0
        %v1077 = vadd.f32 %v1036, %v1076
        %v1078 = vpop.f32.mrb[0].mxu0
        %v1079 = vpop.f32.mrb[0].mxu0
        %1080 = vdwg.mxu0
        %1081 = vmatprep.subr.bf16.mxu0 %v808
        %1082 = vmatpush1.bf16.msra.mxu0 %v807
        %1083 = vmatprep.subr.bf16.mxu0 %v810
        %1084 = vmatpush1.bf16.msra.mxu0 %v809
        %1085 = vmatprep.subr.bf16.mxu0 %v812
        %1086 = vmatpush1.bf16.msra.mxu0 %v811
        %1087 = vmatprep.subr.bf16.mxu0 %v814
        %1088 = vmatpush1.bf16.msra.mxu0 %v813
        %1089 = vmatprep.subr.bf16.mxu0 %v816
        %1090 = vmatpush1.bf16.msra.mxu0 %v815
        %1091 = vmatprep.subr.bf16.mxu0 %v818
        %1092 = vmatpush1.bf16.msra.mxu0 %v817
        %1093 = vmatprep.subr.bf16.mxu0 %v820
        %1094 = vmatpush1.bf16.msra.mxu0 %v819
        %1095 = vmatprep.subr.bf16.mxu0 %v822
        %1096 = vmatpush1.bf16.msra.mxu0 %v821
        %1097 = vmatprep.subr.bf16.mxu0 %v824
        %1098 = vmatpush1.bf16.msra.mxu0 %v823
        %1099 = vmatprep.subr.bf16.mxu0 %v826
        %1100 = vmatpush1.bf16.msra.mxu0 %v825
        %1101 = vmatprep.subr.bf16.mxu0 %v828
        %1102 = vmatpush1.bf16.msra.mxu0 %v827
        %1103 = vmatprep.subr.bf16.mxu0 %v830
        %1104 = vmatpush1.bf16.msra.mxu0 %v829
        %1105 = vmatprep.subr.bf16.mxu0 %v832
        %1106 = vmatpush1.bf16.msra.mxu0 %v831
        %1107 = vmatprep.subr.bf16.mxu0 %v834
        %1108 = vmatpush1.bf16.msra.mxu0 %v833
        %1109 = vmatprep.subr.bf16.mxu0 %v836
        %1110 = vmatpush1.bf16.msra.mxu0 %v835
        %1111 = vmatprep.subr.bf16.mxu0 %v838
        %1112 = vmatpush1.bf16.msra.mxu0 %v837
        %1113 = vmatprep.mubr.bf16.mxu0 %v348
        %1114 = vmatmul.mubr.bf16.gmra.mrb[0].mxu0 %v347
        %v1115 = vpop.f32.mrb[0].mxu0
        %v1116 = vadd.f32 %v1075, %v1115
        %v1117 = vpop.f32.mrb[0].mxu0
        %v1118 = vadd.f32 %v1077, %v1117
        %v1119 = vpop.f32.mrb[0].mxu0
        %v1120 = vpop.f32.mrb[0].mxu0
        %1121 = vdwg.mxu0
        %1122 = vmatprep.subr.bf16.mxu0 %v840
        %1123 = vmatpush1.bf16.msra.mxu0 %v839
        %1124 = vmatprep.subr.bf16.mxu0 %v842
        %1125 = vmatpush1.bf16.msra.mxu0 %v841
        %1126 = vmatprep.subr.bf16.mxu0 %v844
        %1127 = vmatpush1.bf16.msra.mxu0 %v843
        %1128 = vmatprep.subr.bf16.mxu0 %v846
        %1129 = vmatpush1.bf16.msra.mxu0 %v845
        %1130 = vmatprep.subr.bf16.mxu0 %v848
        %1131 = vmatpush1.bf16.msra.mxu0 %v847
        %1132 = vmatprep.subr.bf16.mxu0 %v850
        %1133 = vmatpush1.bf16.msra.mxu0 %v849
        %1134 = vmatprep.subr.bf16.mxu0 %v852
        %1135 = vmatpush1.bf16.msra.mxu0 %v851
        %1136 = vmatprep.subr.bf16.mxu0 %v854
        %1137 = vmatpush1.bf16.msra.mxu0 %v853
        %1138 = vmatprep.subr.bf16.mxu0 %v856
        %1139 = vmatpush1.bf16.msra.mxu0 %v855
        %1140 = vmatprep.subr.bf16.mxu0 %v858
        %1141 = vmatpush1.bf16.msra.mxu0 %v857
        %1142 = vmatprep.subr.bf16.mxu0 %v860
        %1143 = vmatpush1.bf16.msra.mxu0 %v859
        %1144 = vmatprep.subr.bf16.mxu0 %v862
        %1145 = vmatpush1.bf16.msra.mxu0 %v861
        %1146 = vmatprep.subr.bf16.mxu0 %v864
        %1147 = vmatpush1.bf16.msra.mxu0 %v863
        %1148 = vmatprep.subr.bf16.mxu0 %v866
        %1149 = vmatpush1.bf16.msra.mxu0 %v865
        %1150 = vmatprep.subr.bf16.mxu0 %v868
        %1151 = vmatpush1.bf16.msra.mxu0 %v867
        %1152 = vmatprep.subr.bf16.mxu0 %v870
        %1153 = vmatpush1.bf16.msra.mxu0 %v869
        %1154 = vmatprep.mubr.bf16.mxu0 %v350
        %1155 = vmatmul.mubr.bf16.gmra.mrb[0].mxu0 %v349
        %v1156 = vpop.f32.mrb[0].mxu0
        %v1157 = vadd.f32 %v1116, %v1156
        %v1158 = vpop.f32.mrb[0].mxu0
        %v1159 = vadd.f32 %v1118, %v1158
        %v1160 = vpop.f32.mrb[0].mxu0
        %v1161 = vpop.f32.mrb[0].mxu0
        %1162 = vdwg.mxu0
        %v1163 = vld [vmem:[#allocation2 + $0x8] sm:$0xff]
        %v1164 = vld [vmem:[#allocation2 + $0x28] sm:$0xff]
        %v1165 = vld [vmem:[#allocation2 + $0x48] sm:$0xff]
        %v1166 = vld [vmem:[#allocation2 + $0x68] sm:$0xff]
        %v1167 = vld [vmem:[#allocation2 + $0x88] sm:$0xff]
        %v1168 = vld [vmem:[#allocation2 + $0xa8] sm:$0xff]
        %v1169 = vld [vmem:[#allocation2 + $0xc8] sm:$0xff]
        %v1170 = vld [vmem:[#allocation2 + $0xe8] sm:$0xff]
        %v1171 = vld [vmem:[#allocation2 + $0x108] sm:$0xff]
        %v1172 = vld [vmem:[#allocation2 + $0x128] sm:$0xff]
        %v1173 = vld [vmem:[#allocation2 + $0x148] sm:$0xff]
        %v1174 = vld [vmem:[#allocation2 + $0x168] sm:$0xff]
        %v1175 = vld [vmem:[#allocation2 + $0x188] sm:$0xff]
        %v1176 = vld [vmem:[#allocation2 + $0x1a8] sm:$0xff]
        %v1177 = vld [vmem:[#allocation2 + $0x1c8] sm:$0xff]
        %v1178 = vld [vmem:[#allocation2 + $0x1e8] sm:$0xff]
        %v1179 = vld [vmem:[#allocation2 + $0x208] sm:$0xff]
        %v1180 = vld [vmem:[#allocation2 + $0x228] sm:$0xff]
        %v1181 = vld [vmem:[#allocation2 + $0x248] sm:$0xff]
        %v1182 = vld [vmem:[#allocation2 + $0x268] sm:$0xff]
        %v1183 = vld [vmem:[#allocation2 + $0x288] sm:$0xff]
        %v1184 = vld [vmem:[#allocation2 + $0x2a8] sm:$0xff]
        %v1185 = vld [vmem:[#allocation2 + $0x2c8] sm:$0xff]
        %v1186 = vld [vmem:[#allocation2 + $0x2e8] sm:$0xff]
        %v1187 = vld [vmem:[#allocation2 + $0x308] sm:$0xff]
        %v1188 = vld [vmem:[#allocation2 + $0x328] sm:$0xff]
        %v1189 = vld [vmem:[#allocation2 + $0x348] sm:$0xff]
        %v1190 = vld [vmem:[#allocation2 + $0x368] sm:$0xff]
        %v1191 = vld [vmem:[#allocation2 + $0x388] sm:$0xff]
        %v1192 = vld [vmem:[#allocation2 + $0x3a8] sm:$0xff]
        %v1193 = vld [vmem:[#allocation2 + $0x3c8] sm:$0xff]
        %v1194 = vld [vmem:[#allocation2 + $0x3e8] sm:$0xff]
        %v1195 = vld [vmem:[#allocation2 + $0x408] sm:$0xff]
        %v1196 = vld [vmem:[#allocation2 + $0x428] sm:$0xff]
        %v1197 = vld [vmem:[#allocation2 + $0x448] sm:$0xff]
        %v1198 = vld [vmem:[#allocation2 + $0x468] sm:$0xff]
        %v1199 = vld [vmem:[#allocation2 + $0x488] sm:$0xff]
        %v1200 = vld [vmem:[#allocation2 + $0x4a8] sm:$0xff]
        %v1201 = vld [vmem:[#allocation2 + $0x4c8] sm:$0xff]
        %v1202 = vld [vmem:[#allocation2 + $0x4e8] sm:$0xff]
        %v1203 = vld [vmem:[#allocation2 + $0x508] sm:$0xff]
        %v1204 = vld [vmem:[#allocation2 + $0x528] sm:$0xff]
        %v1205 = vld [vmem:[#allocation2 + $0x548] sm:$0xff]
        %v1206 = vld [vmem:[#allocation2 + $0x568] sm:$0xff]
        %v1207 = vld [vmem:[#allocation2 + $0x588] sm:$0xff]
        %v1208 = vld [vmem:[#allocation2 + $0x5a8] sm:$0xff]
        %v1209 = vld [vmem:[#allocation2 + $0x5c8] sm:$0xff]
        %v1210 = vld [vmem:[#allocation2 + $0x5e8] sm:$0xff]
        %v1211 = vld [vmem:[#allocation2 + $0x608] sm:$0xff]
        %v1212 = vld [vmem:[#allocation2 + $0x628] sm:$0xff]
        %v1213 = vld [vmem:[#allocation2 + $0x648] sm:$0xff]
        %v1214 = vld [vmem:[#allocation2 + $0x668] sm:$0xff]
        %v1215 = vld [vmem:[#allocation2 + $0x688] sm:$0xff]
        %v1216 = vld [vmem:[#allocation2 + $0x6a8] sm:$0xff]
        %v1217 = vld [vmem:[#allocation2 + $0x6c8] sm:$0xff]
        %v1218 = vld [vmem:[#allocation2 + $0x6e8] sm:$0xff]
        %v1219 = vld [vmem:[#allocation2 + $0x708] sm:$0xff]
        %v1220 = vld [vmem:[#allocation2 + $0x728] sm:$0xff]
        %v1221 = vld [vmem:[#allocation2 + $0x748] sm:$0xff]
        %v1222 = vld [vmem:[#allocation2 + $0x768] sm:$0xff]
        %v1223 = vld [vmem:[#allocation2 + $0x788] sm:$0xff]
        %v1224 = vld [vmem:[#allocation2 + $0x7a8] sm:$0xff]
        %v1225 = vld [vmem:[#allocation2 + $0x7c8] sm:$0xff]
        %v1226 = vld [vmem:[#allocation2 + $0x7e8] sm:$0xff]
        %v1227 = vld [vmem:[#allocation2 + $0x808] sm:$0xff]
        %v1228 = vld [vmem:[#allocation2 + $0x828] sm:$0xff]
        %v1229 = vld [vmem:[#allocation2 + $0x848] sm:$0xff]
        %v1230 = vld [vmem:[#allocation2 + $0x868] sm:$0xff]
        %v1231 = vld [vmem:[#allocation2 + $0x888] sm:$0xff]
        %v1232 = vld [vmem:[#allocation2 + $0x8a8] sm:$0xff]
        %v1233 = vld [vmem:[#allocation2 + $0x8c8] sm:$0xff]
        %v1234 = vld [vmem:[#allocation2 + $0x8e8] sm:$0xff]
        %v1235 = vld [vmem:[#allocation2 + $0x908] sm:$0xff]
        %v1236 = vld [vmem:[#allocation2 + $0x928] sm:$0xff]
        %v1237 = vld [vmem:[#allocation2 + $0x948] sm:$0xff]
        %v1238 = vld [vmem:[#allocation2 + $0x968] sm:$0xff]
        %v1239 = vld [vmem:[#allocation2 + $0x988] sm:$0xff]
        %v1240 = vld [vmem:[#allocation2 + $0x9a8] sm:$0xff]
        %v1241 = vld [vmem:[#allocation2 + $0x9c8] sm:$0xff]
        %v1242 = vld [vmem:[#allocation2 + $0x9e8] sm:$0xff]
        %v1243 = vld [vmem:[#allocation2 + $0xa08] sm:$0xff]
        %v1244 = vld [vmem:[#allocation2 + $0xa28] sm:$0xff]
        %v1245 = vld [vmem:[#allocation2 + $0xa48] sm:$0xff]
        %v1246 = vld [vmem:[#allocation2 + $0xa68] sm:$0xff]
        %v1247 = vld [vmem:[#allocation2 + $0xa88] sm:$0xff]
        %v1248 = vld [vmem:[#allocation2 + $0xaa8] sm:$0xff]
        %v1249 = vld [vmem:[#allocation2 + $0xac8] sm:$0xff]
        %v1250 = vld [vmem:[#allocation2 + $0xae8] sm:$0xff]
        %v1251 = vld [vmem:[#allocation2 + $0xb08] sm:$0xff]
        %v1252 = vld [vmem:[#allocation2 + $0xb28] sm:$0xff]
        %v1253 = vld [vmem:[#allocation2 + $0xb48] sm:$0xff]
        %v1254 = vld [vmem:[#allocation2 + $0xb68] sm:$0xff]
        %v1255 = vld [vmem:[#allocation2 + $0xb88] sm:$0xff]
        %v1256 = vld [vmem:[#allocation2 + $0xba8] sm:$0xff]
        %v1257 = vld [vmem:[#allocation2 + $0xbc8] sm:$0xff]
        %v1258 = vld [vmem:[#allocation2 + $0xbe8] sm:$0xff]
        %v1259 = vld [vmem:[#allocation2 + $0xc08] sm:$0xff]
        %v1260 = vld [vmem:[#allocation2 + $0xc28] sm:$0xff]
        %v1261 = vld [vmem:[#allocation2 + $0xc48] sm:$0xff]
        %v1262 = vld [vmem:[#allocation2 + $0xc68] sm:$0xff]
        %v1263 = vld [vmem:[#allocation2 + $0xc88] sm:$0xff]
        %v1264 = vld [vmem:[#allocation2 + $0xca8] sm:$0xff]
        %v1265 = vld [vmem:[#allocation2 + $0xcc8] sm:$0xff]
        %v1266 = vld [vmem:[#allocation2 + $0xce8] sm:$0xff]
        %v1267 = vld [vmem:[#allocation2 + $0xd08] sm:$0xff]
        %v1268 = vld [vmem:[#allocation2 + $0xd28] sm:$0xff]
        %v1269 = vld [vmem:[#allocation2 + $0xd48] sm:$0xff]
        %v1270 = vld [vmem:[#allocation2 + $0xd68] sm:$0xff]
        %v1271 = vld [vmem:[#allocation2 + $0xd88] sm:$0xff]
        %v1272 = vld [vmem:[#allocation2 + $0xda8] sm:$0xff]
        %v1273 = vld [vmem:[#allocation2 + $0xdc8] sm:$0xff]
        %v1274 = vld [vmem:[#allocation2 + $0xde8] sm:$0xff]
        %v1275 = vld [vmem:[#allocation2 + $0xe08] sm:$0xff]
        %v1276 = vld [vmem:[#allocation2 + $0xe28] sm:$0xff]
        %v1277 = vld [vmem:[#allocation2 + $0xe48] sm:$0xff]
        %v1278 = vld [vmem:[#allocation2 + $0xe68] sm:$0xff]
        %v1279 = vld [vmem:[#allocation2 + $0xe88] sm:$0xff]
        %v1280 = vld [vmem:[#allocation2 + $0xea8] sm:$0xff]
        %v1281 = vld [vmem:[#allocation2 + $0xec8] sm:$0xff]
        %v1282 = vld [vmem:[#allocation2 + $0xee8] sm:$0xff]
        %v1283 = vld [vmem:[#allocation2 + $0xf08] sm:$0xff]
        %v1284 = vld [vmem:[#allocation2 + $0xf28] sm:$0xff]
        %v1285 = vld [vmem:[#allocation2 + $0xf48] sm:$0xff]
        %v1286 = vld [vmem:[#allocation2 + $0xf68] sm:$0xff]
        %v1287 = vld [vmem:[#allocation2 + $0xf88] sm:$0xff]
        %v1288 = vld [vmem:[#allocation2 + $0xfa8] sm:$0xff]
        %v1289 = vld [vmem:[#allocation2 + $0xfc8] sm:$0xff]
        %v1290 = vld [vmem:[#allocation2 + $0xfe8] sm:$0xff]
        %v1419 = vunpack.c.l.b16 %v1163
        %v1420 = vunpack.c.h.b16 %v1163
        %v1421 = vunpack.c.l.b16 %v1164
        %v1422 = vunpack.c.h.b16 %v1164
        %v1423 = vunpack.c.l.b16 %v1165
        %v1424 = vunpack.c.h.b16 %v1165
        %v1425 = vunpack.c.l.b16 %v1166
        %v1426 = vunpack.c.h.b16 %v1166
        %v1427 = vunpack.c.l.b16 %v1167
        %v1428 = vunpack.c.h.b16 %v1167
        %v1429 = vunpack.c.l.b16 %v1168
        %v1430 = vunpack.c.h.b16 %v1168
        %v1431 = vunpack.c.l.b16 %v1169
        %v1432 = vunpack.c.h.b16 %v1169
        %v1433 = vunpack.c.l.b16 %v1170
        %v1434 = vunpack.c.h.b16 %v1170
        %v1435 = vunpack.c.l.b16 %v1171
        %v1436 = vunpack.c.h.b16 %v1171
        %v1437 = vunpack.c.l.b16 %v1172
        %v1438 = vunpack.c.h.b16 %v1172
        %v1439 = vunpack.c.l.b16 %v1173
        %v1440 = vunpack.c.h.b16 %v1173
        %v1441 = vunpack.c.l.b16 %v1174
        %v1442 = vunpack.c.h.b16 %v1174
        %v1443 = vunpack.c.l.b16 %v1175
        %v1444 = vunpack.c.h.b16 %v1175
        %v1445 = vunpack.c.l.b16 %v1176
        %v1446 = vunpack.c.h.b16 %v1176
        %v1447 = vunpack.c.l.b16 %v1177
        %v1448 = vunpack.c.h.b16 %v1177
        %v1449 = vunpack.c.l.b16 %v1178
        %v1450 = vunpack.c.h.b16 %v1178
        %v1451 = vunpack.c.l.b16 %v1179
        %v1452 = vunpack.c.h.b16 %v1179
        %v1453 = vunpack.c.l.b16 %v1180
        %v1454 = vunpack.c.h.b16 %v1180
        %v1455 = vunpack.c.l.b16 %v1181
        %v1456 = vunpack.c.h.b16 %v1181
        %v1457 = vunpack.c.l.b16 %v1182
        %v1458 = vunpack.c.h.b16 %v1182
        %v1459 = vunpack.c.l.b16 %v1183
        %v1460 = vunpack.c.h.b16 %v1183
        %v1461 = vunpack.c.l.b16 %v1184
        %v1462 = vunpack.c.h.b16 %v1184
        %v1463 = vunpack.c.l.b16 %v1185
        %v1464 = vunpack.c.h.b16 %v1185
        %v1465 = vunpack.c.l.b16 %v1186
        %v1466 = vunpack.c.h.b16 %v1186
        %v1467 = vunpack.c.l.b16 %v1187
        %v1468 = vunpack.c.h.b16 %v1187
        %v1469 = vunpack.c.l.b16 %v1188
        %v1470 = vunpack.c.h.b16 %v1188
        %v1471 = vunpack.c.l.b16 %v1189
        %v1472 = vunpack.c.h.b16 %v1189
        %v1473 = vunpack.c.l.b16 %v1190
        %v1474 = vunpack.c.h.b16 %v1190
        %v1475 = vunpack.c.l.b16 %v1191
        %v1476 = vunpack.c.h.b16 %v1191
        %v1477 = vunpack.c.l.b16 %v1192
        %v1478 = vunpack.c.h.b16 %v1192
        %v1479 = vunpack.c.l.b16 %v1193
        %v1480 = vunpack.c.h.b16 %v1193
        %v1481 = vunpack.c.l.b16 %v1194
        %v1482 = vunpack.c.h.b16 %v1194
        %v1483 = vunpack.c.l.b16 %v1195
        %v1484 = vunpack.c.h.b16 %v1195
        %v1485 = vunpack.c.l.b16 %v1196
        %v1486 = vunpack.c.h.b16 %v1196
        %v1487 = vunpack.c.l.b16 %v1197
        %v1488 = vunpack.c.h.b16 %v1197
        %v1489 = vunpack.c.l.b16 %v1198
        %v1490 = vunpack.c.h.b16 %v1198
        %v1491 = vunpack.c.l.b16 %v1199
        %v1492 = vunpack.c.h.b16 %v1199
        %v1493 = vunpack.c.l.b16 %v1200
        %v1494 = vunpack.c.h.b16 %v1200
        %v1495 = vunpack.c.l.b16 %v1201
        %v1496 = vunpack.c.h.b16 %v1201
        %v1497 = vunpack.c.l.b16 %v1202
        %v1498 = vunpack.c.h.b16 %v1202
        %v1499 = vunpack.c.l.b16 %v1203
        %v1500 = vunpack.c.h.b16 %v1203
        %v1501 = vunpack.c.l.b16 %v1204
        %v1502 = vunpack.c.h.b16 %v1204
        %v1503 = vunpack.c.l.b16 %v1205
        %v1504 = vunpack.c.h.b16 %v1205
        %v1505 = vunpack.c.l.b16 %v1206
        %v1506 = vunpack.c.h.b16 %v1206
        %v1507 = vunpack.c.l.b16 %v1207
        %v1508 = vunpack.c.h.b16 %v1207
        %v1509 = vunpack.c.l.b16 %v1208
        %v1510 = vunpack.c.h.b16 %v1208
        %v1511 = vunpack.c.l.b16 %v1209
        %v1512 = vunpack.c.h.b16 %v1209
        %v1513 = vunpack.c.l.b16 %v1210
        %v1514 = vunpack.c.h.b16 %v1210
        %v1515 = vunpack.c.l.b16 %v1211
        %v1516 = vunpack.c.h.b16 %v1211
        %v1517 = vunpack.c.l.b16 %v1212
        %v1518 = vunpack.c.h.b16 %v1212
        %v1519 = vunpack.c.l.b16 %v1213
        %v1520 = vunpack.c.h.b16 %v1213
        %v1521 = vunpack.c.l.b16 %v1214
        %v1522 = vunpack.c.h.b16 %v1214
        %v1523 = vunpack.c.l.b16 %v1215
        %v1524 = vunpack.c.h.b16 %v1215
        %v1525 = vunpack.c.l.b16 %v1216
        %v1526 = vunpack.c.h.b16 %v1216
        %v1527 = vunpack.c.l.b16 %v1217
        %v1528 = vunpack.c.h.b16 %v1217
        %v1529 = vunpack.c.l.b16 %v1218
        %v1530 = vunpack.c.h.b16 %v1218
        %v1531 = vunpack.c.l.b16 %v1219
        %v1532 = vunpack.c.h.b16 %v1219
        %v1533 = vunpack.c.l.b16 %v1220
        %v1534 = vunpack.c.h.b16 %v1220
        %v1535 = vunpack.c.l.b16 %v1221
        %v1536 = vunpack.c.h.b16 %v1221
        %v1537 = vunpack.c.l.b16 %v1222
        %v1538 = vunpack.c.h.b16 %v1222
        %v1539 = vunpack.c.l.b16 %v1223
        %v1540 = vunpack.c.h.b16 %v1223
        %v1541 = vunpack.c.l.b16 %v1224
        %v1542 = vunpack.c.h.b16 %v1224
        %v1543 = vunpack.c.l.b16 %v1225
        %v1544 = vunpack.c.h.b16 %v1225
        %v1545 = vunpack.c.l.b16 %v1226
        %v1546 = vunpack.c.h.b16 %v1226
        %v1547 = vunpack.c.l.b16 %v1227
        %v1548 = vunpack.c.h.b16 %v1227
        %v1549 = vunpack.c.l.b16 %v1228
        %v1550 = vunpack.c.h.b16 %v1228
        %v1551 = vunpack.c.l.b16 %v1229
        %v1552 = vunpack.c.h.b16 %v1229
        %v1553 = vunpack.c.l.b16 %v1230
        %v1554 = vunpack.c.h.b16 %v1230
        %v1555 = vunpack.c.l.b16 %v1231
        %v1556 = vunpack.c.h.b16 %v1231
        %v1557 = vunpack.c.l.b16 %v1232
        %v1558 = vunpack.c.h.b16 %v1232
        %v1559 = vunpack.c.l.b16 %v1233
        %v1560 = vunpack.c.h.b16 %v1233
        %v1561 = vunpack.c.l.b16 %v1234
        %v1562 = vunpack.c.h.b16 %v1234
        %v1563 = vunpack.c.l.b16 %v1235
        %v1564 = vunpack.c.h.b16 %v1235
        %v1565 = vunpack.c.l.b16 %v1236
        %v1566 = vunpack.c.h.b16 %v1236
        %v1567 = vunpack.c.l.b16 %v1237
        %v1568 = vunpack.c.h.b16 %v1237
        %v1569 = vunpack.c.l.b16 %v1238
        %v1570 = vunpack.c.h.b16 %v1238
        %v1571 = vunpack.c.l.b16 %v1239
        %v1572 = vunpack.c.h.b16 %v1239
        %v1573 = vunpack.c.l.b16 %v1240
        %v1574 = vunpack.c.h.b16 %v1240
        %v1575 = vunpack.c.l.b16 %v1241
        %v1576 = vunpack.c.h.b16 %v1241
        %v1577 = vunpack.c.l.b16 %v1242
        %v1578 = vunpack.c.h.b16 %v1242
        %v1579 = vunpack.c.l.b16 %v1243
        %v1580 = vunpack.c.h.b16 %v1243
        %v1581 = vunpack.c.l.b16 %v1244
        %v1582 = vunpack.c.h.b16 %v1244
        %v1583 = vunpack.c.l.b16 %v1245
        %v1584 = vunpack.c.h.b16 %v1245
        %v1585 = vunpack.c.l.b16 %v1246
        %v1586 = vunpack.c.h.b16 %v1246
        %v1587 = vunpack.c.l.b16 %v1247
        %v1588 = vunpack.c.h.b16 %v1247
        %v1589 = vunpack.c.l.b16 %v1248
        %v1590 = vunpack.c.h.b16 %v1248
        %v1591 = vunpack.c.l.b16 %v1249
        %v1592 = vunpack.c.h.b16 %v1249
        %v1593 = vunpack.c.l.b16 %v1250
        %v1594 = vunpack.c.h.b16 %v1250
        %v1595 = vunpack.c.l.b16 %v1251
        %v1596 = vunpack.c.h.b16 %v1251
        %v1597 = vunpack.c.l.b16 %v1252
        %v1598 = vunpack.c.h.b16 %v1252
        %v1599 = vunpack.c.l.b16 %v1253
        %v1600 = vunpack.c.h.b16 %v1253
        %v1601 = vunpack.c.l.b16 %v1254
        %v1602 = vunpack.c.h.b16 %v1254
        %v1603 = vunpack.c.l.b16 %v1255
        %v1604 = vunpack.c.h.b16 %v1255
        %v1605 = vunpack.c.l.b16 %v1256
        %v1606 = vunpack.c.h.b16 %v1256
        %v1607 = vunpack.c.l.b16 %v1257
        %v1608 = vunpack.c.h.b16 %v1257
        %v1609 = vunpack.c.l.b16 %v1258
        %v1610 = vunpack.c.h.b16 %v1258
        %v1611 = vunpack.c.l.b16 %v1259
        %v1612 = vunpack.c.h.b16 %v1259
        %v1613 = vunpack.c.l.b16 %v1260
        %v1614 = vunpack.c.h.b16 %v1260
        %v1615 = vunpack.c.l.b16 %v1261
        %v1616 = vunpack.c.h.b16 %v1261
        %v1617 = vunpack.c.l.b16 %v1262
        %v1618 = vunpack.c.h.b16 %v1262
        %v1619 = vunpack.c.l.b16 %v1263
        %v1620 = vunpack.c.h.b16 %v1263
        %v1621 = vunpack.c.l.b16 %v1264
        %v1622 = vunpack.c.h.b16 %v1264
        %v1623 = vunpack.c.l.b16 %v1265
        %v1624 = vunpack.c.h.b16 %v1265
        %v1625 = vunpack.c.l.b16 %v1266
        %v1626 = vunpack.c.h.b16 %v1266
        %v1627 = vunpack.c.l.b16 %v1267
        %v1628 = vunpack.c.h.b16 %v1267
        %v1629 = vunpack.c.l.b16 %v1268
        %v1630 = vunpack.c.h.b16 %v1268
        %v1631 = vunpack.c.l.b16 %v1269
        %v1632 = vunpack.c.h.b16 %v1269
        %v1633 = vunpack.c.l.b16 %v1270
        %v1634 = vunpack.c.h.b16 %v1270
        %v1635 = vunpack.c.l.b16 %v1271
        %v1636 = vunpack.c.h.b16 %v1271
        %v1637 = vunpack.c.l.b16 %v1272
        %v1638 = vunpack.c.h.b16 %v1272
        %v1639 = vunpack.c.l.b16 %v1273
        %v1640 = vunpack.c.h.b16 %v1273
        %v1641 = vunpack.c.l.b16 %v1274
        %v1642 = vunpack.c.h.b16 %v1274
        %v1643 = vunpack.c.l.b16 %v1275
        %v1644 = vunpack.c.h.b16 %v1275
        %v1645 = vunpack.c.l.b16 %v1276
        %v1646 = vunpack.c.h.b16 %v1276
        %v1647 = vunpack.c.l.b16 %v1277
        %v1648 = vunpack.c.h.b16 %v1277
        %v1649 = vunpack.c.l.b16 %v1278
        %v1650 = vunpack.c.h.b16 %v1278
        %v1651 = vunpack.c.l.b16 %v1279
        %v1652 = vunpack.c.h.b16 %v1279
        %v1653 = vunpack.c.l.b16 %v1280
        %v1654 = vunpack.c.h.b16 %v1280
        %v1655 = vunpack.c.l.b16 %v1281
        %v1656 = vunpack.c.h.b16 %v1281
        %v1657 = vunpack.c.l.b16 %v1282
        %v1658 = vunpack.c.h.b16 %v1282
        %v1659 = vunpack.c.l.b16 %v1283
        %v1660 = vunpack.c.h.b16 %v1283
        %v1661 = vunpack.c.l.b16 %v1284
        %v1662 = vunpack.c.h.b16 %v1284
        %v1663 = vunpack.c.l.b16 %v1285
        %v1664 = vunpack.c.h.b16 %v1285
        %v1665 = vunpack.c.l.b16 %v1286
        %v1666 = vunpack.c.h.b16 %v1286
        %v1667 = vunpack.c.l.b16 %v1287
        %v1668 = vunpack.c.h.b16 %v1287
        %v1669 = vunpack.c.l.b16 %v1288
        %v1670 = vunpack.c.h.b16 %v1288
        %v1671 = vunpack.c.l.b16 %v1289
        %v1672 = vunpack.c.h.b16 %v1289
        %v1673 = vunpack.c.l.b16 %v1290
        %v1674 = vunpack.c.h.b16 %v1290
        %v1675 = vpack.c.b16 %v1421, %v1419
        %v1676 = vpack.c.b16 %v1422, %v1420
        %v1677 = vpack.c.b16 %v1425, %v1423
        %v1678 = vpack.c.b16 %v1426, %v1424
        %v1679 = vpack.c.b16 %v1429, %v1427
        %v1680 = vpack.c.b16 %v1430, %v1428
        %v1681 = vpack.c.b16 %v1433, %v1431
        %v1682 = vpack.c.b16 %v1434, %v1432
        %v1683 = vpack.c.b16 %v1437, %v1435
        %v1684 = vpack.c.b16 %v1438, %v1436
        %v1685 = vpack.c.b16 %v1441, %v1439
        %v1686 = vpack.c.b16 %v1442, %v1440
        %v1687 = vpack.c.b16 %v1445, %v1443
        %v1688 = vpack.c.b16 %v1446, %v1444
        %v1689 = vpack.c.b16 %v1449, %v1447
        %v1690 = vpack.c.b16 %v1450, %v1448
        %v1691 = vpack.c.b16 %v1453, %v1451
        %v1692 = vpack.c.b16 %v1454, %v1452
        %v1693 = vpack.c.b16 %v1457, %v1455
        %v1694 = vpack.c.b16 %v1458, %v1456
        %v1695 = vpack.c.b16 %v1461, %v1459
        %v1696 = vpack.c.b16 %v1462, %v1460
        %v1697 = vpack.c.b16 %v1465, %v1463
        %v1698 = vpack.c.b16 %v1466, %v1464
        %v1699 = vpack.c.b16 %v1469, %v1467
        %v1700 = vpack.c.b16 %v1470, %v1468
        %v1701 = vpack.c.b16 %v1473, %v1471
        %v1702 = vpack.c.b16 %v1474, %v1472
        %v1703 = vpack.c.b16 %v1477, %v1475
        %v1704 = vpack.c.b16 %v1478, %v1476
        %v1705 = vpack.c.b16 %v1481, %v1479
        %v1706 = vpack.c.b16 %v1482, %v1480
        %v1707 = vpack.c.b16 %v1485, %v1483
        %v1708 = vpack.c.b16 %v1486, %v1484
        %v1709 = vpack.c.b16 %v1489, %v1487
        %v1710 = vpack.c.b16 %v1490, %v1488
        %v1711 = vpack.c.b16 %v1493, %v1491
        %v1712 = vpack.c.b16 %v1494, %v1492
        %v1713 = vpack.c.b16 %v1497, %v1495
        %v1714 = vpack.c.b16 %v1498, %v1496
        %v1715 = vpack.c.b16 %v1501, %v1499
        %v1716 = vpack.c.b16 %v1502, %v1500
        %v1717 = vpack.c.b16 %v1505, %v1503
        %v1718 = vpack.c.b16 %v1506, %v1504
        %v1719 = vpack.c.b16 %v1509, %v1507
        %v1720 = vpack.c.b16 %v1510, %v1508
        %v1721 = vpack.c.b16 %v1513, %v1511
        %v1722 = vpack.c.b16 %v1514, %v1512
        %v1723 = vpack.c.b16 %v1517, %v1515
        %v1724 = vpack.c.b16 %v1518, %v1516
        %v1725 = vpack.c.b16 %v1521, %v1519
        %v1726 = vpack.c.b16 %v1522, %v1520
        %v1727 = vpack.c.b16 %v1525, %v1523
        %v1728 = vpack.c.b16 %v1526, %v1524
        %v1729 = vpack.c.b16 %v1529, %v1527
        %v1730 = vpack.c.b16 %v1530, %v1528
        %v1731 = vpack.c.b16 %v1533, %v1531
        %v1732 = vpack.c.b16 %v1534, %v1532
        %v1733 = vpack.c.b16 %v1537, %v1535
        %v1734 = vpack.c.b16 %v1538, %v1536
        %v1735 = vpack.c.b16 %v1541, %v1539
        %v1736 = vpack.c.b16 %v1542, %v1540
        %v1737 = vpack.c.b16 %v1545, %v1543
        %v1738 = vpack.c.b16 %v1546, %v1544
        %v1739 = vpack.c.b16 %v1549, %v1547
        %v1740 = vpack.c.b16 %v1550, %v1548
        %v1741 = vpack.c.b16 %v1553, %v1551
        %v1742 = vpack.c.b16 %v1554, %v1552
        %v1743 = vpack.c.b16 %v1557, %v1555
        %v1744 = vpack.c.b16 %v1558, %v1556
        %v1745 = vpack.c.b16 %v1561, %v1559
        %v1746 = vpack.c.b16 %v1562, %v1560
        %v1747 = vpack.c.b16 %v1565, %v1563
        %v1748 = vpack.c.b16 %v1566, %v1564
        %v1749 = vpack.c.b16 %v1569, %v1567
        %v1750 = vpack.c.b16 %v1570, %v1568
        %v1751 = vpack.c.b16 %v1573, %v1571
        %v1752 = vpack.c.b16 %v1574, %v1572
        %v1753 = vpack.c.b16 %v1577, %v1575
        %v1754 = vpack.c.b16 %v1578, %v1576
        %v1755 = vpack.c.b16 %v1581, %v1579
        %v1756 = vpack.c.b16 %v1582, %v1580
        %v1757 = vpack.c.b16 %v1585, %v1583
        %v1758 = vpack.c.b16 %v1586, %v1584
        %v1759 = vpack.c.b16 %v1589, %v1587
        %v1760 = vpack.c.b16 %v1590, %v1588
        %v1761 = vpack.c.b16 %v1593, %v1591
        %v1762 = vpack.c.b16 %v1594, %v1592
        %v1763 = vpack.c.b16 %v1597, %v1595
        %v1764 = vpack.c.b16 %v1598, %v1596
        %v1765 = vpack.c.b16 %v1601, %v1599
        %v1766 = vpack.c.b16 %v1602, %v1600
        %v1767 = vpack.c.b16 %v1605, %v1603
        %v1768 = vpack.c.b16 %v1606, %v1604
        %v1769 = vpack.c.b16 %v1609, %v1607
        %v1770 = vpack.c.b16 %v1610, %v1608
        %v1771 = vpack.c.b16 %v1613, %v1611
        %v1772 = vpack.c.b16 %v1614, %v1612
        %v1773 = vpack.c.b16 %v1617, %v1615
        %v1774 = vpack.c.b16 %v1618, %v1616
        %v1775 = vpack.c.b16 %v1621, %v1619
        %v1776 = vpack.c.b16 %v1622, %v1620
        %v1777 = vpack.c.b16 %v1625, %v1623
        %v1778 = vpack.c.b16 %v1626, %v1624
        %v1779 = vpack.c.b16 %v1629, %v1627
        %v1780 = vpack.c.b16 %v1630, %v1628
        %v1781 = vpack.c.b16 %v1633, %v1631
        %v1782 = vpack.c.b16 %v1634, %v1632
        %v1783 = vpack.c.b16 %v1637, %v1635
        %v1784 = vpack.c.b16 %v1638, %v1636
        %v1785 = vpack.c.b16 %v1641, %v1639
        %v1786 = vpack.c.b16 %v1642, %v1640
        %v1787 = vpack.c.b16 %v1645, %v1643
        %v1788 = vpack.c.b16 %v1646, %v1644
        %v1789 = vpack.c.b16 %v1649, %v1647
        %v1790 = vpack.c.b16 %v1650, %v1648
        %v1791 = vpack.c.b16 %v1653, %v1651
        %v1792 = vpack.c.b16 %v1654, %v1652
        %v1793 = vpack.c.b16 %v1657, %v1655
        %v1794 = vpack.c.b16 %v1658, %v1656
        %v1795 = vpack.c.b16 %v1661, %v1659
        %v1796 = vpack.c.b16 %v1662, %v1660
        %v1797 = vpack.c.b16 %v1665, %v1663
        %v1798 = vpack.c.b16 %v1666, %v1664
        %v1799 = vpack.c.b16 %v1669, %v1667
        %v1800 = vpack.c.b16 %v1670, %v1668
        %v1801 = vpack.c.b16 %v1673, %v1671
        %v1802 = vpack.c.b16 %v1674, %v1672
        %1931 = vmatprep.subr.bf16.mxu0 %v1676
        %1932 = vmatpush1.bf16.msra.mxu0 %v1675
        %1933 = vmatprep.subr.bf16.mxu0 %v1678
        %1934 = vmatpush1.bf16.msra.mxu0 %v1677
        %1935 = vmatprep.subr.bf16.mxu0 %v1680
        %1936 = vmatpush1.bf16.msra.mxu0 %v1679
        %1937 = vmatprep.subr.bf16.mxu0 %v1682
        %1938 = vmatpush1.bf16.msra.mxu0 %v1681
        %1939 = vmatprep.subr.bf16.mxu0 %v1684
        %1940 = vmatpush1.bf16.msra.mxu0 %v1683
        %1941 = vmatprep.subr.bf16.mxu0 %v1686
        %1942 = vmatpush1.bf16.msra.mxu0 %v1685
        %1943 = vmatprep.subr.bf16.mxu0 %v1688
        %1944 = vmatpush1.bf16.msra.mxu0 %v1687
        %1945 = vmatprep.subr.bf16.mxu0 %v1690
        %1946 = vmatpush1.bf16.msra.mxu0 %v1689
        %1947 = vmatprep.subr.bf16.mxu0 %v1692
        %1948 = vmatpush1.bf16.msra.mxu0 %v1691
        %1949 = vmatprep.subr.bf16.mxu0 %v1694
        %1950 = vmatpush1.bf16.msra.mxu0 %v1693
        %1951 = vmatprep.subr.bf16.mxu0 %v1696
        %1952 = vmatpush1.bf16.msra.mxu0 %v1695
        %1953 = vmatprep.subr.bf16.mxu0 %v1698
        %1954 = vmatpush1.bf16.msra.mxu0 %v1697
        %1955 = vmatprep.subr.bf16.mxu0 %v1700
        %1956 = vmatpush1.bf16.msra.mxu0 %v1699
        %1957 = vmatprep.subr.bf16.mxu0 %v1702
        %1958 = vmatpush1.bf16.msra.mxu0 %v1701
        %1959 = vmatprep.subr.bf16.mxu0 %v1704
        %1960 = vmatpush1.bf16.msra.mxu0 %v1703
        %1961 = vmatprep.subr.bf16.mxu0 %v1706
        %1962 = vmatpush1.bf16.msra.mxu0 %v1705
        %1963 = vmatprep.mubr.bf16.mxu0 %v344
        %1964 = vmatmul.mubr.bf16.gmra.mrb[0].mxu0 %v343
        %v1965 = vpop.f32.mrb[0].mxu0
        %v1966 = vadd.f32 0.0, %v1965
        %v1967 = vpop.f32.mrb[0].mxu0
        %v1968 = vadd.f32 0.0, %v1967
        %v1969 = vpop.f32.mrb[0].mxu0
        %v1970 = vpop.f32.mrb[0].mxu0
        %1971 = vdwg.mxu0
        %1972 = vmatprep.subr.bf16.mxu0 %v1708
        %1973 = vmatpush1.bf16.msra.mxu0 %v1707
        %1974 = vmatprep.subr.bf16.mxu0 %v1710
        %1975 = vmatpush1.bf16.msra.mxu0 %v1709
        %1976 = vmatprep.subr.bf16.mxu0 %v1712
        %1977 = vmatpush1.bf16.msra.mxu0 %v1711
        %1978 = vmatprep.subr.bf16.mxu0 %v1714
        %1979 = vmatpush1.bf16.msra.mxu0 %v1713
        %1980 = vmatprep.subr.bf16.mxu0 %v1716
        %1981 = vmatpush1.bf16.msra.mxu0 %v1715
        %1982 = vmatprep.subr.bf16.mxu0 %v1718
        %1983 = vmatpush1.bf16.msra.mxu0 %v1717
        %1984 = vmatprep.subr.bf16.mxu0 %v1720
        %1985 = vmatpush1.bf16.msra.mxu0 %v1719
        %1986 = vmatprep.subr.bf16.mxu0 %v1722
        %1987 = vmatpush1.bf16.msra.mxu0 %v1721
        %1988 = vmatprep.subr.bf16.mxu0 %v1724
        %1989 = vmatpush1.bf16.msra.mxu0 %v1723
        %1990 = vmatprep.subr.bf16.mxu0 %v1726
        %1991 = vmatpush1.bf16.msra.mxu0 %v1725
        %1992 = vmatprep.subr.bf16.mxu0 %v1728
        %1993 = vmatpush1.bf16.msra.mxu0 %v1727
        %1994 = vmatprep.subr.bf16.mxu0 %v1730
        %1995 = vmatpush1.bf16.msra.mxu0 %v1729
        %1996 = vmatprep.subr.bf16.mxu0 %v1732
        %1997 = vmatpush1.bf16.msra.mxu0 %v1731
        %1998 = vmatprep.subr.bf16.mxu0 %v1734
        %1999 = vmatpush1.bf16.msra.mxu0 %v1733
        %2000 = vmatprep.subr.bf16.mxu0 %v1736
        %2001 = vmatpush1.bf16.msra.mxu0 %v1735
        %2002 = vmatprep.subr.bf16.mxu0 %v1738
        %2003 = vmatpush1.bf16.msra.mxu0 %v1737
        %2004 = vmatprep.mubr.bf16.mxu0 %v346
        %2005 = vmatmul.mubr.bf16.gmra.mrb[0].mxu0 %v345
        %v2006 = vpop.f32.mrb[0].mxu0
        %v2007 = vadd.f32 %v1966, %v2006
        %v2008 = vpop.f32.mrb[0].mxu0
        %v2009 = vadd.f32 %v1968, %v2008
        %v2010 = vpop.f32.mrb[0].mxu0
        %v2011 = vpop.f32.mrb[0].mxu0
        %2012 = vdwg.mxu0
        %2013 = vmatprep.subr.bf16.mxu0 %v1740
        %2014 = vmatpush1.bf16.msra.mxu0 %v1739
        %2015 = vmatprep.subr.bf16.mxu0 %v1742
        %2016 = vmatpush1.bf16.msra.mxu0 %v1741
        %2017 = vmatprep.subr.bf16.mxu0 %v1744
        %2018 = vmatpush1.bf16.msra.mxu0 %v1743
        %2019 = vmatprep.subr.bf16.mxu0 %v1746
        %2020 = vmatpush1.bf16.msra.mxu0 %v1745
        %2021 = vmatprep.subr.bf16.mxu0 %v1748
        %2022 = vmatpush1.bf16.msra.mxu0 %v1747
        %2023 = vmatprep.subr.bf16.mxu0 %v1750
        %2024 = vmatpush1.bf16.msra.mxu0 %v1749
        %2025 = vmatprep.subr.bf16.mxu0 %v1752
        %2026 = vmatpush1.bf16.msra.mxu0 %v1751
        %2027 = vmatprep.subr.bf16.mxu0 %v1754
        %2028 = vmatpush1.bf16.msra.mxu0 %v1753
        %2029 = vmatprep.subr.bf16.mxu0 %v1756
        %2030 = vmatpush1.bf16.msra.mxu0 %v1755
        %2031 = vmatprep.subr.bf16.mxu0 %v1758
        %2032 = vmatpush1.bf16.msra.mxu0 %v1757
        %2033 = vmatprep.subr.bf16.mxu0 %v1760
        %2034 = vmatpush1.bf16.msra.mxu0 %v1759
        %2035 = vmatprep.subr.bf16.mxu0 %v1762
        %2036 = vmatpush1.bf16.msra.mxu0 %v1761
        %2037 = vmatprep.subr.bf16.mxu0 %v1764
        %2038 = vmatpush1.bf16.msra.mxu0 %v1763
        %2039 = vmatprep.subr.bf16.mxu0 %v1766
        %2040 = vmatpush1.bf16.msra.mxu0 %v1765
        %2041 = vmatprep.subr.bf16.mxu0 %v1768
        %2042 = vmatpush1.bf16.msra.mxu0 %v1767
        %2043 = vmatprep.subr.bf16.mxu0 %v1770
        %2044 = vmatpush1.bf16.msra.mxu0 %v1769
        %2045 = vmatprep.mubr.bf16.mxu0 %v348
        %2046 = vmatmul.mubr.bf16.gmra.mrb[0].mxu0 %v347
        %v2047 = vpop.f32.mrb[0].mxu0
        %v2048 = vadd.f32 %v2007, %v2047
        %v2049 = vpop.f32.mrb[0].mxu0
        %v2050 = vadd.f32 %v2009, %v2049
        %v2051 = vpop.f32.mrb[0].mxu0
        %v2052 = vpop.f32.mrb[0].mxu0
        %2053 = vdwg.mxu0
        %2054 = vmatprep.subr.bf16.mxu0 %v1772
        %2055 = vmatpush1.bf16.msra.mxu0 %v1771
        %2056 = vmatprep.subr.bf16.mxu0 %v1774
        %2057 = vmatpush1.bf16.msra.mxu0 %v1773
        %2058 = vmatprep.subr.bf16.mxu0 %v1776
        %2059 = vmatpush1.bf16.msra.mxu0 %v1775
        %2060 = vmatprep.subr.bf16.mxu0 %v1778
        %2061 = vmatpush1.bf16.msra.mxu0 %v1777
        %2062 = vmatprep.subr.bf16.mxu0 %v1780
        %2063 = vmatpush1.bf16.msra.mxu0 %v1779
        %2064 = vmatprep.subr.bf16.mxu0 %v1782
        %2065 = vmatpush1.bf16.msra.mxu0 %v1781
        %2066 = vmatprep.subr.bf16.mxu0 %v1784
        %2067 = vmatpush1.bf16.msra.mxu0 %v1783
        %2068 = vmatprep.subr.bf16.mxu0 %v1786
        %2069 = vmatpush1.bf16.msra.mxu0 %v1785
        %2070 = vmatprep.subr.bf16.mxu0 %v1788
        %2071 = vmatpush1.bf16.msra.mxu0 %v1787
        %2072 = vmatprep.subr.bf16.mxu0 %v1790
        %2073 = vmatpush1.bf16.msra.mxu0 %v1789
        %2074 = vmatprep.subr.bf16.mxu0 %v1792
        %2075 = vmatpush1.bf16.msra.mxu0 %v1791
        %2076 = vmatprep.subr.bf16.mxu0 %v1794
        %2077 = vmatpush1.bf16.msra.mxu0 %v1793
        %2078 = vmatprep.subr.bf16.mxu0 %v1796
        %2079 = vmatpush1.bf16.msra.mxu0 %v1795
        %2080 = vmatprep.subr.bf16.mxu0 %v1798
        %2081 = vmatpush1.bf16.msra.mxu0 %v1797
        %2082 = vmatprep.subr.bf16.mxu0 %v1800
        %2083 = vmatpush1.bf16.msra.mxu0 %v1799
        %2084 = vmatprep.subr.bf16.mxu0 %v1802
        %2085 = vmatpush1.bf16.msra.mxu0 %v1801
        %2086 = vmatprep.mubr.bf16.mxu0 %v350
        %2087 = vmatmul.mubr.bf16.gmra.mrb[0].mxu0 %v349
        %v2088 = vpop.f32.mrb[0].mxu0
        %v2089 = vadd.f32 %v2048, %v2088
        %v2090 = vpop.f32.mrb[0].mxu0
        %v2091 = vadd.f32 %v2050, %v2090
        %v2092 = vpop.f32.mrb[0].mxu0
        %v2093 = vpop.f32.mrb[0].mxu0
        %2094 = vdwg.mxu0
        %v2095 = vmax.f32 %v1157, %v2089
        %v2096 = vmax.f32 %v1159, %v2091
        %v2097 = vld [vmem:[#allocation2 + $0x10] sm:$0xff]
        %v2098 = vld [vmem:[#allocation2 + $0x30] sm:$0xff]
        %v2099 = vld [vmem:[#allocation2 + $0x50] sm:$0xff]
        %v2100 = vld [vmem:[#allocation2 + $0x70] sm:$0xff]
        %v2101 = vld [vmem:[#allocation2 + $0x90] sm:$0xff]
        %v2102 = vld [vmem:[#allocation2 + $0xb0] sm:$0xff]
        %v2103 = vld [vmem:[#allocation2 + $0xd0] sm:$0xff]
        %v2104 = vld [vmem:[#allocation2 + $0xf0] sm:$0xff]
        %v2105 = vld [vmem:[#allocation2 + $0x110] sm:$0xff]
        %v2106 = vld [vmem:[#allocation2 + $0x130] sm:$0xff]
        %v2107 = vld [vmem:[#allocation2 + $0x150] sm:$0xff]
        %v2108 = vld [vmem:[#allocation2 + $0x170] sm:$0xff]
        %v2109 = vld [vmem:[#allocation2 + $0x190] sm:$0xff]
        %v2110 = vld [vmem:[#allocation2 + $0x1b0] sm:$0xff]
        %v2111 = vld [vmem:[#allocation2 + $0x1d0] sm:$0xff]
        %v2112 = vld [vmem:[#allocation2 + $0x1f0] sm:$0xff]
        %v2113 = vld [vmem:[#allocation2 + $0x210] sm:$0xff]
        %v2114 = vld [vmem:[#allocation2 + $0x230] sm:$0xff]
        %v2115 = vld [vmem:[#allocation2 + $0x250] sm:$0xff]
        %v2116 = vld [vmem:[#allocation2 + $0x270] sm:$0xff]
        %v2117 = vld [vmem:[#allocation2 + $0x290] sm:$0xff]
        %v2118 = vld [vmem:[#allocation2 + $0x2b0] sm:$0xff]
        %v2119 = vld [vmem:[#allocation2 + $0x2d0] sm:$0xff]
        %v2120 = vld [vmem:[#allocation2 + $0x2f0] sm:$0xff]
        %v2121 = vld [vmem:[#allocation2 + $0x310] sm:$0xff]
        %v2122 = vld [vmem:[#allocation2 + $0x330] sm:$0xff]
        %v2123 = vld [vmem:[#allocation2 + $0x350] sm:$0xff]
        %v2124 = vld [vmem:[#allocation2 + $0x370] sm:$0xff]
        %v2125 = vld [vmem:[#allocation2 + $0x390] sm:$0xff]
        %v2126 = vld [vmem:[#allocation2 + $0x3b0] sm:$0xff]
        %v2127 = vld [vmem:[#allocation2 + $0x3d0] sm:$0xff]
        %v2128 = vld [vmem:[#allocation2 + $0x3f0] sm:$0xff]
        %v2129 = vld [vmem:[#allocation2 + $0x410] sm:$0xff]
        %v2130 = vld [vmem:[#allocation2 + $0x430] sm:$0xff]
        %v2131 = vld [vmem:[#allocation2 + $0x450] sm:$0xff]
        %v2132 = vld [vmem:[#allocation2 + $0x470] sm:$0xff]
        %v2133 = vld [vmem:[#allocation2 + $0x490] sm:$0xff]
        %v2134 = vld [vmem:[#allocation2 + $0x4b0] sm:$0xff]
        %v2135 = vld [vmem:[#allocation2 + $0x4d0] sm:$0xff]
        %v2136 = vld [vmem:[#allocation2 + $0x4f0] sm:$0xff]
        %v2137 = vld [vmem:[#allocation2 + $0x510] sm:$0xff]
        %v2138 = vld [vmem:[#allocation2 + $0x530] sm:$0xff]
        %v2139 = vld [vmem:[#allocation2 + $0x550] sm:$0xff]
        %v2140 = vld [vmem:[#allocation2 + $0x570] sm:$0xff]
        %v2141 = vld [vmem:[#allocation2 + $0x590] sm:$0xff]
        %v2142 = vld [vmem:[#allocation2 + $0x5b0] sm:$0xff]
        %v2143 = vld [vmem:[#allocation2 + $0x5d0] sm:$0xff]
        %v2144 = vld [vmem:[#allocation2 + $0x5f0] sm:$0xff]
        %v2145 = vld [vmem:[#allocation2 + $0x610] sm:$0xff]
        %v2146 = vld [vmem:[#allocation2 + $0x630] sm:$0xff]
        %v2147 = vld [vmem:[#allocation2 + $0x650] sm:$0xff]
        %v2148 = vld [vmem:[#allocation2 + $0x670] sm:$0xff]
        %v2149 = vld [vmem:[#allocation2 + $0x690] sm:$0xff]
        %v2150 = vld [vmem:[#allocation2 + $0x6b0] sm:$0xff]
        %v2151 = vld [vmem:[#allocation2 + $0x6d0] sm:$0xff]
        %v2152 = vld [vmem:[#allocation2 + $0x6f0] sm:$0xff]
        %v2153 = vld [vmem:[#allocation2 + $0x710] sm:$0xff]
        %v2154 = vld [vmem:[#allocation2 + $0x730] sm:$0xff]
        %v2155 = vld [vmem:[#allocation2 + $0x750] sm:$0xff]
        %v2156 = vld [vmem:[#allocation2 + $0x770] sm:$0xff]
        %v2157 = vld [vmem:[#allocation2 + $0x790] sm:$0xff]
        %v2158 = vld [vmem:[#allocation2 + $0x7b0] sm:$0xff]
        %v2159 = vld [vmem:[#allocation2 + $0x7d0] sm:$0xff]
        %v2160 = vld [vmem:[#allocation2 + $0x7f0] sm:$0xff]
        %v2161 = vld [vmem:[#allocation2 + $0x810] sm:$0xff]
        %v2162 = vld [vmem:[#allocation2 + $0x830] sm:$0xff]
        %v2163 = vld [vmem:[#allocation2 + $0x850] sm:$0xff]
        %v2164 = vld [vmem:[#allocation2 + $0x870] sm:$0xff]
        %v2165 = vld [vmem:[#allocation2 + $0x890] sm:$0xff]
        %v2166 = vld [vmem:[#allocation2 + $0x8b0] sm:$0xff]
        %v2167 = vld [vmem:[#allocation2 + $0x8d0] sm:$0xff]
        %v2168 = vld [vmem:[#allocation2 + $0x8f0] sm:$0xff]
        %v2169 = vld [vmem:[#allocation2 + $0x910] sm:$0xff]
        %v2170 = vld [vmem:[#allocation2 + $0x930] sm:$0xff]
        %v2171 = vld [vmem:[#allocation2 + $0x950] sm:$0xff]
        %v2172 = vld [vmem:[#allocation2 + $0x970] sm:$0xff]
        %v2173 = vld [vmem:[#allocation2 + $0x990] sm:$0xff]
        %v2174 = vld [vmem:[#allocation2 + $0x9b0] sm:$0xff]
        %v2175 = vld [vmem:[#allocation2 + $0x9d0] sm:$0xff]
        %v2176 = vld [vmem:[#allocation2 + $0x9f0] sm:$0xff]
        %v2177 = vld [vmem:[#allocation2 + $0xa10] sm:$0xff]
        %v2178 = vld [vmem:[#allocation2 + $0xa30] sm:$0xff]
        %v2179 = vld [vmem:[#allocation2 + $0xa50] sm:$0xff]
        %v2180 = vld [vmem:[#allocation2 + $0xa70] sm:$0xff]
        %v2181 = vld [vmem:[#allocation2 + $0xa90] sm:$0xff]
        %v2182 = vld [vmem:[#allocation2 + $0xab0] sm:$0xff]
        %v2183 = vld [vmem:[#allocation2 + $0xad0] sm:$0xff]
        %v2184 = vld [vmem:[#allocation2 + $0xaf0] sm:$0xff]
        %v2185 = vld [vmem:[#allocation2 + $0xb10] sm:$0xff]
        %v2186 = vld [vmem:[#allocation2 + $0xb30] sm:$0xff]
        %v2187 = vld [vmem:[#allocation2 + $0xb50] sm:$0xff]
        %v2188 = vld [vmem:[#allocation2 + $0xb70] sm:$0xff]
        %v2189 = vld [vmem:[#allocation2 + $0xb90] sm:$0xff]
        %v2190 = vld [vmem:[#allocation2 + $0xbb0] sm:$0xff]
        %v2191 = vld [vmem:[#allocation2 + $0xbd0] sm:$0xff]
        %v2192 = vld [vmem:[#allocation2 + $0xbf0] sm:$0xff]
        %v2193 = vld [vmem:[#allocation2 + $0xc10] sm:$0xff]
        %v2194 = vld [vmem:[#allocation2 + $0xc30] sm:$0xff]
        %v2195 = vld [vmem:[#allocation2 + $0xc50] sm:$0xff]
        %v2196 = vld [vmem:[#allocation2 + $0xc70] sm:$0xff]
        %v2197 = vld [vmem:[#allocation2 + $0xc90] sm:$0xff]
        %v2198 = vld [vmem:[#allocation2 + $0xcb0] sm:$0xff]
        %v2199 = vld [vmem:[#allocation2 + $0xcd0] sm:$0xff]
        %v2200 = vld [vmem:[#allocation2 + $0xcf0] sm:$0xff]
        %v2201 = vld [vmem:[#allocation2 + $0xd10] sm:$0xff]
        %v2202 = vld [vmem:[#allocation2 + $0xd30] sm:$0xff]
        %v2203 = vld [vmem:[#allocation2 + $0xd50] sm:$0xff]
        %v2204 = vld [vmem:[#allocation2 + $0xd70] sm:$0xff]
        %v2205 = vld [vmem:[#allocation2 + $0xd90] sm:$0xff]
        %v2206 = vld [vmem:[#allocation2 + $0xdb0] sm:$0xff]
        %v2207 = vld [vmem:[#allocation2 + $0xdd0] sm:$0xff]
        %v2208 = vld [vmem:[#allocation2 + $0xdf0] sm:$0xff]
        %v2209 = vld [vmem:[#allocation2 + $0xe10] sm:$0xff]
        %v2210 = vld [vmem:[#allocation2 + $0xe30] sm:$0xff]
        %v2211 = vld [vmem:[#allocation2 + $0xe50] sm:$0xff]
        %v2212 = vld [vmem:[#allocation2 + $0xe70] sm:$0xff]
        %v2213 = vld [vmem:[#allocation2 + $0xe90] sm:$0xff]
        %v2214 = vld [vmem:[#allocation2 + $0xeb0] sm:$0xff]
        %v2215 = vld [vmem:[#allocation2 + $0xed0] sm:$0xff]
        %v2216 = vld [vmem:[#allocation2 + $0xef0] sm:$0xff]
        %v2217 = vld [vmem:[#allocation2 + $0xf10] sm:$0xff]
        %v2218 = vld [vmem:[#allocation2 + $0xf30] sm:$0xff]
        %v2219 = vld [vmem:[#allocation2 + $0xf50] sm:$0xff]
        %v2220 = vld [vmem:[#allocation2 + $0xf70] sm:$0xff]
        %v2221 = vld [vmem:[#allocation2 + $0xf90] sm:$0xff]
        %v2222 = vld [vmem:[#allocation2 + $0xfb0] sm:$0xff]
        %v2223 = vld [vmem:[#allocation2 + $0xfd0] sm:$0xff]
        %v2224 = vld [vmem:[#allocation2 + $0xff0] sm:$0xff]
        %v2353 = vunpack.c.l.b16 %v2097
        %v2354 = vunpack.c.h.b16 %v2097
        %v2355 = vunpack.c.l.b16 %v2098
        %v2356 = vunpack.c.h.b16 %v2098
        %v2357 = vunpack.c.l.b16 %v2099
        %v2358 = vunpack.c.h.b16 %v2099
        %v2359 = vunpack.c.l.b16 %v2100
        %v2360 = vunpack.c.h.b16 %v2100
        %v2361 = vunpack.c.l.b16 %v2101
        %v2362 = vunpack.c.h.b16 %v2101
        %v2363 = vunpack.c.l.b16 %v2102
        %v2364 = vunpack.c.h.b16 %v2102
        %v2365 = vunpack.c.l.b16 %v2103
        %v2366 = vunpack.c.h.b16 %v2103
        %v2367 = vunpack.c.l.b16 %v2104
        %v2368 = vunpack.c.h.b16 %v2104
        %v2369 = vunpack.c.l.b16 %v2105
        %v2370 = vunpack.c.h.b16 %v2105
        %v2371 = vunpack.c.l.b16 %v2106
        %v2372 = vunpack.c.h.b16 %v2106
        %v2373 = vunpack.c.l.b16 %v2107
        %v2374 = vunpack.c.h.b16 %v2107
        %v2375 = vunpack.c.l.b16 %v2108
        %v2376 = vunpack.c.h.b16 %v2108
        %v2377 = vunpack.c.l.b16 %v2109
        %v2378 = vunpack.c.h.b16 %v2109
        %v2379 = vunpack.c.l.b16 %v2110
        %v2380 = vunpack.c.h.b16 %v2110
        %v2381 = vunpack.c.l.b16 %v2111
        %v2382 = vunpack.c.h.b16 %v2111
        %v2383 = vunpack.c.l.b16 %v2112
        %v2384 = vunpack.c.h.b16 %v2112
        %v2385 = vunpack.c.l.b16 %v2113
        %v2386 = vunpack.c.h.b16 %v2113
        %v2387 = vunpack.c.l.b16 %v2114
        %v2388 = vunpack.c.h.b16 %v2114
        %v2389 = vunpack.c.l.b16 %v2115
        %v2390 = vunpack.c.h.b16 %v2115
        %v2391 = vunpack.c.l.b16 %v2116
        %v2392 = vunpack.c.h.b16 %v2116
        %v2393 = vunpack.c.l.b16 %v2117
        %v2394 = vunpack.c.h.b16 %v2117
        %v2395 = vunpack.c.l.b16 %v2118
        %v2396 = vunpack.c.h.b16 %v2118
        %v2397 = vunpack.c.l.b16 %v2119
        %v2398 = vunpack.c.h.b16 %v2119
        %v2399 = vunpack.c.l.b16 %v2120
        %v2400 = vunpack.c.h.b16 %v2120
        %v2401 = vunpack.c.l.b16 %v2121
        %v2402 = vunpack.c.h.b16 %v2121
        %v2403 = vunpack.c.l.b16 %v2122
        %v2404 = vunpack.c.h.b16 %v2122
        %v2405 = vunpack.c.l.b16 %v2123
        %v2406 = vunpack.c.h.b16 %v2123
        %v2407 = vunpack.c.l.b16 %v2124
        %v2408 = vunpack.c.h.b16 %v2124
        %v2409 = vunpack.c.l.b16 %v2125
        %v2410 = vunpack.c.h.b16 %v2125
        %v2411 = vunpack.c.l.b16 %v2126
        %v2412 = vunpack.c.h.b16 %v2126
        %v2413 = vunpack.c.l.b16 %v2127
        %v2414 = vunpack.c.h.b16 %v2127
        %v2415 = vunpack.c.l.b16 %v2128
        %v2416 = vunpack.c.h.b16 %v2128
        %v2417 = vunpack.c.l.b16 %v2129
        %v2418 = vunpack.c.h.b16 %v2129
        %v2419 = vunpack.c.l.b16 %v2130
        %v2420 = vunpack.c.h.b16 %v2130
        %v2421 = vunpack.c.l.b16 %v2131
        %v2422 = vunpack.c.h.b16 %v2131
        %v2423 = vunpack.c.l.b16 %v2132
        %v2424 = vunpack.c.h.b16 %v2132
        %v2425 = vunpack.c.l.b16 %v2133
        %v2426 = vunpack.c.h.b16 %v2133
        %v2427 = vunpack.c.l.b16 %v2134
        %v2428 = vunpack.c.h.b16 %v2134
        %v2429 = vunpack.c.l.b16 %v2135
        %v2430 = vunpack.c.h.b16 %v2135
        %v2431 = vunpack.c.l.b16 %v2136
        %v2432 = vunpack.c.h.b16 %v2136
        %v2433 = vunpack.c.l.b16 %v2137
        %v2434 = vunpack.c.h.b16 %v2137
        %v2435 = vunpack.c.l.b16 %v2138
        %v2436 = vunpack.c.h.b16 %v2138
        %v2437 = vunpack.c.l.b16 %v2139
        %v2438 = vunpack.c.h.b16 %v2139
        %v2439 = vunpack.c.l.b16 %v2140
        %v2440 = vunpack.c.h.b16 %v2140
        %v2441 = vunpack.c.l.b16 %v2141
        %v2442 = vunpack.c.h.b16 %v2141
        %v2443 = vunpack.c.l.b16 %v2142
        %v2444 = vunpack.c.h.b16 %v2142
        %v2445 = vunpack.c.l.b16 %v2143
        %v2446 = vunpack.c.h.b16 %v2143
        %v2447 = vunpack.c.l.b16 %v2144
        %v2448 = vunpack.c.h.b16 %v2144
        %v2449 = vunpack.c.l.b16 %v2145
        %v2450 = vunpack.c.h.b16 %v2145
        %v2451 = vunpack.c.l.b16 %v2146
        %v2452 = vunpack.c.h.b16 %v2146
        %v2453 = vunpack.c.l.b16 %v2147
        %v2454 = vunpack.c.h.b16 %v2147
        %v2455 = vunpack.c.l.b16 %v2148
        %v2456 = vunpack.c.h.b16 %v2148
        %v2457 = vunpack.c.l.b16 %v2149
        %v2458 = vunpack.c.h.b16 %v2149
        %v2459 = vunpack.c.l.b16 %v2150
        %v2460 = vunpack.c.h.b16 %v2150
        %v2461 = vunpack.c.l.b16 %v2151
        %v2462 = vunpack.c.h.b16 %v2151
        %v2463 = vunpack.c.l.b16 %v2152
        %v2464 = vunpack.c.h.b16 %v2152
        %v2465 = vunpack.c.l.b16 %v2153
        %v2466 = vunpack.c.h.b16 %v2153
        %v2467 = vunpack.c.l.b16 %v2154
        %v2468 = vunpack.c.h.b16 %v2154
        %v2469 = vunpack.c.l.b16 %v2155
        %v2470 = vunpack.c.h.b16 %v2155
        %v2471 = vunpack.c.l.b16 %v2156
        %v2472 = vunpack.c.h.b16 %v2156
        %v2473 = vunpack.c.l.b16 %v2157
        %v2474 = vunpack.c.h.b16 %v2157
        %v2475 = vunpack.c.l.b16 %v2158
        %v2476 = vunpack.c.h.b16 %v2158
        %v2477 = vunpack.c.l.b16 %v2159
        %v2478 = vunpack.c.h.b16 %v2159
        %v2479 = vunpack.c.l.b16 %v2160
        %v2480 = vunpack.c.h.b16 %v2160
        %v2481 = vunpack.c.l.b16 %v2161
        %v2482 = vunpack.c.h.b16 %v2161
        %v2483 = vunpack.c.l.b16 %v2162
        %v2484 = vunpack.c.h.b16 %v2162
        %v2485 = vunpack.c.l.b16 %v2163
        %v2486 = vunpack.c.h.b16 %v2163
        %v2487 = vunpack.c.l.b16 %v2164
        %v2488 = vunpack.c.h.b16 %v2164
        %v2489 = vunpack.c.l.b16 %v2165
        %v2490 = vunpack.c.h.b16 %v2165
        %v2491 = vunpack.c.l.b16 %v2166
        %v2492 = vunpack.c.h.b16 %v2166
        %v2493 = vunpack.c.l.b16 %v2167
        %v2494 = vunpack.c.h.b16 %v2167
        %v2495 = vunpack.c.l.b16 %v2168
        %v2496 = vunpack.c.h.b16 %v2168
        %v2497 = vunpack.c.l.b16 %v2169
        %v2498 = vunpack.c.h.b16 %v2169
        %v2499 = vunpack.c.l.b16 %v2170
        %v2500 = vunpack.c.h.b16 %v2170
        %v2501 = vunpack.c.l.b16 %v2171
        %v2502 = vunpack.c.h.b16 %v2171
        %v2503 = vunpack.c.l.b16 %v2172
        %v2504 = vunpack.c.h.b16 %v2172
        %v2505 = vunpack.c.l.b16 %v2173
        %v2506 = vunpack.c.h.b16 %v2173
        %v2507 = vunpack.c.l.b16 %v2174
        %v2508 = vunpack.c.h.b16 %v2174
        %v2509 = vunpack.c.l.b16 %v2175
        %v2510 = vunpack.c.h.b16 %v2175
        %v2511 = vunpack.c.l.b16 %v2176
        %v2512 = vunpack.c.h.b16 %v2176
        %v2513 = vunpack.c.l.b16 %v2177
        %v2514 = vunpack.c.h.b16 %v2177
        %v2515 = vunpack.c.l.b16 %v2178
        %v2516 = vunpack.c.h.b16 %v2178
        %v2517 = vunpack.c.l.b16 %v2179
        %v2518 = vunpack.c.h.b16 %v2179
        %v2519 = vunpack.c.l.b16 %v2180
        %v2520 = vunpack.c.h.b16 %v2180
        %v2521 = vunpack.c.l.b16 %v2181
        %v2522 = vunpack.c.h.b16 %v2181
        %v2523 = vunpack.c.l.b16 %v2182
        %v2524 = vunpack.c.h.b16 %v2182
        %v2525 = vunpack.c.l.b16 %v2183
        %v2526 = vunpack.c.h.b16 %v2183
        %v2527 = vunpack.c.l.b16 %v2184
        %v2528 = vunpack.c.h.b16 %v2184
        %v2529 = vunpack.c.l.b16 %v2185
        %v2530 = vunpack.c.h.b16 %v2185
        %v2531 = vunpack.c.l.b16 %v2186
        %v2532 = vunpack.c.h.b16 %v2186
        %v2533 = vunpack.c.l.b16 %v2187
        %v2534 = vunpack.c.h.b16 %v2187
        %v2535 = vunpack.c.l.b16 %v2188
        %v2536 = vunpack.c.h.b16 %v2188
        %v2537 = vunpack.c.l.b16 %v2189
        %v2538 = vunpack.c.h.b16 %v2189
        %v2539 = vunpack.c.l.b16 %v2190
        %v2540 = vunpack.c.h.b16 %v2190
        %v2541 = vunpack.c.l.b16 %v2191
        %v2542 = vunpack.c.h.b16 %v2191
        %v2543 = vunpack.c.l.b16 %v2192
        %v2544 = vunpack.c.h.b16 %v2192
        %v2545 = vunpack.c.l.b16 %v2193
        %v2546 = vunpack.c.h.b16 %v2193
        %v2547 = vunpack.c.l.b16 %v2194
        %v2548 = vunpack.c.h.b16 %v2194
        %v2549 = vunpack.c.l.b16 %v2195
        %v2550 = vunpack.c.h.b16 %v2195
        %v2551 = vunpack.c.l.b16 %v2196
        %v2552 = vunpack.c.h.b16 %v2196
        %v2553 = vunpack.c.l.b16 %v2197
        %v2554 = vunpack.c.h.b16 %v2197
        %v2555 = vunpack.c.l.b16 %v2198
        %v2556 = vunpack.c.h.b16 %v2198
        %v2557 = vunpack.c.l.b16 %v2199
        %v2558 = vunpack.c.h.b16 %v2199
        %v2559 = vunpack.c.l.b16 %v2200
        %v2560 = vunpack.c.h.b16 %v2200
        %v2561 = vunpack.c.l.b16 %v2201
        %v2562 = vunpack.c.h.b16 %v2201
        %v2563 = vunpack.c.l.b16 %v2202
        %v2564 = vunpack.c.h.b16 %v2202
        %v2565 = vunpack.c.l.b16 %v2203
        %v2566 = vunpack.c.h.b16 %v2203
        %v2567 = vunpack.c.l.b16 %v2204
        %v2568 = vunpack.c.h.b16 %v2204
        %v2569 = vunpack.c.l.b16 %v2205
        %v2570 = vunpack.c.h.b16 %v2205
        %v2571 = vunpack.c.l.b16 %v2206
        %v2572 = vunpack.c.h.b16 %v2206
        %v2573 = vunpack.c.l.b16 %v2207
        %v2574 = vunpack.c.h.b16 %v2207
        %v2575 = vunpack.c.l.b16 %v2208
        %v2576 = vunpack.c.h.b16 %v2208
        %v2577 = vunpack.c.l.b16 %v2209
        %v2578 = vunpack.c.h.b16 %v2209
        %v2579 = vunpack.c.l.b16 %v2210
        %v2580 = vunpack.c.h.b16 %v2210
        %v2581 = vunpack.c.l.b16 %v2211
        %v2582 = vunpack.c.h.b16 %v2211
        %v2583 = vunpack.c.l.b16 %v2212
        %v2584 = vunpack.c.h.b16 %v2212
        %v2585 = vunpack.c.l.b16 %v2213
        %v2586 = vunpack.c.h.b16 %v2213
        %v2587 = vunpack.c.l.b16 %v2214
        %v2588 = vunpack.c.h.b16 %v2214
        %v2589 = vunpack.c.l.b16 %v2215
        %v2590 = vunpack.c.h.b16 %v2215
        %v2591 = vunpack.c.l.b16 %v2216
        %v2592 = vunpack.c.h.b16 %v2216
        %v2593 = vunpack.c.l.b16 %v2217
        %v2594 = vunpack.c.h.b16 %v2217
        %v2595 = vunpack.c.l.b16 %v2218
        %v2596 = vunpack.c.h.b16 %v2218
        %v2597 = vunpack.c.l.b16 %v2219
        %v2598 = vunpack.c.h.b16 %v2219
        %v2599 = vunpack.c.l.b16 %v2220
        %v2600 = vunpack.c.h.b16 %v2220
        %v2601 = vunpack.c.l.b16 %v2221
        %v2602 = vunpack.c.h.b16 %v2221
        %v2603 = vunpack.c.l.b16 %v2222
        %v2604 = vunpack.c.h.b16 %v2222
        %v2605 = vunpack.c.l.b16 %v2223
        %v2606 = vunpack.c.h.b16 %v2223
        %v2607 = vunpack.c.l.b16 %v2224
        %v2608 = vunpack.c.h.b16 %v2224
        %v2609 = vpack.c.b16 %v2355, %v2353
        %v2610 = vpack.c.b16 %v2356, %v2354
        %v2611 = vpack.c.b16 %v2359, %v2357
        %v2612 = vpack.c.b16 %v2360, %v2358
        %v2613 = vpack.c.b16 %v2363, %v2361
        %v2614 = vpack.c.b16 %v2364, %v2362
        %v2615 = vpack.c.b16 %v2367, %v2365
        %v2616 = vpack.c.b16 %v2368, %v2366
        %v2617 = vpack.c.b16 %v2371, %v2369
        %v2618 = vpack.c.b16 %v2372, %v2370
        %v2619 = vpack.c.b16 %v2375, %v2373
        %v2620 = vpack.c.b16 %v2376, %v2374
        %v2621 = vpack.c.b16 %v2379, %v2377
        %v2622 = vpack.c.b16 %v2380, %v2378
        %v2623 = vpack.c.b16 %v2383, %v2381
        %v2624 = vpack.c.b16 %v2384, %v2382
        %v2625 = vpack.c.b16 %v2387, %v2385
        %v2626 = vpack.c.b16 %v2388, %v2386
        %v2627 = vpack.c.b16 %v2391, %v2389
        %v2628 = vpack.c.b16 %v2392, %v2390
        %v2629 = vpack.c.b16 %v2395, %v2393
        %v2630 = vpack.c.b16 %v2396, %v2394
        %v2631 = vpack.c.b16 %v2399, %v2397
        %v2632 = vpack.c.b16 %v2400, %v2398
        %v2633 = vpack.c.b16 %v2403, %v2401
        %v2634 = vpack.c.b16 %v2404, %v2402
        %v2635 = vpack.c.b16 %v2407, %v2405
        %v2636 = vpack.c.b16 %v2408, %v2406
        %v2637 = vpack.c.b16 %v2411, %v2409
        %v2638 = vpack.c.b16 %v2412, %v2410
        %v2639 = vpack.c.b16 %v2415, %v2413
        %v2640 = vpack.c.b16 %v2416, %v2414
        %v2641 = vpack.c.b16 %v2419, %v2417
        %v2642 = vpack.c.b16 %v2420, %v2418
        %v2643 = vpack.c.b16 %v2423, %v2421
        %v2644 = vpack.c.b16 %v2424, %v2422
        %v2645 = vpack.c.b16 %v2427, %v2425
        %v2646 = vpack.c.b16 %v2428, %v2426
        %v2647 = vpack.c.b16 %v2431, %v2429
        %v2648 = vpack.c.b16 %v2432, %v2430
        %v2649 = vpack.c.b16 %v2435, %v2433
        %v2650 = vpack.c.b16 %v2436, %v2434
        %v2651 = vpack.c.b16 %v2439, %v2437
        %v2652 = vpack.c.b16 %v2440, %v2438
        %v2653 = vpack.c.b16 %v2443, %v2441
        %v2654 = vpack.c.b16 %v2444, %v2442
        %v2655 = vpack.c.b16 %v2447, %v2445
        %v2656 = vpack.c.b16 %v2448, %v2446
        %v2657 = vpack.c.b16 %v2451, %v2449
        %v2658 = vpack.c.b16 %v2452, %v2450
        %v2659 = vpack.c.b16 %v2455, %v2453
        %v2660 = vpack.c.b16 %v2456, %v2454
        %v2661 = vpack.c.b16 %v2459, %v2457
        %v2662 = vpack.c.b16 %v2460, %v2458
        %v2663 = vpack.c.b16 %v2463, %v2461
        %v2664 = vpack.c.b16 %v2464, %v2462
        %v2665 = vpack.c.b16 %v2467, %v2465
        %v2666 = vpack.c.b16 %v2468, %v2466
        %v2667 = vpack.c.b16 %v2471, %v2469
        %v2668 = vpack.c.b16 %v2472, %v2470
        %v2669 = vpack.c.b16 %v2475, %v2473
        %v2670 = vpack.c.b16 %v2476, %v2474
        %v2671 = vpack.c.b16 %v2479, %v2477
        %v2672 = vpack.c.b16 %v2480, %v2478
        %v2673 = vpack.c.b16 %v2483, %v2481
        %v2674 = vpack.c.b16 %v2484, %v2482
        %v2675 = vpack.c.b16 %v2487, %v2485
        %v2676 = vpack.c.b16 %v2488, %v2486
        %v2677 = vpack.c.b16 %v2491, %v2489
        %v2678 = vpack.c.b16 %v2492, %v2490
        %v2679 = vpack.c.b16 %v2495, %v2493
        %v2680 = vpack.c.b16 %v2496, %v2494
        %v2681 = vpack.c.b16 %v2499, %v2497
        %v2682 = vpack.c.b16 %v2500, %v2498
        %v2683 = vpack.c.b16 %v2503, %v2501
        %v2684 = vpack.c.b16 %v2504, %v2502
        %v2685 = vpack.c.b16 %v2507, %v2505
        %v2686 = vpack.c.b16 %v2508, %v2506
        %v2687 = vpack.c.b16 %v2511, %v2509
        %v2688 = vpack.c.b16 %v2512, %v2510
        %v2689 = vpack.c.b16 %v2515, %v2513
        %v2690 = vpack.c.b16 %v2516, %v2514
        %v2691 = vpack.c.b16 %v2519, %v2517
        %v2692 = vpack.c.b16 %v2520, %v2518
        %v2693 = vpack.c.b16 %v2523, %v2521
        %v2694 = vpack.c.b16 %v2524, %v2522
        %v2695 = vpack.c.b16 %v2527, %v2525
        %v2696 = vpack.c.b16 %v2528, %v2526
        %v2697 = vpack.c.b16 %v2531, %v2529
        %v2698 = vpack.c.b16 %v2532, %v2530
        %v2699 = vpack.c.b16 %v2535, %v2533
        %v2700 = vpack.c.b16 %v2536, %v2534
        %v2701 = vpack.c.b16 %v2539, %v2537
        %v2702 = vpack.c.b16 %v2540, %v2538
        %v2703 = vpack.c.b16 %v2543, %v2541
        %v2704 = vpack.c.b16 %v2544, %v2542
        %v2705 = vpack.c.b16 %v2547, %v2545
        %v2706 = vpack.c.b16 %v2548, %v2546
        %v2707 = vpack.c.b16 %v2551, %v2549
        %v2708 = vpack.c.b16 %v2552, %v2550
        %v2709 = vpack.c.b16 %v2555, %v2553
        %v2710 = vpack.c.b16 %v2556, %v2554
        %v2711 = vpack.c.b16 %v2559, %v2557
        %v2712 = vpack.c.b16 %v2560, %v2558
        %v2713 = vpack.c.b16 %v2563, %v2561
        %v2714 = vpack.c.b16 %v2564, %v2562
        %v2715 = vpack.c.b16 %v2567, %v2565
        %v2716 = vpack.c.b16 %v2568, %v2566
        %v2717 = vpack.c.b16 %v2571, %v2569
        %v2718 = vpack.c.b16 %v2572, %v2570
        %v2719 = vpack.c.b16 %v2575, %v2573
        %v2720 = vpack.c.b16 %v2576, %v2574
        %v2721 = vpack.c.b16 %v2579, %v2577
        %v2722 = vpack.c.b16 %v2580, %v2578
        %v2723 = vpack.c.b16 %v2583, %v2581
        %v2724 = vpack.c.b16 %v2584, %v2582
        %v2725 = vpack.c.b16 %v2587, %v2585
        %v2726 = vpack.c.b16 %v2588, %v2586
        %v2727 = vpack.c.b16 %v2591, %v2589
        %v2728 = vpack.c.b16 %v2592, %v2590
        %v2729 = vpack.c.b16 %v2595, %v2593
        %v2730 = vpack.c.b16 %v2596, %v2594
        %v2731 = vpack.c.b16 %v2599, %v2597
        %v2732 = vpack.c.b16 %v2600, %v2598
        %v2733 = vpack.c.b16 %v2603, %v2601
        %v2734 = vpack.c.b16 %v2604, %v2602
        %v2735 = vpack.c.b16 %v2607, %v2605
        %v2736 = vpack.c.b16 %v2608, %v2606
        %2865 = vmatprep.subr.bf16.mxu0 %v2610
        %2866 = vmatpush1.bf16.msra.mxu0 %v2609
        %2867 = vmatprep.subr.bf16.mxu0 %v2612
        %2868 = vmatpush1.bf16.msra.mxu0 %v2611
        %2869 = vmatprep.subr.bf16.mxu0 %v2614
        %2870 = vmatpush1.bf16.msra.mxu0 %v2613
        %2871 = vmatprep.subr.bf16.mxu0 %v2616
        %2872 = vmatpush1.bf16.msra.mxu0 %v2615
        %2873 = vmatprep.subr.bf16.mxu0 %v2618
        %2874 = vmatpush1.bf16.msra.mxu0 %v2617
        %2875 = vmatprep.subr.bf16.mxu0 %v2620
        %2876 = vmatpush1.bf16.msra.mxu0 %v2619
        %2877 = vmatprep.subr.bf16.mxu0 %v2622
        %2878 = vmatpush1.bf16.msra.mxu0 %v2621
        %2879 = vmatprep.subr.bf16.mxu0 %v2624
        %2880 = vmatpush1.bf16.msra.mxu0 %v2623
        %2881 = vmatprep.subr.bf16.mxu0 %v2626
        %2882 = vmatpush1.bf16.msra.mxu0 %v2625
        %2883 = vmatprep.subr.bf16.mxu0 %v2628
        %2884 = vmatpush1.bf16.msra.mxu0 %v2627
        %2885 = vmatprep.subr.bf16.mxu0 %v2630
        %2886 = vmatpush1.bf16.msra.mxu0 %v2629
        %2887 = vmatprep.subr.bf16.mxu0 %v2632
        %2888 = vmatpush1.bf16.msra.mxu0 %v2631
        %2889 = vmatprep.subr.bf16.mxu0 %v2634
        %2890 = vmatpush1.bf16.msra.mxu0 %v2633
        %2891 = vmatprep.subr.bf16.mxu0 %v2636
        %2892 = vmatpush1.bf16.msra.mxu0 %v2635
        %2893 = vmatprep.subr.bf16.mxu0 %v2638
        %2894 = vmatpush1.bf16.msra.mxu0 %v2637
        %2895 = vmatprep.subr.bf16.mxu0 %v2640
        %2896 = vmatpush1.bf16.msra.mxu0 %v2639
        %2897 = vmatprep.mubr.bf16.mxu0 %v344
        %2898 = vmatmul.mubr.bf16.gmra.mrb[0].mxu0 %v343
        %v2899 = vpop.f32.mrb[0].mxu0
        %v2900 = vadd.f32 0.0, %v2899
        %v2901 = vpop.f32.mrb[0].mxu0
        %v2902 = vadd.f32 0.0, %v2901
        %v2903 = vpop.f32.mrb[0].mxu0
        %v2904 = vpop.f32.mrb[0].mxu0
        %2905 = vdwg.mxu0
        %2906 = vmatprep.subr.bf16.mxu0 %v2642
        %2907 = vmatpush1.bf16.msra.mxu0 %v2641
        %2908 = vmatprep.subr.bf16.mxu0 %v2644
        %2909 = vmatpush1.bf16.msra.mxu0 %v2643
        %2910 = vmatprep.subr.bf16.mxu0 %v2646
        %2911 = vmatpush1.bf16.msra.mxu0 %v2645
        %2912 = vmatprep.subr.bf16.mxu0 %v2648
        %2913 = vmatpush1.bf16.msra.mxu0 %v2647
        %2914 = vmatprep.subr.bf16.mxu0 %v2650
        %2915 = vmatpush1.bf16.msra.mxu0 %v2649
        %2916 = vmatprep.subr.bf16.mxu0 %v2652
        %2917 = vmatpush1.bf16.msra.mxu0 %v2651
        %2918 = vmatprep.subr.bf16.mxu0 %v2654
        %2919 = vmatpush1.bf16.msra.mxu0 %v2653
        %2920 = vmatprep.subr.bf16.mxu0 %v2656
        %2921 = vmatpush1.bf16.msra.mxu0 %v2655
        %2922 = vmatprep.subr.bf16.mxu0 %v2658
        %2923 = vmatpush1.bf16.msra.mxu0 %v2657
        %2924 = vmatprep.subr.bf16.mxu0 %v2660
        %2925 = vmatpush1.bf16.msra.mxu0 %v2659
        %2926 = vmatprep.subr.bf16.mxu0 %v2662
        %2927 = vmatpush1.bf16.msra.mxu0 %v2661
        %2928 = vmatprep.subr.bf16.mxu0 %v2664
        %2929 = vmatpush1.bf16.msra.mxu0 %v2663
        %2930 = vmatprep.subr.bf16.mxu0 %v2666
        %2931 = vmatpush1.bf16.msra.mxu0 %v2665
        %2932 = vmatprep.subr.bf16.mxu0 %v2668
        %2933 = vmatpush1.bf16.msra.mxu0 %v2667
        %2934 = vmatprep.subr.bf16.mxu0 %v2670
        %2935 = vmatpush1.bf16.msra.mxu0 %v2669
        %2936 = vmatprep.subr.bf16.mxu0 %v2672
        %2937 = vmatpush1.bf16.msra.mxu0 %v2671
        %2938 = vmatprep.mubr.bf16.mxu0 %v346
        %2939 = vmatmul.mubr.bf16.gmra.mrb[0].mxu0 %v345
        %v2940 = vpop.f32.mrb[0].mxu0
        %v2941 = vadd.f32 %v2900, %v2940
        %v2942 = vpop.f32.mrb[0].mxu0
        %v2943 = vadd.f32 %v2902, %v2942
        %v2944 = vpop.f32.mrb[0].mxu0
        %v2945 = vpop.f32.mrb[0].mxu0
        %2946 = vdwg.mxu0
        %2947 = vmatprep.subr.bf16.mxu0 %v2674
        %2948 = vmatpush1.bf16.msra.mxu0 %v2673
        %2949 = vmatprep.subr.bf16.mxu0 %v2676
        %2950 = vmatpush1.bf16.msra.mxu0 %v2675
        %2951 = vmatprep.subr.bf16.mxu0 %v2678
        %2952 = vmatpush1.bf16.msra.mxu0 %v2677
        %2953 = vmatprep.subr.bf16.mxu0 %v2680
        %2954 = vmatpush1.bf16.msra.mxu0 %v2679
        %2955 = vmatprep.subr.bf16.mxu0 %v2682
        %2956 = vmatpush1.bf16.msra.mxu0 %v2681
        %2957 = vmatprep.subr.bf16.mxu0 %v2684
        %2958 = vmatpush1.bf16.msra.mxu0 %v2683
        %2959 = vmatprep.subr.bf16.mxu0 %v2686
        %2960 = vmatpush1.bf16.msra.mxu0 %v2685
        %2961 = vmatprep.subr.bf16.mxu0 %v2688
        %2962 = vmatpush1.bf16.msra.mxu0 %v2687
        %2963 = vmatprep.subr.bf16.mxu0 %v2690
        %2964 = vmatpush1.bf16.msra.mxu0 %v2689
        %2965 = vmatprep.subr.bf16.mxu0 %v2692
        %2966 = vmatpush1.bf16.msra.mxu0 %v2691
        %2967 = vmatprep.subr.bf16.mxu0 %v2694
        %2968 = vmatpush1.bf16.msra.mxu0 %v2693
        %2969 = vmatprep.subr.bf16.mxu0 %v2696
        %2970 = vmatpush1.bf16.msra.mxu0 %v2695
        %2971 = vmatprep.subr.bf16.mxu0 %v2698
        %2972 = vmatpush1.bf16.msra.mxu0 %v2697
        %2973 = vmatprep.subr.bf16.mxu0 %v2700
        %2974 = vmatpush1.bf16.msra.mxu0 %v2699
        %2975 = vmatprep.subr.bf16.mxu0 %v2702
        %2976 = vmatpush1.bf16.msra.mxu0 %v2701
        %2977 = vmatprep.subr.bf16.mxu0 %v2704
        %2978 = vmatpush1.bf16.msra.mxu0 %v2703
        %2979 = vmatprep.mubr.bf16.mxu0 %v348
        %2980 = vmatmul.mubr.bf16.gmra.mrb[0].mxu0 %v347
        %v2981 = vpop.f32.mrb[0].mxu0
        %v2982 = vadd.f32 %v2941, %v2981
        %v2983 = vpop.f32.mrb[0].mxu0
        %v2984 = vadd.f32 %v2943, %v2983
        %v2985 = vpop.f32.mrb[0].mxu0
        %v2986 = vpop.f32.mrb[0].mxu0
        %2987 = vdwg.mxu0
        %2988 = vmatprep.subr.bf16.mxu0 %v2706
        %2989 = vmatpush1.bf16.msra.mxu0 %v2705
        %2990 = vmatprep.subr.bf16.mxu0 %v2708
        %2991 = vmatpush1.bf16.msra.mxu0 %v2707
        %2992 = vmatprep.subr.bf16.mxu0 %v2710
        %2993 = vmatpush1.bf16.msra.mxu0 %v2709
        %2994 = vmatprep.subr.bf16.mxu0 %v2712
        %2995 = vmatpush1.bf16.msra.mxu0 %v2711
        %2996 = vmatprep.subr.bf16.mxu0 %v2714
        %2997 = vmatpush1.bf16.msra.mxu0 %v2713
        %2998 = vmatprep.subr.bf16.mxu0 %v2716
        %2999 = vmatpush1.bf16.msra.mxu0 %v2715
        %3000 = vmatprep.subr.bf16.mxu0 %v2718
        %3001 = vmatpush1.bf16.msra.mxu0 %v2717
        %3002 = vmatprep.subr.bf16.mxu0 %v2720
        %3003 = vmatpush1.bf16.msra.mxu0 %v2719
        %3004 = vmatprep.subr.bf16.mxu0 %v2722
        %3005 = vmatpush1.bf16.msra.mxu0 %v2721
        %3006 = vmatprep.subr.bf16.mxu0 %v2724
        %3007 = vmatpush1.bf16.msra.mxu0 %v2723
        %3008 = vmatprep.subr.bf16.mxu0 %v2726
        %3009 = vmatpush1.bf16.msra.mxu0 %v2725
        %3010 = vmatprep.subr.bf16.mxu0 %v2728
        %3011 = vmatpush1.bf16.msra.mxu0 %v2727
        %3012 = vmatprep.subr.bf16.mxu0 %v2730
        %3013 = vmatpush1.bf16.msra.mxu0 %v2729
        %3014 = vmatprep.subr.bf16.mxu0 %v2732
        %3015 = vmatpush1.bf16.msra.mxu0 %v2731
        %3016 = vmatprep.subr.bf16.mxu0 %v2734
        %3017 = vmatpush1.bf16.msra.mxu0 %v2733
        %3018 = vmatprep.subr.bf16.mxu0 %v2736
        %3019 = vmatpush1.bf16.msra.mxu0 %v2735
        %3020 = vmatprep.mubr.bf16.mxu0 %v350
        %3021 = vmatmul.mubr.bf16.gmra.mrb[0].mxu0 %v349
        %v3022 = vpop.f32.mrb[0].mxu0
        %v3023 = vadd.f32 %v2982, %v3022
        %v3024 = vpop.f32.mrb[0].mxu0
        %v3025 = vadd.f32 %v2984, %v3024
        %v3026 = vpop.f32.mrb[0].mxu0
        %v3027 = vpop.f32.mrb[0].mxu0
        %3028 = vdwg.mxu0
        %v3029 = vmax.f32 %v2095, %v3023
        %v3030 = vmax.f32 %v2096, %v3025
        %v3031 = vld [vmem:[#allocation2 + $0x18] sm:$0xff]
        %v3032 = vld [vmem:[#allocation2 + $0x38] sm:$0xff]
        %v3033 = vld [vmem:[#allocation2 + $0x58] sm:$0xff]
        %v3034 = vld [vmem:[#allocation2 + $0x78] sm:$0xff]
        %v3035 = vld [vmem:[#allocation2 + $0x98] sm:$0xff]
        %v3036 = vld [vmem:[#allocation2 + $0xb8] sm:$0xff]
        %v3037 = vld [vmem:[#allocation2 + $0xd8] sm:$0xff]
        %v3038 = vld [vmem:[#allocation2 + $0xf8] sm:$0xff]
        %v3039 = vld [vmem:[#allocation2 + $0x118] sm:$0xff]
        %v3040 = vld [vmem:[#allocation2 + $0x138] sm:$0xff]
        %v3041 = vld [vmem:[#allocation2 + $0x158] sm:$0xff]
        %v3042 = vld [vmem:[#allocation2 + $0x178] sm:$0xff]
        %v3043 = vld [vmem:[#allocation2 + $0x198] sm:$0xff]
        %v3044 = vld [vmem:[#allocation2 + $0x1b8] sm:$0xff]
        %v3045 = vld [vmem:[#allocation2 + $0x1d8] sm:$0xff]
        %v3046 = vld [vmem:[#allocation2 + $0x1f8] sm:$0xff]
        %v3047 = vld [vmem:[#allocation2 + $0x218] sm:$0xff]
        %v3048 = vld [vmem:[#allocation2 + $0x238] sm:$0xff]
        %v3049 = vld [vmem:[#allocation2 + $0x258] sm:$0xff]
        %v3050 = vld [vmem:[#allocation2 + $0x278] sm:$0xff]
        %v3051 = vld [vmem:[#allocation2 + $0x298] sm:$0xff]
        %v3052 = vld [vmem:[#allocation2 + $0x2b8] sm:$0xff]
        %v3053 = vld [vmem:[#allocation2 + $0x2d8] sm:$0xff]
        %v3054 = vld [vmem:[#allocation2 + $0x2f8] sm:$0xff]
        %v3055 = vld [vmem:[#allocation2 + $0x318] sm:$0xff]
        %v3056 = vld [vmem:[#allocation2 + $0x338] sm:$0xff]
        %v3057 = vld [vmem:[#allocation2 + $0x358] sm:$0xff]
        %v3058 = vld [vmem:[#allocation2 + $0x378] sm:$0xff]
        %v3059 = vld [vmem:[#allocation2 + $0x398] sm:$0xff]
        %v3060 = vld [vmem:[#allocation2 + $0x3b8] sm:$0xff]
        %v3061 = vld [vmem:[#allocation2 + $0x3d8] sm:$0xff]
        %v3062 = vld [vmem:[#allocation2 + $0x3f8] sm:$0xff]
        %v3063 = vld [vmem:[#allocation2 + $0x418] sm:$0xff]
        %v3064 = vld [vmem:[#allocation2 + $0x438] sm:$0xff]
        %v3065 = vld [vmem:[#allocation2 + $0x458] sm:$0xff]
        %v3066 = vld [vmem:[#allocation2 + $0x478] sm:$0xff]
        %v3067 = vld [vmem:[#allocation2 + $0x498] sm:$0xff]
        %v3068 = vld [vmem:[#allocation2 + $0x4b8] sm:$0xff]
        %v3069 = vld [vmem:[#allocation2 + $0x4d8] sm:$0xff]
        %v3070 = vld [vmem:[#allocation2 + $0x4f8] sm:$0xff]
        %v3071 = vld [vmem:[#allocation2 + $0x518] sm:$0xff]
        %v3072 = vld [vmem:[#allocation2 + $0x538] sm:$0xff]
        %v3073 = vld [vmem:[#allocation2 + $0x558] sm:$0xff]
        %v3074 = vld [vmem:[#allocation2 + $0x578] sm:$0xff]
        %v3075 = vld [vmem:[#allocation2 + $0x598] sm:$0xff]
        %v3076 = vld [vmem:[#allocation2 + $0x5b8] sm:$0xff]
        %v3077 = vld [vmem:[#allocation2 + $0x5d8] sm:$0xff]
        %v3078 = vld [vmem:[#allocation2 + $0x5f8] sm:$0xff]
        %v3079 = vld [vmem:[#allocation2 + $0x618] sm:$0xff]
        %v3080 = vld [vmem:[#allocation2 + $0x638] sm:$0xff]
        %v3081 = vld [vmem:[#allocation2 + $0x658] sm:$0xff]
        %v3082 = vld [vmem:[#allocation2 + $0x678] sm:$0xff]
        %v3083 = vld [vmem:[#allocation2 + $0x698] sm:$0xff]
        %v3084 = vld [vmem:[#allocation2 + $0x6b8] sm:$0xff]
        %v3085 = vld [vmem:[#allocation2 + $0x6d8] sm:$0xff]
        %v3086 = vld [vmem:[#allocation2 + $0x6f8] sm:$0xff]
        %v3087 = vld [vmem:[#allocation2 + $0x718] sm:$0xff]
        %v3088 = vld [vmem:[#allocation2 + $0x738] sm:$0xff]
        %v3089 = vld [vmem:[#allocation2 + $0x758] sm:$0xff]
        %v3090 = vld [vmem:[#allocation2 + $0x778] sm:$0xff]
        %v3091 = vld [vmem:[#allocation2 + $0x798] sm:$0xff]
        %v3092 = vld [vmem:[#allocation2 + $0x7b8] sm:$0xff]
        %v3093 = vld [vmem:[#allocation2 + $0x7d8] sm:$0xff]
        %v3094 = vld [vmem:[#allocation2 + $0x7f8] sm:$0xff]
        %v3095 = vld [vmem:[#allocation2 + $0x818] sm:$0xff]
        %v3096 = vld [vmem:[#allocation2 + $0x838] sm:$0xff]
        %v3097 = vld [vmem:[#allocation2 + $0x858] sm:$0xff]
        %v3098 = vld [vmem:[#allocation2 + $0x878] sm:$0xff]
        %v3099 = vld [vmem:[#allocation2 + $0x898] sm:$0xff]
        %v3100 = vld [vmem:[#allocation2 + $0x8b8] sm:$0xff]
        %v3101 = vld [vmem:[#allocation2 + $0x8d8] sm:$0xff]
        %v3102 = vld [vmem:[#allocation2 + $0x8f8] sm:$0xff]
        %v3103 = vld [vmem:[#allocation2 + $0x918] sm:$0xff]
        %v3104 = vld [vmem:[#allocation2 + $0x938] sm:$0xff]
        %v3105 = vld [vmem:[#allocation2 + $0x958] sm:$0xff]
        %v3106 = vld [vmem:[#allocation2 + $0x978] sm:$0xff]
        %v3107 = vld [vmem:[#allocation2 + $0x998] sm:$0xff]
        %v3108 = vld [vmem:[#allocation2 + $0x9b8] sm:$0xff]
        %v3109 = vld [vmem:[#allocation2 + $0x9d8] sm:$0xff]
        %v3110 = vld [vmem:[#allocation2 + $0x9f8] sm:$0xff]
        %v3111 = vld [vmem:[#allocation2 + $0xa18] sm:$0xff]
        %v3112 = vld [vmem:[#allocation2 + $0xa38] sm:$0xff]
        %v3113 = vld [vmem:[#allocation2 + $0xa58] sm:$0xff]
        %v3114 = vld [vmem:[#allocation2 + $0xa78] sm:$0xff]
        %v3115 = vld [vmem:[#allocation2 + $0xa98] sm:$0xff]
        %v3116 = vld [vmem:[#allocation2 + $0xab8] sm:$0xff]
        %v3117 = vld [vmem:[#allocation2 + $0xad8] sm:$0xff]
        %v3118 = vld [vmem:[#allocation2 + $0xaf8] sm:$0xff]
        %v3119 = vld [vmem:[#allocation2 + $0xb18] sm:$0xff]
        %v3120 = vld [vmem:[#allocation2 + $0xb38] sm:$0xff]
        %v3121 = vld [vmem:[#allocation2 + $0xb58] sm:$0xff]
        %v3122 = vld [vmem:[#allocation2 + $0xb78] sm:$0xff]
        %v3123 = vld [vmem:[#allocation2 + $0xb98] sm:$0xff]
        %v3124 = vld [vmem:[#allocation2 + $0xbb8] sm:$0xff]
        %v3125 = vld [vmem:[#allocation2 + $0xbd8] sm:$0xff]
        %v3126 = vld [vmem:[#allocation2 + $0xbf8] sm:$0xff]
        %v3127 = vld [vmem:[#allocation2 + $0xc18] sm:$0xff]
        %v3128 = vld [vmem:[#allocation2 + $0xc38] sm:$0xff]
        %v3129 = vld [vmem:[#allocation2 + $0xc58] sm:$0xff]
        %v3130 = vld [vmem:[#allocation2 + $0xc78] sm:$0xff]
        %v3131 = vld [vmem:[#allocation2 + $0xc98] sm:$0xff]
        %v3132 = vld [vmem:[#allocation2 + $0xcb8] sm:$0xff]
        %v3133 = vld [vmem:[#allocation2 + $0xcd8] sm:$0xff]
        %v3134 = vld [vmem:[#allocation2 + $0xcf8] sm:$0xff]
        %v3135 = vld [vmem:[#allocation2 + $0xd18] sm:$0xff]
        %v3136 = vld [vmem:[#allocation2 + $0xd38] sm:$0xff]
        %v3137 = vld [vmem:[#allocation2 + $0xd58] sm:$0xff]
        %v3138 = vld [vmem:[#allocation2 + $0xd78] sm:$0xff]
        %v3139 = vld [vmem:[#allocation2 + $0xd98] sm:$0xff]
        %v3140 = vld [vmem:[#allocation2 + $0xdb8] sm:$0xff]
        %v3141 = vld [vmem:[#allocation2 + $0xdd8] sm:$0xff]
        %v3142 = vld [vmem:[#allocation2 + $0xdf8] sm:$0xff]
        %v3143 = vld [vmem:[#allocation2 + $0xe18] sm:$0xff]
        %v3144 = vld [vmem:[#allocation2 + $0xe38] sm:$0xff]
        %v3145 = vld [vmem:[#allocation2 + $0xe58] sm:$0xff]
        %v3146 = vld [vmem:[#allocation2 + $0xe78] sm:$0xff]
        %v3147 = vld [vmem:[#allocation2 + $0xe98] sm:$0xff]
        %v3148 = vld [vmem:[#allocation2 + $0xeb8] sm:$0xff]
        %v3149 = vld [vmem:[#allocation2 + $0xed8] sm:$0xff]
        %v3150 = vld [vmem:[#allocation2 + $0xef8] sm:$0xff]
        %v3151 = vld [vmem:[#allocation2 + $0xf18] sm:$0xff]
        %v3152 = vld [vmem:[#allocation2 + $0xf38] sm:$0xff]
        %v3153 = vld [vmem:[#allocation2 + $0xf58] sm:$0xff]
        %v3154 = vld [vmem:[#allocation2 + $0xf78] sm:$0xff]
        %v3155 = vld [vmem:[#allocation2 + $0xf98] sm:$0xff]
        %v3156 = vld [vmem:[#allocation2 + $0xfb8] sm:$0xff]
        %v3157 = vld [vmem:[#allocation2 + $0xfd8] sm:$0xff]
        %v3158 = vld [vmem:[#allocation2 + $0xff8] sm:$0xff]
        %v3287 = vunpack.c.l.b16 %v3031
        %v3288 = vunpack.c.h.b16 %v3031
        %v3289 = vunpack.c.l.b16 %v3032
        %v3290 = vunpack.c.h.b16 %v3032
        %v3291 = vunpack.c.l.b16 %v3033
        %v3292 = vunpack.c.h.b16 %v3033
        %v3293 = vunpack.c.l.b16 %v3034
        %v3294 = vunpack.c.h.b16 %v3034
        %v3295 = vunpack.c.l.b16 %v3035
        %v3296 = vunpack.c.h.b16 %v3035
        %v3297 = vunpack.c.l.b16 %v3036
        %v3298 = vunpack.c.h.b16 %v3036
        %v3299 = vunpack.c.l.b16 %v3037
        %v3300 = vunpack.c.h.b16 %v3037
        %v3301 = vunpack.c.l.b16 %v3038
        %v3302 = vunpack.c.h.b16 %v3038
        %v3303 = vunpack.c.l.b16 %v3039
        %v3304 = vunpack.c.h.b16 %v3039
        %v3305 = vunpack.c.l.b16 %v3040
        %v3306 = vunpack.c.h.b16 %v3040
        %v3307 = vunpack.c.l.b16 %v3041
        %v3308 = vunpack.c.h.b16 %v3041
        %v3309 = vunpack.c.l.b16 %v3042
        %v3310 = vunpack.c.h.b16 %v3042
        %v3311 = vunpack.c.l.b16 %v3043
        %v3312 = vunpack.c.h.b16 %v3043
        %v3313 = vunpack.c.l.b16 %v3044
        %v3314 = vunpack.c.h.b16 %v3044
        %v3315 = vunpack.c.l.b16 %v3045
        %v3316 = vunpack.c.h.b16 %v3045
        %v3317 = vunpack.c.l.b16 %v3046
        %v3318 = vunpack.c.h.b16 %v3046
        %v3319 = vunpack.c.l.b16 %v3047
        %v3320 = vunpack.c.h.b16 %v3047
        %v3321 = vunpack.c.l.b16 %v3048
        %v3322 = vunpack.c.h.b16 %v3048
        %v3323 = vunpack.c.l.b16 %v3049
        %v3324 = vunpack.c.h.b16 %v3049
        %v3325 = vunpack.c.l.b16 %v3050
        %v3326 = vunpack.c.h.b16 %v3050
        %v3327 = vunpack.c.l.b16 %v3051
        %v3328 = vunpack.c.h.b16 %v3051
        %v3329 = vunpack.c.l.b16 %v3052
        %v3330 = vunpack.c.h.b16 %v3052
        %v3331 = vunpack.c.l.b16 %v3053
        %v3332 = vunpack.c.h.b16 %v3053
        %v3333 = vunpack.c.l.b16 %v3054
        %v3334 = vunpack.c.h.b16 %v3054
        %v3335 = vunpack.c.l.b16 %v3055
        %v3336 = vunpack.c.h.b16 %v3055
        %v3337 = vunpack.c.l.b16 %v3056
        %v3338 = vunpack.c.h.b16 %v3056
        %v3339 = vunpack.c.l.b16 %v3057
        %v3340 = vunpack.c.h.b16 %v3057
        %v3341 = vunpack.c.l.b16 %v3058
        %v3342 = vunpack.c.h.b16 %v3058
        %v3343 = vunpack.c.l.b16 %v3059
        %v3344 = vunpack.c.h.b16 %v3059
        %v3345 = vunpack.c.l.b16 %v3060
        %v3346 = vunpack.c.h.b16 %v3060
        %v3347 = vunpack.c.l.b16 %v3061
        %v3348 = vunpack.c.h.b16 %v3061
        %v3349 = vunpack.c.l.b16 %v3062
        %v3350 = vunpack.c.h.b16 %v3062
        %v3351 = vunpack.c.l.b16 %v3063
        %v3352 = vunpack.c.h.b16 %v3063
        %v3353 = vunpack.c.l.b16 %v3064
        %v3354 = vunpack.c.h.b16 %v3064
        %v3355 = vunpack.c.l.b16 %v3065
        %v3356 = vunpack.c.h.b16 %v3065
        %v3357 = vunpack.c.l.b16 %v3066
        %v3358 = vunpack.c.h.b16 %v3066
        %v3359 = vunpack.c.l.b16 %v3067
        %v3360 = vunpack.c.h.b16 %v3067
        %v3361 = vunpack.c.l.b16 %v3068
        %v3362 = vunpack.c.h.b16 %v3068
        %v3363 = vunpack.c.l.b16 %v3069
        %v3364 = vunpack.c.h.b16 %v3069
        %v3365 = vunpack.c.l.b16 %v3070
        %v3366 = vunpack.c.h.b16 %v3070
        %v3367 = vunpack.c.l.b16 %v3071
        %v3368 = vunpack.c.h.b16 %v3071
        %v3369 = vunpack.c.l.b16 %v3072
        %v3370 = vunpack.c.h.b16 %v3072
        %v3371 = vunpack.c.l.b16 %v3073
        %v3372 = vunpack.c.h.b16 %v3073
        %v3373 = vunpack.c.l.b16 %v3074
        %v3374 = vunpack.c.h.b16 %v3074
        %v3375 = vunpack.c.l.b16 %v3075
        %v3376 = vunpack.c.h.b16 %v3075
        %v3377 = vunpack.c.l.b16 %v3076
        %v3378 = vunpack.c.h.b16 %v3076
        %v3379 = vunpack.c.l.b16 %v3077
        %v3380 = vunpack.c.h.b16 %v3077
        %v3381 = vunpack.c.l.b16 %v3078
        %v3382 = vunpack.c.h.b16 %v3078
        %v3383 = vunpack.c.l.b16 %v3079
        %v3384 = vunpack.c.h.b16 %v3079
        %v3385 = vunpack.c.l.b16 %v3080
        %v3386 = vunpack.c.h.b16 %v3080
        %v3387 = vunpack.c.l.b16 %v3081
        %v3388 = vunpack.c.h.b16 %v3081
        %v3389 = vunpack.c.l.b16 %v3082
        %v3390 = vunpack.c.h.b16 %v3082
        %v3391 = vunpack.c.l.b16 %v3083
        %v3392 = vunpack.c.h.b16 %v3083
        %v3393 = vunpack.c.l.b16 %v3084
        %v3394 = vunpack.c.h.b16 %v3084
        %v3395 = vunpack.c.l.b16 %v3085
        %v3396 = vunpack.c.h.b16 %v3085
        %v3397 = vunpack.c.l.b16 %v3086
        %v3398 = vunpack.c.h.b16 %v3086
        %v3399 = vunpack.c.l.b16 %v3087
        %v3400 = vunpack.c.h.b16 %v3087
        %v3401 = vunpack.c.l.b16 %v3088
        %v3402 = vunpack.c.h.b16 %v3088
        %v3403 = vunpack.c.l.b16 %v3089
        %v3404 = vunpack.c.h.b16 %v3089
        %v3405 = vunpack.c.l.b16 %v3090
        %v3406 = vunpack.c.h.b16 %v3090
        %v3407 = vunpack.c.l.b16 %v3091
        %v3408 = vunpack.c.h.b16 %v3091
        %v3409 = vunpack.c.l.b16 %v3092
        %v3410 = vunpack.c.h.b16 %v3092
        %v3411 = vunpack.c.l.b16 %v3093
        %v3412 = vunpack.c.h.b16 %v3093
        %v3413 = vunpack.c.l.b16 %v3094
        %v3414 = vunpack.c.h.b16 %v3094
        %v3415 = vunpack.c.l.b16 %v3095
        %v3416 = vunpack.c.h.b16 %v3095
        %v3417 = vunpack.c.l.b16 %v3096
        %v3418 = vunpack.c.h.b16 %v3096
        %v3419 = vunpack.c.l.b16 %v3097
        %v3420 = vunpack.c.h.b16 %v3097
        %v3421 = vunpack.c.l.b16 %v3098
        %v3422 = vunpack.c.h.b16 %v3098
        %v3423 = vunpack.c.l.b16 %v3099
        %v3424 = vunpack.c.h.b16 %v3099
        %v3425 = vunpack.c.l.b16 %v3100
        %v3426 = vunpack.c.h.b16 %v3100
        %v3427 = vunpack.c.l.b16 %v3101
        %v3428 = vunpack.c.h.b16 %v3101
        %v3429 = vunpack.c.l.b16 %v3102
        %v3430 = vunpack.c.h.b16 %v3102
        %v3431 = vunpack.c.l.b16 %v3103
        %v3432 = vunpack.c.h.b16 %v3103
        %v3433 = vunpack.c.l.b16 %v3104
        %v3434 = vunpack.c.h.b16 %v3104
        %v3435 = vunpack.c.l.b16 %v3105
        %v3436 = vunpack.c.h.b16 %v3105
        %v3437 = vunpack.c.l.b16 %v3106
        %v3438 = vunpack.c.h.b16 %v3106
        %v3439 = vunpack.c.l.b16 %v3107
        %v3440 = vunpack.c.h.b16 %v3107
        %v3441 = vunpack.c.l.b16 %v3108
        %v3442 = vunpack.c.h.b16 %v3108
        %v3443 = vunpack.c.l.b16 %v3109
        %v3444 = vunpack.c.h.b16 %v3109
        %v3445 = vunpack.c.l.b16 %v3110
        %v3446 = vunpack.c.h.b16 %v3110
        %v3447 = vunpack.c.l.b16 %v3111
        %v3448 = vunpack.c.h.b16 %v3111
        %v3449 = vunpack.c.l.b16 %v3112
        %v3450 = vunpack.c.h.b16 %v3112
        %v3451 = vunpack.c.l.b16 %v3113
        %v3452 = vunpack.c.h.b16 %v3113
        %v3453 = vunpack.c.l.b16 %v3114
        %v3454 = vunpack.c.h.b16 %v3114
        %v3455 = vunpack.c.l.b16 %v3115
        %v3456 = vunpack.c.h.b16 %v3115
        %v3457 = vunpack.c.l.b16 %v3116
        %v3458 = vunpack.c.h.b16 %v3116
        %v3459 = vunpack.c.l.b16 %v3117
        %v3460 = vunpack.c.h.b16 %v3117
        %v3461 = vunpack.c.l.b16 %v3118
        %v3462 = vunpack.c.h.b16 %v3118
        %v3463 = vunpack.c.l.b16 %v3119
        %v3464 = vunpack.c.h.b16 %v3119
        %v3465 = vunpack.c.l.b16 %v3120
        %v3466 = vunpack.c.h.b16 %v3120
        %v3467 = vunpack.c.l.b16 %v3121
        %v3468 = vunpack.c.h.b16 %v3121
        %v3469 = vunpack.c.l.b16 %v3122
        %v3470 = vunpack.c.h.b16 %v3122
        %v3471 = vunpack.c.l.b16 %v3123
        %v3472 = vunpack.c.h.b16 %v3123
        %v3473 = vunpack.c.l.b16 %v3124
        %v3474 = vunpack.c.h.b16 %v3124
        %v3475 = vunpack.c.l.b16 %v3125
        %v3476 = vunpack.c.h.b16 %v3125
        %v3477 = vunpack.c.l.b16 %v3126
        %v3478 = vunpack.c.h.b16 %v3126
        %v3479 = vunpack.c.l.b16 %v3127
        %v3480 = vunpack.c.h.b16 %v3127
        %v3481 = vunpack.c.l.b16 %v3128
        %v3482 = vunpack.c.h.b16 %v3128
        %v3483 = vunpack.c.l.b16 %v3129
        %v3484 = vunpack.c.h.b16 %v3129
        %v3485 = vunpack.c.l.b16 %v3130
        %v3486 = vunpack.c.h.b16 %v3130
        %v3487 = vunpack.c.l.b16 %v3131
        %v3488 = vunpack.c.h.b16 %v3131
        %v3489 = vunpack.c.l.b16 %v3132
        %v3490 = vunpack.c.h.b16 %v3132
        %v3491 = vunpack.c.l.b16 %v3133
        %v3492 = vunpack.c.h.b16 %v3133
        %v3493 = vunpack.c.l.b16 %v3134
        %v3494 = vunpack.c.h.b16 %v3134
        %v3495 = vunpack.c.l.b16 %v3135
        %v3496 = vunpack.c.h.b16 %v3135
        %v3497 = vunpack.c.l.b16 %v3136
        %v3498 = vunpack.c.h.b16 %v3136
        %v3499 = vunpack.c.l.b16 %v3137
        %v3500 = vunpack.c.h.b16 %v3137
        %v3501 = vunpack.c.l.b16 %v3138
        %v3502 = vunpack.c.h.b16 %v3138
        %v3503 = vunpack.c.l.b16 %v3139
        %v3504 = vunpack.c.h.b16 %v3139
        %v3505 = vunpack.c.l.b16 %v3140
        %v3506 = vunpack.c.h.b16 %v3140
        %v3507 = vunpack.c.l.b16 %v3141
        %v3508 = vunpack.c.h.b16 %v3141
        %v3509 = vunpack.c.l.b16 %v3142
        %v3510 = vunpack.c.h.b16 %v3142
        %v3511 = vunpack.c.l.b16 %v3143
        %v3512 = vunpack.c.h.b16 %v3143
        %v3513 = vunpack.c.l.b16 %v3144
        %v3514 = vunpack.c.h.b16 %v3144
        %v3515 = vunpack.c.l.b16 %v3145
        %v3516 = vunpack.c.h.b16 %v3145
        %v3517 = vunpack.c.l.b16 %v3146
        %v3518 = vunpack.c.h.b16 %v3146
        %v3519 = vunpack.c.l.b16 %v3147
        %v3520 = vunpack.c.h.b16 %v3147
        %v3521 = vunpack.c.l.b16 %v3148
        %v3522 = vunpack.c.h.b16 %v3148
        %v3523 = vunpack.c.l.b16 %v3149
        %v3524 = vunpack.c.h.b16 %v3149
        %v3525 = vunpack.c.l.b16 %v3150
        %v3526 = vunpack.c.h.b16 %v3150
        %v3527 = vunpack.c.l.b16 %v3151
        %v3528 = vunpack.c.h.b16 %v3151
        %v3529 = vunpack.c.l.b16 %v3152
        %v3530 = vunpack.c.h.b16 %v3152
        %v3531 = vunpack.c.l.b16 %v3153
        %v3532 = vunpack.c.h.b16 %v3153
        %v3533 = vunpack.c.l.b16 %v3154
        %v3534 = vunpack.c.h.b16 %v3154
        %v3535 = vunpack.c.l.b16 %v3155
        %v3536 = vunpack.c.h.b16 %v3155
        %v3537 = vunpack.c.l.b16 %v3156
        %v3538 = vunpack.c.h.b16 %v3156
        %v3539 = vunpack.c.l.b16 %v3157
        %v3540 = vunpack.c.h.b16 %v3157
        %v3541 = vunpack.c.l.b16 %v3158
        %v3542 = vunpack.c.h.b16 %v3158
        %v3543 = vpack.c.b16 %v3289, %v3287
        %v3544 = vpack.c.b16 %v3290, %v3288
        %v3545 = vpack.c.b16 %v3293, %v3291
        %v3546 = vpack.c.b16 %v3294, %v3292
        %v3547 = vpack.c.b16 %v3297, %v3295
        %v3548 = vpack.c.b16 %v3298, %v3296
        %v3549 = vpack.c.b16 %v3301, %v3299
        %v3550 = vpack.c.b16 %v3302, %v3300
        %v3551 = vpack.c.b16 %v3305, %v3303
        %v3552 = vpack.c.b16 %v3306, %v3304
        %v3553 = vpack.c.b16 %v3309, %v3307
        %v3554 = vpack.c.b16 %v3310, %v3308
        %v3555 = vpack.c.b16 %v3313, %v3311
        %v3556 = vpack.c.b16 %v3314, %v3312
        %v3557 = vpack.c.b16 %v3317, %v3315
        %v3558 = vpack.c.b16 %v3318, %v3316
        %v3559 = vpack.c.b16 %v3321, %v3319
        %v3560 = vpack.c.b16 %v3322, %v3320
        %v3561 = vpack.c.b16 %v3325, %v3323
        %v3562 = vpack.c.b16 %v3326, %v3324
        %v3563 = vpack.c.b16 %v3329, %v3327
        %v3564 = vpack.c.b16 %v3330, %v3328
        %v3565 = vpack.c.b16 %v3333, %v3331
        %v3566 = vpack.c.b16 %v3334, %v3332
        %v3567 = vpack.c.b16 %v3337, %v3335
        %v3568 = vpack.c.b16 %v3338, %v3336
        %v3569 = vpack.c.b16 %v3341, %v3339
        %v3570 = vpack.c.b16 %v3342, %v3340
        %v3571 = vpack.c.b16 %v3345, %v3343
        %v3572 = vpack.c.b16 %v3346, %v3344
        %v3573 = vpack.c.b16 %v3349, %v3347
        %v3574 = vpack.c.b16 %v3350, %v3348
        %v3575 = vpack.c.b16 %v3353, %v3351
        %v3576 = vpack.c.b16 %v3354, %v3352
        %v3577 = vpack.c.b16 %v3357, %v3355
        %v3578 = vpack.c.b16 %v3358, %v3356
        %v3579 = vpack.c.b16 %v3361, %v3359
        %v3580 = vpack.c.b16 %v3362, %v3360
        %v3581 = vpack.c.b16 %v3365, %v3363
        %v3582 = vpack.c.b16 %v3366, %v3364
        %v3583 = vpack.c.b16 %v3369, %v3367
        %v3584 = vpack.c.b16 %v3370, %v3368
        %v3585 = vpack.c.b16 %v3373, %v3371
        %v3586 = vpack.c.b16 %v3374, %v3372
        %v3587 = vpack.c.b16 %v3377, %v3375
        %v3588 = vpack.c.b16 %v3378, %v3376
        %v3589 = vpack.c.b16 %v3381, %v3379
        %v3590 = vpack.c.b16 %v3382, %v3380
        %v3591 = vpack.c.b16 %v3385, %v3383
        %v3592 = vpack.c.b16 %v3386, %v3384
        %v3593 = vpack.c.b16 %v3389, %v3387
        %v3594 = vpack.c.b16 %v3390, %v3388
        %v3595 = vpack.c.b16 %v3393, %v3391
        %v3596 = vpack.c.b16 %v3394, %v3392
        %v3597 = vpack.c.b16 %v3397, %v3395
        %v3598 = vpack.c.b16 %v3398, %v3396
        %v3599 = vpack.c.b16 %v3401, %v3399
        %v3600 = vpack.c.b16 %v3402, %v3400
        %v3601 = vpack.c.b16 %v3405, %v3403
        %v3602 = vpack.c.b16 %v3406, %v3404
        %v3603 = vpack.c.b16 %v3409, %v3407
        %v3604 = vpack.c.b16 %v3410, %v3408
        %v3605 = vpack.c.b16 %v3413, %v3411
        %v3606 = vpack.c.b16 %v3414, %v3412
        %v3607 = vpack.c.b16 %v3417, %v3415
        %v3608 = vpack.c.b16 %v3418, %v3416
        %v3609 = vpack.c.b16 %v3421, %v3419
        %v3610 = vpack.c.b16 %v3422, %v3420
        %v3611 = vpack.c.b16 %v3425, %v3423
        %v3612 = vpack.c.b16 %v3426, %v3424
        %v3613 = vpack.c.b16 %v3429, %v3427
        %v3614 = vpack.c.b16 %v3430, %v3428
        %v3615 = vpack.c.b16 %v3433, %v3431
        %v3616 = vpack.c.b16 %v3434, %v3432
        %v3617 = vpack.c.b16 %v3437, %v3435
        %v3618 = vpack.c.b16 %v3438, %v3436
        %v3619 = vpack.c.b16 %v3441, %v3439
        %v3620 = vpack.c.b16 %v3442, %v3440
        %v3621 = vpack.c.b16 %v3445, %v3443
        %v3622 = vpack.c.b16 %v3446, %v3444
        %v3623 = vpack.c.b16 %v3449, %v3447
        %v3624 = vpack.c.b16 %v3450, %v3448
        %v3625 = vpack.c.b16 %v3453, %v3451
        %v3626 = vpack.c.b16 %v3454, %v3452
        %v3627 = vpack.c.b16 %v3457, %v3455
        %v3628 = vpack.c.b16 %v3458, %v3456
        %v3629 = vpack.c.b16 %v3461, %v3459
        %v3630 = vpack.c.b16 %v3462, %v3460
        %v3631 = vpack.c.b16 %v3465, %v3463
        %v3632 = vpack.c.b16 %v3466, %v3464
        %v3633 = vpack.c.b16 %v3469, %v3467
        %v3634 = vpack.c.b16 %v3470, %v3468
        %v3635 = vpack.c.b16 %v3473, %v3471
        %v3636 = vpack.c.b16 %v3474, %v3472
        %v3637 = vpack.c.b16 %v3477, %v3475
        %v3638 = vpack.c.b16 %v3478, %v3476
        %v3639 = vpack.c.b16 %v3481, %v3479
        %v3640 = vpack.c.b16 %v3482, %v3480
        %v3641 = vpack.c.b16 %v3485, %v3483
        %v3642 = vpack.c.b16 %v3486, %v3484
        %v3643 = vpack.c.b16 %v3489, %v3487
        %v3644 = vpack.c.b16 %v3490, %v3488
        %v3645 = vpack.c.b16 %v3493, %v3491
        %v3646 = vpack.c.b16 %v3494, %v3492
        %v3647 = vpack.c.b16 %v3497, %v3495
        %v3648 = vpack.c.b16 %v3498, %v3496
        %v3649 = vpack.c.b16 %v3501, %v3499
        %v3650 = vpack.c.b16 %v3502, %v3500
        %v3651 = vpack.c.b16 %v3505, %v3503
        %v3652 = vpack.c.b16 %v3506, %v3504
        %v3653 = vpack.c.b16 %v3509, %v3507
        %v3654 = vpack.c.b16 %v3510, %v3508
        %v3655 = vpack.c.b16 %v3513, %v3511
        %v3656 = vpack.c.b16 %v3514, %v3512
        %v3657 = vpack.c.b16 %v3517, %v3515
        %v3658 = vpack.c.b16 %v3518, %v3516
        %v3659 = vpack.c.b16 %v3521, %v3519
        %v3660 = vpack.c.b16 %v3522, %v3520
        %v3661 = vpack.c.b16 %v3525, %v3523
        %v3662 = vpack.c.b16 %v3526, %v3524
        %v3663 = vpack.c.b16 %v3529, %v3527
        %v3664 = vpack.c.b16 %v3530, %v3528
        %v3665 = vpack.c.b16 %v3533, %v3531
        %v3666 = vpack.c.b16 %v3534, %v3532
        %v3667 = vpack.c.b16 %v3537, %v3535
        %v3668 = vpack.c.b16 %v3538, %v3536
        %v3669 = vpack.c.b16 %v3541, %v3539
        %v3670 = vpack.c.b16 %v3542, %v3540
        %3799 = vmatprep.subr.bf16.mxu0 %v3544
        %3800 = vmatpush1.bf16.msra.mxu0 %v3543
        %3801 = vmatprep.subr.bf16.mxu0 %v3546
        %3802 = vmatpush1.bf16.msra.mxu0 %v3545
        %3803 = vmatprep.subr.bf16.mxu0 %v3548
        %3804 = vmatpush1.bf16.msra.mxu0 %v3547
        %3805 = vmatprep.subr.bf16.mxu0 %v3550
        %3806 = vmatpush1.bf16.msra.mxu0 %v3549
        %3807 = vmatprep.subr.bf16.mxu0 %v3552
        %3808 = vmatpush1.bf16.msra.mxu0 %v3551
        %3809 = vmatprep.subr.bf16.mxu0 %v3554
        %3810 = vmatpush1.bf16.msra.mxu0 %v3553
        %3811 = vmatprep.subr.bf16.mxu0 %v3556
        %3812 = vmatpush1.bf16.msra.mxu0 %v3555
        %3813 = vmatprep.subr.bf16.mxu0 %v3558
        %3814 = vmatpush1.bf16.msra.mxu0 %v3557
        %3815 = vmatprep.subr.bf16.mxu0 %v3560
        %3816 = vmatpush1.bf16.msra.mxu0 %v3559
        %3817 = vmatprep.subr.bf16.mxu0 %v3562
        %3818 = vmatpush1.bf16.msra.mxu0 %v3561
        %3819 = vmatprep.subr.bf16.mxu0 %v3564
        %3820 = vmatpush1.bf16.msra.mxu0 %v3563
        %3821 = vmatprep.subr.bf16.mxu0 %v3566
        %3822 = vmatpush1.bf16.msra.mxu0 %v3565
        %3823 = vmatprep.subr.bf16.mxu0 %v3568
        %3824 = vmatpush1.bf16.msra.mxu0 %v3567
        %3825 = vmatprep.subr.bf16.mxu0 %v3570
        %3826 = vmatpush1.bf16.msra.mxu0 %v3569
        %3827 = vmatprep.subr.bf16.mxu0 %v3572
        %3828 = vmatpush1.bf16.msra.mxu0 %v3571
        %3829 = vmatprep.subr.bf16.mxu0 %v3574
        %3830 = vmatpush1.bf16.msra.mxu0 %v3573
        %3831 = vmatprep.mubr.bf16.mxu0 %v344
        %3832 = vmatmul.mubr.bf16.gmra.mrb[0].mxu0 %v343
        %v3833 = vpop.f32.mrb[0].mxu0
        %v3834 = vadd.f32 0.0, %v3833
        %v3835 = vpop.f32.mrb[0].mxu0
        %v3836 = vadd.f32 0.0, %v3835
        %v3837 = vpop.f32.mrb[0].mxu0
        %v3838 = vpop.f32.mrb[0].mxu0
        %3839 = vdwg.mxu0
        %3840 = vmatprep.subr.bf16.mxu0 %v3576
        %3841 = vmatpush1.bf16.msra.mxu0 %v3575
        %3842 = vmatprep.subr.bf16.mxu0 %v3578
        %3843 = vmatpush1.bf16.msra.mxu0 %v3577
        %3844 = vmatprep.subr.bf16.mxu0 %v3580
        %3845 = vmatpush1.bf16.msra.mxu0 %v3579
        %3846 = vmatprep.subr.bf16.mxu0 %v3582
        %3847 = vmatpush1.bf16.msra.mxu0 %v3581
        %3848 = vmatprep.subr.bf16.mxu0 %v3584
        %3849 = vmatpush1.bf16.msra.mxu0 %v3583
        %3850 = vmatprep.subr.bf16.mxu0 %v3586
        %3851 = vmatpush1.bf16.msra.mxu0 %v3585
        %3852 = vmatprep.subr.bf16.mxu0 %v3588
        %3853 = vmatpush1.bf16.msra.mxu0 %v3587
        %3854 = vmatprep.subr.bf16.mxu0 %v3590
        %3855 = vmatpush1.bf16.msra.mxu0 %v3589
        %3856 = vmatprep.subr.bf16.mxu0 %v3592
        %3857 = vmatpush1.bf16.msra.mxu0 %v3591
        %3858 = vmatprep.subr.bf16.mxu0 %v3594
        %3859 = vmatpush1.bf16.msra.mxu0 %v3593
        %3860 = vmatprep.subr.bf16.mxu0 %v3596
        %3861 = vmatpush1.bf16.msra.mxu0 %v3595
        %3862 = vmatprep.subr.bf16.mxu0 %v3598
        %3863 = vmatpush1.bf16.msra.mxu0 %v3597
        %3864 = vmatprep.subr.bf16.mxu0 %v3600
        %3865 = vmatpush1.bf16.msra.mxu0 %v3599
        %3866 = vmatprep.subr.bf16.mxu0 %v3602
        %3867 = vmatpush1.bf16.msra.mxu0 %v3601
        %3868 = vmatprep.subr.bf16.mxu0 %v3604
        %3869 = vmatpush1.bf16.msra.mxu0 %v3603
        %3870 = vmatprep.subr.bf16.mxu0 %v3606
        %3871 = vmatpush1.bf16.msra.mxu0 %v3605
        %3872 = vmatprep.mubr.bf16.mxu0 %v346
        %3873 = vmatmul.mubr.bf16.gmra.mrb[0].mxu0 %v345
        %v3874 = vpop.f32.mrb[0].mxu0
        %v3875 = vadd.f32 %v3834, %v3874
        %v3876 = vpop.f32.mrb[0].mxu0
        %v3877 = vadd.f32 %v3836, %v3876
        %v3878 = vpop.f32.mrb[0].mxu0
        %v3879 = vpop.f32.mrb[0].mxu0
        %3880 = vdwg.mxu0
        %3881 = vmatprep.subr.bf16.mxu0 %v3608
        %3882 = vmatpush1.bf16.msra.mxu0 %v3607
        %3883 = vmatprep.subr.bf16.mxu0 %v3610
        %3884 = vmatpush1.bf16.msra.mxu0 %v3609
        %3885 = vmatprep.subr.bf16.mxu0 %v3612
        %3886 = vmatpush1.bf16.msra.mxu0 %v3611
        %3887 = vmatprep.subr.bf16.mxu0 %v3614
        %3888 = vmatpush1.bf16.msra.mxu0 %v3613
        %3889 = vmatprep.subr.bf16.mxu0 %v3616
        %3890 = vmatpush1.bf16.msra.mxu0 %v3615
        %3891 = vmatprep.subr.bf16.mxu0 %v3618
        %3892 = vmatpush1.bf16.msra.mxu0 %v3617
        %3893 = vmatprep.subr.bf16.mxu0 %v3620
        %3894 = vmatpush1.bf16.msra.mxu0 %v3619
        %3895 = vmatprep.subr.bf16.mxu0 %v3622
        %3896 = vmatpush1.bf16.msra.mxu0 %v3621
        %3897 = vmatprep.subr.bf16.mxu0 %v3624
        %3898 = vmatpush1.bf16.msra.mxu0 %v3623
        %3899 = vmatprep.subr.bf16.mxu0 %v3626
        %3900 = vmatpush1.bf16.msra.mxu0 %v3625
        %3901 = vmatprep.subr.bf16.mxu0 %v3628
        %3902 = vmatpush1.bf16.msra.mxu0 %v3627
        %3903 = vmatprep.subr.bf16.mxu0 %v3630
        %3904 = vmatpush1.bf16.msra.mxu0 %v3629
        %3905 = vmatprep.subr.bf16.mxu0 %v3632
        %3906 = vmatpush1.bf16.msra.mxu0 %v3631
        %3907 = vmatprep.subr.bf16.mxu0 %v3634
        %3908 = vmatpush1.bf16.msra.mxu0 %v3633
        %3909 = vmatprep.subr.bf16.mxu0 %v3636
        %3910 = vmatpush1.bf16.msra.mxu0 %v3635
        %3911 = vmatprep.subr.bf16.mxu0 %v3638
        %3912 = vmatpush1.bf16.msra.mxu0 %v3637
        %3913 = vmatprep.mubr.bf16.mxu0 %v348
        %3914 = vmatmul.mubr.bf16.gmra.mrb[0].mxu0 %v347
        %v3915 = vpop.f32.mrb[0].mxu0
        %v3916 = vadd.f32 %v3875, %v3915
        %v3917 = vpop.f32.mrb[0].mxu0
        %v3918 = vadd.f32 %v3877, %v3917
        %v3919 = vpop.f32.mrb[0].mxu0
        %v3920 = vpop.f32.mrb[0].mxu0
        %3921 = vdwg.mxu0
        %3922 = vmatprep.subr.bf16.mxu0 %v3640
        %3923 = vmatpush1.bf16.msra.mxu0 %v3639
        %3924 = vmatprep.subr.bf16.mxu0 %v3642
        %3925 = vmatpush1.bf16.msra.mxu0 %v3641
        %3926 = vmatprep.subr.bf16.mxu0 %v3644
        %3927 = vmatpush1.bf16.msra.mxu0 %v3643
        %3928 = vmatprep.subr.bf16.mxu0 %v3646
        %3929 = vmatpush1.bf16.msra.mxu0 %v3645
        %3930 = vmatprep.subr.bf16.mxu0 %v3648
        %3931 = vmatpush1.bf16.msra.mxu0 %v3647
        %3932 = vmatprep.subr.bf16.mxu0 %v3650
        %3933 = vmatpush1.bf16.msra.mxu0 %v3649
        %3934 = vmatprep.subr.bf16.mxu0 %v3652
        %3935 = vmatpush1.bf16.msra.mxu0 %v3651
        %3936 = vmatprep.subr.bf16.mxu0 %v3654
        %3937 = vmatpush1.bf16.msra.mxu0 %v3653
        %3938 = vmatprep.subr.bf16.mxu0 %v3656
        %3939 = vmatpush1.bf16.msra.mxu0 %v3655
        %3940 = vmatprep.subr.bf16.mxu0 %v3658
        %3941 = vmatpush1.bf16.msra.mxu0 %v3657
        %3942 = vmatprep.subr.bf16.mxu0 %v3660
        %3943 = vmatpush1.bf16.msra.mxu0 %v3659
        %3944 = vmatprep.subr.bf16.mxu0 %v3662
        %3945 = vmatpush1.bf16.msra.mxu0 %v3661
        %3946 = vmatprep.subr.bf16.mxu0 %v3664
        %3947 = vmatpush1.bf16.msra.mxu0 %v3663
        %3948 = vmatprep.subr.bf16.mxu0 %v3666
        %3949 = vmatpush1.bf16.msra.mxu0 %v3665
        %3950 = vmatprep.subr.bf16.mxu0 %v3668
        %3951 = vmatpush1.bf16.msra.mxu0 %v3667
        %3952 = vmatprep.subr.bf16.mxu0 %v3670
        %3953 = vmatpush1.bf16.msra.mxu0 %v3669
        %3954 = vmatprep.mubr.bf16.mxu0 %v350
        %3955 = vmatmul.mubr.bf16.gmra.mrb[0].mxu0 %v349
        %v3956 = vpop.f32.mrb[0].mxu0
        %v3957 = vadd.f32 %v3916, %v3956
        %v3958 = vpop.f32.mrb[0].mxu0
        %v3959 = vadd.f32 %v3918, %v3958
        %v3960 = vpop.f32.mrb[0].mxu0
        %v3961 = vpop.f32.mrb[0].mxu0
        %3962 = vdwg.mxu0
        %v3963 = vmax.f32 %v3029, %v3957
        %v3964 = vmax.f32 %v3030, %v3959
        %v3965 = vld [vmem:[#allocation4] sm:$0x3]
        %v3967 = vlaneseq
        %v3968 = vshrl.u32 %v3967, 7
        %v3969 = vsub.s32 0, %v3968
        %v3970 = vrot.slane %v3965, %v3969
        %v3971 = vlaneseq
        %v3972 = vshrl.u32 %v3971, 7
        %v3973 = vsub.s32 1, %v3972
        %v3974 = vrot.slane %v3965, %v3973
        %v3977 = vadd.f32 %v3963, %v3970
        %v3978 = vadd.f32 %v3964, %v3974
        %v3979 = vmax.f32 %v3977, 0.0
        %v3980 = vmax.f32 %v3978, 0.0
        %v3981 = vpack.c.bf16 %v3979, %v3979
        %v3982 = vpack.c.bf16 %v3980, %v3980
        %v3985 = vunpack.c.l.b16 %v3981
        %v3986 = vunpack.c.l.b16 %v3982
        %v3987 = vpack.c.b16 %v3986, %v3985
        %3989 = vst [vmem:[%s198] sm:$0xff] %v3987
        %p3990 = scmp.lt.s32.totalorder %s16, 1
        %s3991 = scalar_select %p3990, %s16, 1
        %s3992 = smul.addr %s3991, 2
        %s3993 = smul.addr %s3992, 4
        %s3994 = scalar_lea.vmem %s3, %s3993
        // Predicated region
        $region41: #{forward.4} parent=31 // pred_check
          %p3995 = pneg %p102
        $region42: #{forward.4} parent=31 // pred_check_branch
          %3997 = sbr.rel (%p3995) target = $region44
        $region43: #{forward.4} parent=31 // pred_region
          _
        $region44: #{forward.4} parent=31 // pred_fallthru
          _
      $region32: #{forward.4} parent=5 // pred_fallthru
        _
      %p3998 = scmp.le.s32.totalorder 2, %s11
      // Predicated region
      $region45: #{forward.4} parent=5 // pred_check
        %p3999 = pneg %p3998
      $region46: #{forward.4} parent=5 // pred_check_branch
        %4001 = sbr.rel (%p3999) target = $region48
      $region47: #{forward.4} parent=5 // pred_region
        %s4002 = ssub.s32 %s11, 2
        // Predicated region
        $region49: #{forward.4} parent=47 // pred_check
          %p4003 = pneg %p108
        $region50: #{forward.4} parent=47 // pred_check_branch
          %4005 = sbr.rel (%p4003) target = $region52
        $region51: #{forward.4} parent=47 // pred_region
          %p4006 = scmp.lt.s32.totalorder %s17, 1
          %s4007 = scalar_select %p4006, %s17, 1
          %s4008 = smul.addr %s4007, 2
          %s4009 = smul.addr %s4008, 4
          %s4010 = scalar_lea.vmem %s3, %s4009
        $region52: #{forward.4} parent=47 // pred_fallthru
          _
      $region48: #{forward.4} parent=5 // pred_fallthru
        _
    $region6: #{forward.4} parent=1 // loop_footer
      %s15 = sadd.s32 1, %s11
    $region7: #{forward.4} parent=1 // loop_footer_branch
      %10 = sbr.rel target = $region3
    $region8: #{forward.4} parent=1 // loop_exit
      _
    %4011 = vsyncpa [#allocation3], 1
    %s4012 = scalar_lea.sflag [#allocation3], 1
    %4013 = vsyncpa %s4012, 1
    %4014 = vsyncpa [#allocation5], 1

</llo_original>
